<compile_context>
chip_gen: v7x
topology: tpu7x:2x2x1
jax: 0.10.0
libtpu: 0.0.40
codegen_flags: <defaults>
</compile_context>

<pallas_src>
import functools

import jax
import jax.numpy as jnp
from jax.experimental import pallas as pl
from jax.experimental.pallas import tpu as pltpu

NEG_INF = -1e30
NEG_SLOPE = 0.2          # GATConv default leaky_relu slope
LANE = 128               # lane-dense padding target
VMEM_LIMIT = 32 * 1024 * 1024


def _round_up(v, m):
    return ((v + m - 1) // m) * m


def _row_tile(n, max_tile=128):
    """Largest row tile <= max_tile that divides n (multiple of 8 preferred)."""
    for t in (max_tile, 64, 32, 16, 8):
        if t <= n and n % t == 0:
            return t
    return n  # fall back to a single full block (legal: equals full dim)


# ---------------------------------------------------------------------------
# Kernel 1: per-layer projection  xp = x @ W ,  scores = xp @ A  (lane-dense)
# ---------------------------------------------------------------------------
def _project_kernel(x_ref, w_ref, a_ref, xp_ref, sc_ref):
    # x [tm, F_pad] f32 ; w [F_pad, HD_pad] bf16 ; a [HD_pad, LANE] f32
    x = x_ref[...].astype(jnp.bfloat16)
    xp = jnp.dot(x, w_ref[...], preferred_element_type=jnp.float32)   # [tm, HD_pad]
    # block-diagonal A gives [a_src | a_dst | 0-pad] per head in one MXU matmul
    sc_ref[...] = jnp.dot(xp, a_ref[...], preferred_element_type=jnp.float32)
    xp_ref[...] = xp.astype(jnp.bfloat16)


def gat_project(x, w, a):
    n, f_pad = x.shape
    hd_pad = w.shape[1]
    sc_cols = a.shape[1]                       # == LANE (lane-dense score output)
    tm = _row_tile(n)
    flops = 2 * n * f_pad * hd_pad + 2 * n * hd_pad * sc_cols
    bytes_accessed = (n * f_pad * 4 + f_pad * hd_pad * 2 + hd_pad * sc_cols * 4
                      + n * hd_pad * 2 + n * sc_cols * 4)
    return pl.pallas_call(
        _project_kernel,
        out_shape=(jax.ShapeDtypeStruct((n, hd_pad), jnp.bfloat16),
                   jax.ShapeDtypeStruct((n, sc_cols), jnp.float32)),
        grid_spec=pltpu.PrefetchScalarGridSpec(
            num_scalar_prefetch=0,
            grid=(n // tm,),
            in_specs=[pl.BlockSpec((tm, f_pad), lambda i: (i, 0)),
                      pl.BlockSpec((f_pad, hd_pad), lambda i: (0, 0)),
                      pl.BlockSpec((hd_pad, sc_cols), lambda i: (0, 0))],
            out_specs=[pl.BlockSpec((tm, hd_pad), lambda i: (i, 0)),
                       pl.BlockSpec((tm, sc_cols), lambda i: (i, 0))]),
        compiler_params=pltpu.CompilerParams(
            dimension_semantics=("parallel",),
            vmem_limit_bytes=VMEM_LIMIT),
        cost_estimate=pl.CostEstimate(flops=flops, transcendentals=0,
                                      bytes_accessed=bytes_accessed),
    )(x, w, a)


# ---------------------------------------------------------------------------
# Kernel 2: per-layer masked attention + aggregation + bias + ReLU
# ---------------------------------------------------------------------------
@functools.lru_cache(maxsize=None)
def _make_attend_kernel(heads, head_dim):
    hd = heads * head_dim

    def kernel(mask_ref, xp_ref, a_srcT_ref, sc_ref, bias_ref, out_ref):
        # additive -inf mask (precomputed once per forward, bf16 in HBM)
        neg = mask_ref[...].astype(jnp.float32)                 # [tm, N]
        xp = xp_ref[...]                                        # [N, HD_pad] bf16
        a_srcT = a_srcT_ref[...]                                # [H, N]  f32
        sc = sc_ref[...]                                        # [tm, LANE] f32
        bias = bias_ref[...]                                    # [1, HD_pad]

        aggs = []
        for h in range(heads):                                  # static unroll
            lo, hi = h * head_dim, (h + 1) * head_dim
            # e[i, j] = a_dst[i] + a_src[j]
            e = sc[:, heads + h:heads + h + 1] + a_srcT[h:h + 1, :]   # [tm, N]
            e = jnp.where(e >= 0.0, e, NEG_SLOPE * e)           # leaky_relu
            e = e + neg                                         # mask non-edges
            e = e - jnp.max(e, axis=-1, keepdims=True)          # row max finite
            p = jnp.exp(e)                                      # masked -> exactly 0
            # self loops guarantee denom >= 1 (exp(0) from the row max)
            alpha = p * pl.reciprocal(jnp.sum(p, axis=-1, keepdims=True),
                                      approx=True)
            aggs.append(jnp.dot(alpha.astype(jnp.bfloat16), xp[:, lo:hi],
                                preferred_element_type=jnp.float32))  # [tm, D]

        pad = out_ref.shape[1] - hd
        if pad > 0:
            aggs.append(jnp.zeros((out_ref.shape[0], pad), jnp.float32))
        agg = jnp.concatenate(aggs, axis=-1)                    # [tm, HD_pad]
        # fused GATConv bias + F.relu, single lane-dense store.  bias padding
        # lanes are 0 and relu(0) = 0, so padding lanes stay exact zeros.
        out_ref[...] = jnp.maximum(agg + bias, 0.0)

    return kernel


def gat_attend(neg_mask, xp, a_srcT, scores, bias, heads, head_dim):
    n = neg_mask.shape[0]
    hd_pad = xp.shape[1]
    sc_cols = scores.shape[1]
    tm = _row_tile(n)
    flops = 2 * heads * n * n * head_dim + 8 * heads * n * n
    transc = heads * n * n
    bytes_accessed = (n * n * 2 + n * hd_pad * 2 + heads * n * 4
                      + n * sc_cols * 4 + hd_pad * 4 + n * hd_pad * 4)
    return pl.pallas_call(
        _make_attend_kernel(heads, head_dim),
        out_shape=jax.ShapeDtypeStruct((n, hd_pad), jnp.float32),
        grid_spec=pltpu.PrefetchScalarGridSpec(
            num_scalar_prefetch=0,
            grid=(n // tm,),
            in_specs=[pl.BlockSpec((tm, n), lambda i: (i, 0)),        # mask row tile
                      pl.BlockSpec((n, hd_pad), lambda i: (0, 0)),    # x' (all sources)
                      pl.BlockSpec((heads, n), lambda i: (0, 0)),     # a_src^T
                      pl.BlockSpec((tm, sc_cols), lambda i: (i, 0)),  # scores tile (a_dst)
                      pl.BlockSpec((1, hd_pad), lambda i: (0, 0))],   # bias
            out_specs=pl.BlockSpec((tm, hd_pad), lambda i: (i, 0))),
        compiler_params=pltpu.CompilerParams(
            dimension_semantics=("parallel",),
            vmem_limit_bytes=VMEM_LIMIT),
        cost_estimate=pl.CostEstimate(flops=flops, transcendentals=transc,
                                      bytes_accessed=bytes_accessed),
    )(neg_mask, xp, a_srcT, scores, bias)


def gat_conv_relu(x, neg_mask, layer, heads, head_dim):
    xp, scores = gat_project(x, layer["w"], layer["A"])
    a_srcT = jnp.transpose(scores[:, :heads])    # tiny [N, H] -> [H, N] (XLA)
    return gat_attend(neg_mask, xp, a_srcT, scores, layer["bias"],
                      heads, head_dim)


# ---------------------------------------------------------------------------
# Kernel 3: global_max_pool + fc1 + ReLU + fc2  (row-tiled reduction)
# ---------------------------------------------------------------------------
@functools.lru_cache(maxsize=None)
def _make_pool_mlp_kernel(num_graphs):
    def kernel(x_ref, member_ref, w1_ref, b1_ref, w2_ref, b2_ref,
               out_ref, pooled_ref):
        i = pl.program_id(0)

        @pl.when(i == 0)
        def _():
            pooled_ref[...] = jnp.full(pooled_ref.shape, NEG_INF,
                                       pooled_ref.dtype)

        x = x_ref[...]                     # [tm, F_pad]
        member = member_ref[...]           # [tm, B]
        for g in range(num_graphs):        # static unroll; write into scratch rows
            masked = jnp.where(member[:, g:g + 1] > 0.0, x, NEG_INF)
            blk = jnp.max(masked, axis=0, keepdims=True)          # [1, F_pad]
            pooled_ref[g:g + 1, :] = jnp.maximum(pooled_ref[g:g + 1, :], blk)

        @pl.when(i == pl.num_programs(0) - 1)
        def _():
            pooled = pooled_ref[...]                              # [B, F_pad]
            h1 = jnp.dot(pooled, w1_ref[...],
                         preferred_element_type=jnp.float32) + b1_ref[...]
            h1 = jnp.maximum(h1, 0.0)
            out_ref[...] = jnp.dot(h1, w2_ref[...],
                                   preferred_element_type=jnp.float32) + b2_ref[...]

    return kernel


def pool_and_mlp(x, member, w1, b1, w2, b2):
    n, f_pad = x.shape
    num_graphs = member.shape[1]
    f1_pad = w1.shape[1]
    c_pad = w2.shape[1]
    tm = _row_tile(n)
    flops = (n * num_graphs * f_pad
             + 2 * num_graphs * f_pad * f1_pad + 2 * num_graphs * f1_pad * c_pad)
    bytes_accessed = (n * f_pad * 4 + n * num_graphs * 4
                      + f_pad * f1_pad * 4 + f1_pad * c_pad * 4
                      + num_graphs * c_pad * 4)
    return pl.pallas_call(
        _make_pool_mlp_kernel(num_graphs),
        out_shape=jax.ShapeDtypeStruct((num_graphs, c_pad), jnp.float32),
        grid_spec=pltpu.PrefetchScalarGridSpec(
            num_scalar_prefetch=0,
            grid=(n // tm,),
            in_specs=[pl.BlockSpec((tm, f_pad), lambda i: (i, 0)),
                      pl.BlockSpec((tm, num_graphs), lambda i: (i, 0)),
                      pl.BlockSpec((f_pad, f1_pad), lambda i: (0, 0)),
                      pl.BlockSpec((1, f1_pad), lambda i: (0, 0)),
                      pl.BlockSpec((f1_pad, c_pad), lambda i: (0, 0)),
                      pl.BlockSpec((1, c_pad), lambda i: (0, 0))],
            out_specs=pl.BlockSpec((num_graphs, c_pad), lambda i: (0, 0)),
            scratch_shapes=[pltpu.VMEM((num_graphs, f_pad), jnp.float32)]),
        compiler_params=pltpu.CompilerParams(
            dimension_semantics=("arbitrary",),
            vmem_limit_bytes=VMEM_LIMIT),
        cost_estimate=pl.CostEstimate(flops=flops, transcendentals=0,
                                      bytes_accessed=bytes_accessed),
    )(x, member, w1, b1, w2, b2)


# ---------------------------------------------------------------------------
# Parameter init (deterministic, glorot-uniform like PyG; zero padding)
# ---------------------------------------------------------------------------
def glorot(key, shape):
    fan_in, fan_out = shape[-2], shape[-1]
    lim = (6.0 / (fan_in + fan_out)) ** 0.5
    return jax.random.uniform(key, shape, jnp.float32, -lim, lim)


def _pad2d(a, rows, cols):
    r, c = a.shape
    return jnp.pad(a, ((0, rows - r), (0, cols - c)))


def init_gat_layer(key, f_in, gat_dim, heads, f_in_pad, out_pad):
    assert 2 * heads <= LANE
    k1, k2, k3 = jax.random.split(key, 3)
    hd = heads * gat_dim
    w = glorot(k1, (f_in, hd))                     # lin.weight (no bias in lin)
    att_src = glorot(k2, (heads, gat_dim))
    att_dst = glorot(k3, (heads, gat_dim))
    # block-diagonal score matrix, padded to 128 output lanes:
    # (x') @ A -> [a_src(h=0..H-1) | a_dst(...) | zeros]
    a_mat = jnp.zeros((out_pad, LANE), jnp.float32)
    for h in range(heads):
        a_mat = a_mat.at[h * gat_dim:(h + 1) * gat_dim, h].set(att_src[h])
        a_mat = a_mat.at[h * gat_dim:(h + 1) * gat_dim, heads + h].set(att_dst[h])
    return {
        "w": _pad2d(w, f_in_pad, out_pad).astype(jnp.bfloat16),
        "A": a_mat,
        "bias": jnp.zeros((1, out_pad), jnp.float32),   # GATConv bias (concat=True)
    }


def init_model_params(key, num_features, num_classes, num_gat_layers,
                      gat_dim, heads):
    f_in_pad = _round_up(num_features, LANE)
    hd = gat_dim * heads
    hd_pad = _round_up(hd, LANE)
    f1 = 2 * gat_dim
    f1_pad = _round_up(f1, LANE)
    c_pad = _round_up(num_classes, LANE)
    keys = jax.random.split(key, num_gat_layers + 3)
    layers = [init_gat_layer(keys[0], num_features, gat_dim, heads,
                             f_in_pad, hd_pad)]
    layers += [init_gat_layer(keys[1 + i], hd, gat_dim, heads, hd_pad, hd_pad)
               for i in range(num_gat_layers)]
    return {
        "layers": layers,
        "fc1_w": _pad2d(glorot(keys[-2], (hd, f1)), hd_pad, f1_pad),
        "fc1_b": jnp.zeros((1, f1_pad), jnp.float32),
        "fc2_w": _pad2d(glorot(keys[-1], (f1, num_classes)), f1_pad, c_pad),
        "fc2_b": jnp.zeros((1, c_pad), jnp.float32),
    }


# ---------------------------------------------------------------------------
# Full forward (glue in plain JAX; hot paths in Pallas kernels)
# ---------------------------------------------------------------------------
def ti_gat_forward(params, x_pad, adj, member, *, heads, head_dim, num_classes):
    # additive -inf mask computed ONCE (bf16) and shared by every GAT layer
    neg_mask = jnp.where(adj > 0.0, 0.0, NEG_INF).astype(jnp.bfloat16)
    h = x_pad
    for layer in params["layers"]:
        h = gat_conv_relu(h, neg_mask, layer, heads, head_dim)
    logits_pad = pool_and_mlp(h, member,
                              params["fc1_w"], params["fc1_b"],
                              params["fc2_w"], params["fc2_b"])
    return logits_pad[:, :num_classes]


if __name__ == "__main__":
    # small synthetic graph batch: 4 graphs x 64 nodes = 256 nodes
    num_features, num_classes = 8, 3
    num_gat_layers, gat_dim, heads = 6, 16, 4
    nodes_per_graph, num_graphs = 64, 4
    N = nodes_per_graph * num_graphs

    key = jax.random.PRNGKey(0)
    k_x, k_params = jax.random.split(key)

    x = jax.random.normal(k_x, (N, num_features), jnp.float32)
    f_in_pad = _round_up(num_features, LANE)
    x_pad = jnp.pad(x, ((0, 0), (0, f_in_pad - num_features)))   # lane-dense input

    # undirected ring edges within each graph
    edges = []
    for g in range(num_graphs):
        off = g * nodes_per_graph
        for i in range(nodes_per_graph):
            j = (i + 1) % nodes_per_graph
            edges.append((off + i, off + j))
            edges.append((off + j, off + i))
    edge_index = jnp.array(edges, dtype=jnp.int32).T              # [2, E]

    # dense adjacency: adj[dst, src] = 1 ; self loops (GATConv add_self_loops)
    adj = jnp.zeros((N, N), jnp.float32)
    adj = adj.at[edge_index[1], edge_index[0]].set(1.0)
    adj = adj.at[jnp.arange(N), jnp.arange(N)].set(1.0)

    batch = jnp.repeat(jnp.arange(num_graphs, dtype=jnp.int32), nodes_per_graph)
    member = jax.nn.one_hot(batch, num_graphs, dtype=jnp.float32)  # [N, B]

    params = init_model_params(k_params, num_features, num_classes,
                               num_gat_layers, gat_dim, heads)

    fwd = jax.jit(functools.partial(ti_gat_forward, heads=heads,
                                    head_dim=gat_dim, num_classes=num_classes))
    out = fwd(params, x_pad, adj, member)
    out = jax.block_until_ready(out)
    assert out.shape == (num_graphs, num_classes)
    assert bool(jnp.all(jnp.isfinite(out)))
    print("KERNEL_OK")
</pallas_src>

<mosaic_0001>
module attributes {stable_mosaic.version = 11 : i64} {
  func.func @kernel(%arg0: i32, %arg1: memref<128x128xf32, #tpu.memory_space<vmem>>, %arg2: memref<128x4xf32, #tpu.memory_space<vmem>>, %arg3: memref<128x128xf32, #tpu.memory_space<vmem>>, %arg4: memref<1x128xf32, #tpu.memory_space<vmem>>, %arg5: memref<128x128xf32, #tpu.memory_space<vmem>>, %arg6: memref<1x128xf32, #tpu.memory_space<vmem>>, %arg7: memref<4x128xf32, #tpu.memory_space<vmem>>, %arg8: memref<4x128xf32, #tpu.memory_space<vmem>>) attributes {dimension_semantics = [#tpu.dimension_semantics<arbitrary>], iteration_bounds = array<i64: 2>, scalar_prefetch = 0 : i64, scratch_operands = 1 : i64, tpu.core_type = #tpu.core_type<tc>, window_params = [{transform_indices = @transform_0, window_bounds = array<i64: 128, 128>}, {transform_indices = @transform_1, window_bounds = array<i64: 128, 4>}, {pipeline_mode = #tpu.pipeline_mode<synchronous>, transform_indices = @transform_2, window_bounds = array<i64: 128, 128>}, {pipeline_mode = #tpu.pipeline_mode<synchronous>, transform_indices = @transform_3, window_bounds = array<i64: 1, 128>}, {pipeline_mode = #tpu.pipeline_mode<synchronous>, transform_indices = @transform_4, window_bounds = array<i64: 128, 128>}, {pipeline_mode = #tpu.pipeline_mode<synchronous>, transform_indices = @transform_5, window_bounds = array<i64: 1, 128>}, {pipeline_mode = #tpu.pipeline_mode<synchronous>, transform_indices = @transform_6, window_bounds = array<i64: 4, 128>}]} {
    %c0_i32 = arith.constant 0 : i32
    %0 = arith.cmpi eq, %arg0, %c0_i32 : i32
    %1 = arith.extui %0 : i1 to i32
    %c0_i32_0 = arith.constant 0 : i32
    %2 = arith.cmpi ne, %1, %c0_i32_0 : i32
    scf.if %2 {
      %cst_29 = arith.constant -1.000000e+30 : f32
      %56 = vector.broadcast %cst_29 : f32 to vector<4x128xf32>
      %c0_30 = arith.constant 0 : index
      %c0_31 = arith.constant 0 : index
      %57 = vector.load %arg8[%c0_30, %c0_31] : memref<4x128xf32, #tpu.memory_space<vmem>>, vector<4x128xf32>
      tpu.vector_store %arg8[%c0_30, %c0_31], %56 {strides = array<i32>} : memref<4x128xf32, #tpu.memory_space<vmem>>, vector<4x128xf32>,
    } else {
    }
    %c0 = arith.constant 0 : index
    %c0_1 = arith.constant 0 : index
    %3 = vector.load %arg1[%c0, %c0_1] : memref<128x128xf32, #tpu.memory_space<vmem>>, vector<128x128xf32>
    %c0_2 = arith.constant 0 : index
    %c0_3 = arith.constant 0 : index
    %4 = vector.load %arg2[%c0_2, %c0_3] : memref<128x4xf32, #tpu.memory_space<vmem>>, vector<128x4xf32>
    %5 = vector.extract_strided_slice %4 {offsets = [0, 0], sizes = [128, 1], strides = [1, 1]} : vector<128x4xf32> to vector<128x1xf32>
    %cst = arith.constant 0.000000e+00 : f32
    %6 = vector.broadcast %cst : f32 to vector<128x1xf32>
    %7 = arith.cmpf ogt, %5, %6 : vector<128x1xf32>
    %cst_4 = arith.constant -1.000000e+30 : f32
    %8 = vector.shape_cast %7 : vector<128x1xi1> to vector<128x1xi1>
    %9 = vector.broadcast %8 : vector<128x1xi1> to vector<128x128xi1>
    %10 = vector.broadcast %cst_4 : f32 to vector<128x128xf32>
    %11 = arith.select %9, %3, %10 : vector<128x128xi1>, vector<128x128xf32>
    %cst_5 = arith.constant dense<0xFF800000> : vector<128xf32>
    %12 = vector.multi_reduction <maximumf>, %11, %cst_5 [0] : vector<128x128xf32> to vector<128xf32>
    %13 = vector.shape_cast %12 : vector<128xf32> to vector<1x128xf32>
    %c0_6 = arith.constant 0 : index
    %c0_7 = arith.constant 0 : index
    %14 = vector.load %arg8[%c0_6, %c0_7] : memref<4x128xf32, #tpu.memory_space<vmem>>, vector<1x128xf32>
    %15 = arith.maximumf %14, %13 : vector<1x128xf32>
    %c0_8 = arith.constant 0 : index
    %c0_9 = arith.constant 0 : index
    %16 = vector.load %arg8[%c0_8, %c0_9] : memref<4x128xf32, #tpu.memory_space<vmem>>, vector<1x128xf32>
    tpu.vector_store %arg8[%c0_8, %c0_9], %15 {strides = array<i32>} : memref<4x128xf32, #tpu.memory_space<vmem>>, vector<1x128xf32>,
    %17 = vector.extract_strided_slice %4 {offsets = [0, 1], sizes = [128, 1], strides = [1, 1]} : vector<128x4xf32> to vector<128x1xf32>
    %cst_10 = arith.constant 0.000000e+00 : f32
    %18 = vector.broadcast %cst_10 : f32 to vector<128x1xf32>
    %19 = arith.cmpf ogt, %17, %18 : vector<128x1xf32>
    %cst_11 = arith.constant -1.000000e+30 : f32
    %20 = vector.shape_cast %19 : vector<128x1xi1> to vector<128x1xi1>
    %21 = vector.broadcast %20 : vector<128x1xi1> to vector<128x128xi1>
    %22 = vector.broadcast %cst_11 : f32 to vector<128x128xf32>
    %23 = arith.select %21, %3, %22 : vector<128x128xi1>, vector<128x128xf32>
    %cst_12 = arith.constant dense<0xFF800000> : vector<128xf32>
    %24 = vector.multi_reduction <maximumf>, %23, %cst_12 [0] : vector<128x128xf32> to vector<128xf32>
    %25 = vector.shape_cast %24 : vector<128xf32> to vector<1x128xf32>
    %c1 = arith.constant 1 : index
    %c0_13 = arith.constant 0 : index
    %26 = vector.load %arg8[%c1, %c0_13] : memref<4x128xf32, #tpu.memory_space<vmem>>, vector<1x128xf32>
    %27 = arith.maximumf %26, %25 : vector<1x128xf32>
    %c1_14 = arith.constant 1 : index
    %c0_15 = arith.constant 0 : index
    %28 = vector.load %arg8[%c1_14, %c0_15] : memref<4x128xf32, #tpu.memory_space<vmem>>, vector<1x128xf32>
    tpu.vector_store %arg8[%c1_14, %c0_15], %27 {strides = array<i32>} : memref<4x128xf32, #tpu.memory_space<vmem>>, vector<1x128xf32>,
    %29 = vector.extract_strided_slice %4 {offsets = [0, 2], sizes = [128, 1], strides = [1, 1]} : vector<128x4xf32> to vector<128x1xf32>
    %cst_16 = arith.constant 0.000000e+00 : f32
    %30 = vector.broadcast %cst_16 : f32 to vector<128x1xf32>
    %31 = arith.cmpf ogt, %29, %30 : vector<128x1xf32>
    %cst_17 = arith.constant -1.000000e+30 : f32
    %32 = vector.shape_cast %31 : vector<128x1xi1> to vector<128x1xi1>
    %33 = vector.broadcast %32 : vector<128x1xi1> to vector<128x128xi1>
    %34 = vector.broadcast %cst_17 : f32 to vector<128x128xf32>
    %35 = arith.select %33, %3, %34 : vector<128x128xi1>, vector<128x128xf32>
    %cst_18 = arith.constant dense<0xFF800000> : vector<128xf32>
    %36 = vector.multi_reduction <maximumf>, %35, %cst_18 [0] : vector<128x128xf32> to vector<128xf32>
    %37 = vector.shape_cast %36 : vector<128xf32> to vector<1x128xf32>
    %c2 = arith.constant 2 : index
    %c0_19 = arith.constant 0 : index
    %38 = vector.load %arg8[%c2, %c0_19] : memref<4x128xf32, #tpu.memory_space<vmem>>, vector<1x128xf32>
    %39 = arith.maximumf %38, %37 : vector<1x128xf32>
    %c2_20 = arith.constant 2 : index
    %c0_21 = arith.constant 0 : index
    %40 = vector.load %arg8[%c2_20, %c0_21] : memref<4x128xf32, #tpu.memory_space<vmem>>, vector<1x128xf32>
    tpu.vector_store %arg8[%c2_20, %c0_21], %39 {strides = array<i32>} : memref<4x128xf32, #tpu.memory_space<vmem>>, vector<1x128xf32>,
    %41 = vector.extract_strided_slice %4 {offsets = [0, 3], sizes = [128, 1], strides = [1, 1]} : vector<128x4xf32> to vector<128x1xf32>
    %cst_22 = arith.constant 0.000000e+00 : f32
    %42 = vector.broadcast %cst_22 : f32 to vector<128x1xf32>
    %43 = arith.cmpf ogt, %41, %42 : vector<128x1xf32>
    %cst_23 = arith.constant -1.000000e+30 : f32
    %44 = vector.shape_cast %43 : vector<128x1xi1> to vector<128x1xi1>
    %45 = vector.broadcast %44 : vector<128x1xi1> to vector<128x128xi1>
    %46 = vector.broadcast %cst_23 : f32 to vector<128x128xf32>
    %47 = arith.select %45, %3, %46 : vector<128x128xi1>, vector<128x128xf32>
    %cst_24 = arith.constant dense<0xFF800000> : vector<128xf32>
    %48 = vector.multi_reduction <maximumf>, %47, %cst_24 [0] : vector<128x128xf32> to vector<128xf32>
    %49 = vector.shape_cast %48 : vector<128xf32> to vector<1x128xf32>
    %c3 = arith.constant 3 : index
    %c0_25 = arith.constant 0 : index
    %50 = vector.load %arg8[%c3, %c0_25] : memref<4x128xf32, #tpu.memory_space<vmem>>, vector<1x128xf32>
    %51 = arith.maximumf %50, %49 : vector<1x128xf32>
    %c3_26 = arith.constant 3 : index
    %c0_27 = arith.constant 0 : index
    %52 = vector.load %arg8[%c3_26, %c0_27] : memref<4x128xf32, #tpu.memory_space<vmem>>, vector<1x128xf32>
    tpu.vector_store %arg8[%c3_26, %c0_27], %51 {strides = array<i32>} : memref<4x128xf32, #tpu.memory_space<vmem>>, vector<1x128xf32>,
    %c1_i32 = arith.constant 1 : i32
    %53 = arith.cmpi eq, %arg0, %c1_i32 : i32
    %54 = arith.extui %53 : i1 to i32
    %c0_i32_28 = arith.constant 0 : i32
    %55 = arith.cmpi ne, %54, %c0_i32_28 : i32
    scf.if %55 {
      %c0_29 = arith.constant 0 : index
      %c0_30 = arith.constant 0 : index
      %56 = vector.load %arg8[%c0_29, %c0_30] : memref<4x128xf32, #tpu.memory_space<vmem>>, vector<4x128xf32>
      %c0_31 = arith.constant 0 : index
      %c0_32 = arith.constant 0 : index
      %57 = vector.load %arg3[%c0_31, %c0_32] : memref<128x128xf32, #tpu.memory_space<vmem>>, vector<128x128xf32>
      %cst_33 = arith.constant dense<0.000000e+00> : vector<4x128xf32>
      %58 = tpu.matmul %56, %57, %cst_33 {dimension_numbers = #tpu.dot_dimension_numbers<[1], [0], [0], [1], [0, 0, 1, 1], [], []>} : vector<4x128xf32>, vector<128x128xf32>, vector<4x128xf32> -> vector<4x128xf32>
      %c0_34 = arith.constant 0 : index
      %c0_35 = arith.constant 0 : index
      %59 = vector.load %arg4[%c0_34, %c0_35] : memref<1x128xf32, #tpu.memory_space<vmem>>, vector<1x128xf32>
      %60 = vector.broadcast %59 : vector<1x128xf32> to vector<4x128xf32>
      %61 = arith.addf %58, %60 : vector<4x128xf32>
      %cst_36 = arith.constant 0.000000e+00 : f32
      %62 = vector.broadcast %cst_36 : f32 to vector<4x128xf32>
      %63 = arith.maximumf %61, %62 : vector<4x128xf32>
      %c0_37 = arith.constant 0 : index
      %c0_38 = arith.constant 0 : index
      %64 = vector.load %arg5[%c0_37, %c0_38] : memref<128x128xf32, #tpu.memory_space<vmem>>, vector<128x128xf32>
      %cst_39 = arith.constant dense<0.000000e+00> : vector<4x128xf32>
      %65 = tpu.matmul %63, %64, %cst_39 {dimension_numbers = #tpu.dot_dimension_numbers<[1], [0], [0], [1], [0, 0, 1, 1], [], []>} : vector<4x128xf32>, vector<128x128xf32>, vector<4x128xf32> -> vector<4x128xf32>
      %c0_40 = arith.constant 0 : index
      %c0_41 = arith.constant 0 : index
      %66 = vector.load %arg6[%c0_40, %c0_41] : memref<1x128xf32, #tpu.memory_space<vmem>>, vector<1x128xf32>
      %67 = vector.broadcast %66 : vector<1x128xf32> to vector<4x128xf32>
      %68 = arith.addf %65, %67 : vector<4x128xf32>
      %c0_42 = arith.constant 0 : index
      %c0_43 = arith.constant 0 : index
      %69 = vector.load %arg7[%c0_42, %c0_43] : memref<4x128xf32, #tpu.memory_space<vmem>>, vector<4x128xf32>
      tpu.vector_store %arg7[%c0_42, %c0_43], %68 {strides = array<i32>} : memref<4x128xf32, #tpu.memory_space<vmem>>, vector<4x128xf32>,
    } else {
    }
    return
  }
  func.func @transform_0(%arg0: i32) -> (i32, i32) {
    %c0_i32 = arith.constant 0 : i32
    %c0_i32_0 = arith.constant 0 : i32
    return %arg0, %c0_i32 : i32, i32
  }
  func.func @transform_1(%arg0: i32) -> (i32, i32) {
    %c0_i32 = arith.constant 0 : i32
    %c0_i32_0 = arith.constant 0 : i32
    return %arg0, %c0_i32 : i32, i32
  }
  func.func @transform_2(%arg0: i32) -> (i32, i32) {
    %c0_i32 = arith.constant 0 : i32
    %c0_i32_0 = arith.constant 0 : i32
    %c0_i32_1 = arith.constant 0 : i32
    return %c0_i32, %c0_i32_0 : i32, i32
  }
  func.func @transform_3(%arg0: i32) -> (i32, i32) {
    %c0_i32 = arith.constant 0 : i32
    %c0_i32_0 = arith.constant 0 : i32
    %c0_i32_1 = arith.constant 0 : i32
    return %c0_i32, %c0_i32_0 : i32, i32
  }
  func.func @transform_4(%arg0: i32) -> (i32, i32) {
    %c0_i32 = arith.constant 0 : i32
    %c0_i32_0 = arith.constant 0 : i32
    %c0_i32_1 = arith.constant 0 : i32
    return %c0_i32, %c0_i32_0 : i32, i32
  }
  func.func @transform_5(%arg0: i32) -> (i32, i32) {
    %c0_i32 = arith.constant 0 : i32
    %c0_i32_0 = arith.constant 0 : i32
    %c0_i32_1 = arith.constant 0 : i32
    return %c0_i32, %c0_i32_0 : i32, i32
  }
  func.func @transform_6(%arg0: i32) -> (i32, i32) {
    %c0_i32 = arith.constant 0 : i32
    %c0_i32_0 = arith.constant 0 : i32
    %c0_i32_1 = arith.constant 0 : i32
    return %c0_i32, %c0_i32_0 : i32, i32
  }
}

module attributes {stable_mosaic.version = 11 : i64} {
  func.func @_project_kernel(%arg0: i32, %arg1: memref<128x128xf32, #tpu.memory_space<vmem>>, %arg2: memref<128x128xbf16, #tpu.memory_space<vmem>>, %arg3: memref<128x128xf32, #tpu.memory_space<vmem>>, %arg4: memref<128x128xbf16, #tpu.memory_space<vmem>>, %arg5: memref<128x128xf32, #tpu.memory_space<vmem>>) attributes {dimension_semantics = [#tpu.dimension_semantics<parallel>], iteration_bounds = array<i64: 2>, scalar_prefetch = 0 : i64, scratch_operands = 0 : i64, tpu.core_type = #tpu.core_type<tc>, window_params = [{transform_indices = @transform_0, window_bounds = array<i64: 128, 128>}, {pipeline_mode = #tpu.pipeline_mode<synchronous>, transform_indices = @transform_1, window_bounds = array<i64: 128, 128>}, {pipeline_mode = #tpu.pipeline_mode<synchronous>, transform_indices = @transform_2, window_bounds = array<i64: 128, 128>}, {transform_indices = @transform_3, window_bounds = array<i64: 128, 128>}, {transform_indices = @transform_4, window_bounds = array<i64: 128, 128>}]} {
    %c0 = arith.constant 0 : index
    %c0_0 = arith.constant 0 : index
    %0 = vector.load %arg1[%c0, %c0_0] : memref<128x128xf32, #tpu.memory_space<vmem>>, vector<128x128xf32>
    %1 = arith.truncf %0 : vector<128x128xf32> to vector<128x128xbf16>
    %c0_1 = arith.constant 0 : index
    %c0_2 = arith.constant 0 : index
    %2 = vector.load %arg2[%c0_1, %c0_2] : memref<128x128xbf16, #tpu.memory_space<vmem>>, vector<128x128xbf16>
    %cst = arith.constant dense<0.000000e+00> : vector<128x128xf32>
    %3 = tpu.matmul %1, %2, %cst {dimension_numbers = #tpu.dot_dimension_numbers<[1], [0], [0], [1], [0, 0, 1, 1], [], []>} : vector<128x128xbf16>, vector<128x128xbf16>, vector<128x128xf32> -> vector<128x128xf32>
    %c0_3 = arith.constant 0 : index
    %c0_4 = arith.constant 0 : index
    %4 = vector.load %arg3[%c0_3, %c0_4] : memref<128x128xf32, #tpu.memory_space<vmem>>, vector<128x128xf32>
    %cst_5 = arith.constant dense<0.000000e+00> : vector<128x128xf32>
    %5 = tpu.matmul %3, %4, %cst_5 {dimension_numbers = #tpu.dot_dimension_numbers<[1], [0], [0], [1], [0, 0, 1, 1], [], []>} : vector<128x128xf32>, vector<128x128xf32>, vector<128x128xf32> -> vector<128x128xf32>
    %c0_6 = arith.constant 0 : index
    %c0_7 = arith.constant 0 : index
    %6 = vector.load %arg5[%c0_6, %c0_7] : memref<128x128xf32, #tpu.memory_space<vmem>>, vector<128x128xf32>
    tpu.vector_store %arg5[%c0_6, %c0_7], %5 {strides = array<i32>} : memref<128x128xf32, #tpu.memory_space<vmem>>, vector<128x128xf32>,
    %7 = arith.truncf %3 : vector<128x128xf32> to vector<128x128xbf16>
    %c0_8 = arith.constant 0 : index
    %c0_9 = arith.constant 0 : index
    %8 = vector.load %arg4[%c0_8, %c0_9] : memref<128x128xbf16, #tpu.memory_space<vmem>>, vector<128x128xbf16>
    tpu.vector_store %arg4[%c0_8, %c0_9], %7 {strides = array<i32>} : memref<128x128xbf16, #tpu.memory_space<vmem>>, vector<128x128xbf16>,
    return
  }
  func.func @transform_0(%arg0: i32) -> (i32, i32) {
    %c0_i32 = arith.constant 0 : i32
    %c0_i32_0 = arith.constant 0 : i32
    return %arg0, %c0_i32 : i32, i32
  }
  func.func @transform_1(%arg0: i32) -> (i32, i32) {
    %c0_i32 = arith.constant 0 : i32
    %c0_i32_0 = arith.constant 0 : i32
    %c0_i32_1 = arith.constant 0 : i32
    return %c0_i32, %c0_i32_0 : i32, i32
  }
  func.func @transform_2(%arg0: i32) -> (i32, i32) {
    %c0_i32 = arith.constant 0 : i32
    %c0_i32_0 = arith.constant 0 : i32
    %c0_i32_1 = arith.constant 0 : i32
    return %c0_i32, %c0_i32_0 : i32, i32
  }
  func.func @transform_3(%arg0: i32) -> (i32, i32) {
    %c0_i32 = arith.constant 0 : i32
    %c0_i32_0 = arith.constant 0 : i32
    return %arg0, %c0_i32 : i32, i32
  }
  func.func @transform_4(%arg0: i32) -> (i32, i32) {
    %c0_i32 = arith.constant 0 : i32
    %c0_i32_0 = arith.constant 0 : i32
    return %arg0, %c0_i32 : i32, i32
  }
}

module attributes {stable_mosaic.version = 11 : i64} {
  func.func @kernel(%arg0: i32, %arg1: memref<128x256xbf16, #tpu.memory_space<vmem>>, %arg2: memref<256x128xbf16, #tpu.memory_space<vmem>>, %arg3: memref<4x256xf32, #tpu.memory_space<vmem>>, %arg4: memref<128x128xf32, #tpu.memory_space<vmem>>, %arg5: memref<1x128xf32, #tpu.memory_space<vmem>>, %arg6: memref<128x128xf32, #tpu.memory_space<vmem>>) attributes {dimension_semantics = [#tpu.dimension_semantics<parallel>], iteration_bounds = array<i64: 2>, scalar_prefetch = 0 : i64, scratch_operands = 0 : i64, tpu.core_type = #tpu.core_type<tc>, window_params = [{transform_indices = @transform_0, window_bounds = array<i64: 128, 256>}, {pipeline_mode = #tpu.pipeline_mode<synchronous>, transform_indices = @transform_1, window_bounds = array<i64: 256, 128>}, {pipeline_mode = #tpu.pipeline_mode<synchronous>, transform_indices = @transform_2, window_bounds = array<i64: 4, 256>}, {transform_indices = @transform_3, window_bounds = array<i64: 128, 128>}, {pipeline_mode = #tpu.pipeline_mode<synchronous>, transform_indices = @transform_4, window_bounds = array<i64: 1, 128>}, {transform_indices = @transform_5, window_bounds = array<i64: 128, 128>}]} {
    %c0 = arith.constant 0 : index
    %c0_0 = arith.constant 0 : index
    %0 = vector.load %arg1[%c0, %c0_0] : memref<128x256xbf16, #tpu.memory_space<vmem>>, vector<128x256xbf16>
    %1 = arith.extf %0 : vector<128x256xbf16> to vector<128x256xf32>
    %c0_1 = arith.constant 0 : index
    %c0_2 = arith.constant 0 : index
    %2 = vector.load %arg2[%c0_1, %c0_2] : memref<256x128xbf16, #tpu.memory_space<vmem>>, vector<256x128xbf16>
    %c0_3 = arith.constant 0 : index
    %c0_4 = arith.constant 0 : index
    %3 = vector.load %arg3[%c0_3, %c0_4] : memref<4x256xf32, #tpu.memory_space<vmem>>, vector<4x256xf32>
    %c0_5 = arith.constant 0 : index
    %c0_6 = arith.constant 0 : index
    %4 = vector.load %arg4[%c0_5, %c0_6] : memref<128x128xf32, #tpu.memory_space<vmem>>, vector<128x128xf32>
    %c0_7 = arith.constant 0 : index
    %c0_8 = arith.constant 0 : index
    %5 = vector.load %arg5[%c0_7, %c0_8] : memref<1x128xf32, #tpu.memory_space<vmem>>, vector<1x128xf32>
    %6 = vector.extract_strided_slice %4 {offsets = [0, 4], sizes = [128, 1], strides = [1, 1]} : vector<128x128xf32> to vector<128x1xf32>
    %7 = vector.extract_strided_slice %3 {offsets = [0, 0], sizes = [1, 256], strides = [1, 1]} : vector<4x256xf32> to vector<1x256xf32>
    %8 = vector.broadcast %6 : vector<128x1xf32> to vector<128x256xf32>
    %9 = vector.broadcast %7 : vector<1x256xf32> to vector<128x256xf32>
    %10 = arith.addf %8, %9 : vector<128x256xf32>
    %cst = arith.constant 0.000000e+00 : f32
    %11 = vector.broadcast %cst : f32 to vector<128x256xf32>
    %12 = arith.cmpf oge, %10, %11 : vector<128x256xf32>
    %cst_9 = arith.constant 2.000000e-01 : f32
    %13 = vector.broadcast %cst_9 : f32 to vector<128x256xf32>
    %14 = arith.mulf %13, %10 : vector<128x256xf32>
    %15 = arith.select %12, %10, %14 : vector<128x256xi1>, vector<128x256xf32>
    %16 = arith.addf %15, %1 : vector<128x256xf32>
    %cst_10 = arith.constant dense<0xFF800000> : vector<128xf32>
    %17 = vector.multi_reduction <maximumf>, %16, %cst_10 [1] : vector<128x256xf32> to vector<128xf32>
    %18 = vector.shape_cast %17 : vector<128xf32> to vector<128x1xf32>
    %19 = vector.broadcast %18 : vector<128x1xf32> to vector<128x256xf32>
    %20 = arith.subf %16, %19 : vector<128x256xf32>
    %21 = math.exp %20 : vector<128x256xf32>
    %cst_11 = arith.constant dense<0.000000e+00> : vector<128xf32>
    %22 = vector.multi_reduction <add>, %21, %cst_11 [1] : vector<128x256xf32> to vector<128xf32>
    %23 = vector.shape_cast %22 : vector<128xf32> to vector<128x1xf32>
    %24 = tpu.reciprocal %23 {approx = true} : vector<128x1xf32> -> vector<128x1xf32>
    %25 = vector.broadcast %24 : vector<128x1xf32> to vector<128x256xf32>
    %26 = arith.mulf %21, %25 : vector<128x256xf32>
    %27 = arith.truncf %26 : vector<128x256xf32> to vector<128x256xbf16>
    %28 = vector.extract_strided_slice %2 {offsets = [0, 0], sizes = [256, 16], strides = [1, 1]} : vector<256x128xbf16> to vector<256x16xbf16>
    %cst_12 = arith.constant dense<0.000000e+00> : vector<128x16xf32>
    %29 = tpu.matmul %27, %28, %cst_12 {dimension_numbers = #tpu.dot_dimension_numbers<[1], [0], [0], [1], [0, 0, 1, 1], [], []>} : vector<128x256xbf16>, vector<256x16xbf16>, vector<128x16xf32> -> vector<128x16xf32>
    %30 = vector.extract_strided_slice %4 {offsets = [0, 5], sizes = [128, 1], strides = [1, 1]} : vector<128x128xf32> to vector<128x1xf32>
    %31 = vector.extract_strided_slice %3 {offsets = [1, 0], sizes = [1, 256], strides = [1, 1]} : vector<4x256xf32> to vector<1x256xf32>
    %32 = vector.broadcast %30 : vector<128x1xf32> to vector<128x256xf32>
    %33 = vector.broadcast %31 : vector<1x256xf32> to vector<128x256xf32>
    %34 = arith.addf %32, %33 : vector<128x256xf32>
    %cst_13 = arith.constant 0.000000e+00 : f32
    %35 = vector.broadcast %cst_13 : f32 to vector<128x256xf32>
    %36 = arith.cmpf oge, %34, %35 : vector<128x256xf32>
    %cst_14 = arith.constant 2.000000e-01 : f32
    %37 = vector.broadcast %cst_14 : f32 to vector<128x256xf32>
    %38 = arith.mulf %37, %34 : vector<128x256xf32>
    %39 = arith.select %36, %34, %38 : vector<128x256xi1>, vector<128x256xf32>
    %40 = arith.addf %39, %1 : vector<128x256xf32>
    %cst_15 = arith.constant dense<0xFF800000> : vector<128xf32>
    %41 = vector.multi_reduction <maximumf>, %40, %cst_15 [1] : vector<128x256xf32> to vector<128xf32>
    %42 = vector.shape_cast %41 : vector<128xf32> to vector<128x1xf32>
    %43 = vector.broadcast %42 : vector<128x1xf32> to vector<128x256xf32>
    %44 = arith.subf %40, %43 : vector<128x256xf32>
    %45 = math.exp %44 : vector<128x256xf32>
    %cst_16 = arith.constant dense<0.000000e+00> : vector<128xf32>
    %46 = vector.multi_reduction <add>, %45, %cst_16 [1] : vector<128x256xf32> to vector<128xf32>
    %47 = vector.shape_cast %46 : vector<128xf32> to vector<128x1xf32>
    %48 = tpu.reciprocal %47 {approx = true} : vector<128x1xf32> -> vector<128x1xf32>
    %49 = vector.broadcast %48 : vector<128x1xf32> to vector<128x256xf32>
    %50 = arith.mulf %45, %49 : vector<128x256xf32>
    %51 = arith.truncf %50 : vector<128x256xf32> to vector<128x256xbf16>
    %52 = vector.extract_strided_slice %2 {offsets = [0, 16], sizes = [256, 16], strides = [1, 1]} : vector<256x128xbf16> to vector<256x16xbf16>
    %cst_17 = arith.constant dense<0.000000e+00> : vector<128x16xf32>
    %53 = tpu.matmul %51, %52, %cst_17 {dimension_numbers = #tpu.dot_dimension_numbers<[1], [0], [0], [1], [0, 0, 1, 1], [], []>} : vector<128x256xbf16>, vector<256x16xbf16>, vector<128x16xf32> -> vector<128x16xf32>
    %54 = vector.extract_strided_slice %4 {offsets = [0, 6], sizes = [128, 1], strides = [1, 1]} : vector<128x128xf32> to vector<128x1xf32>
    %55 = vector.extract_strided_slice %3 {offsets = [2, 0], sizes = [1, 256], strides = [1, 1]} : vector<4x256xf32> to vector<1x256xf32>
    %56 = vector.broadcast %54 : vector<128x1xf32> to vector<128x256xf32>
    %57 = vector.broadcast %55 : vector<1x256xf32> to vector<128x256xf32>
    %58 = arith.addf %56, %57 : vector<128x256xf32>
    %cst_18 = arith.constant 0.000000e+00 : f32
    %59 = vector.broadcast %cst_18 : f32 to vector<128x256xf32>
    %60 = arith.cmpf oge, %58, %59 : vector<128x256xf32>
    %cst_19 = arith.constant 2.000000e-01 : f32
    %61 = vector.broadcast %cst_19 : f32 to vector<128x256xf32>
    %62 = arith.mulf %61, %58 : vector<128x256xf32>
    %63 = arith.select %60, %58, %62 : vector<128x256xi1>, vector<128x256xf32>
    %64 = arith.addf %63, %1 : vector<128x256xf32>
    %cst_20 = arith.constant dense<0xFF800000> : vector<128xf32>
    %65 = vector.multi_reduction <maximumf>, %64, %cst_20 [1] : vector<128x256xf32> to vector<128xf32>
    %66 = vector.shape_cast %65 : vector<128xf32> to vector<128x1xf32>
    %67 = vector.broadcast %66 : vector<128x1xf32> to vector<128x256xf32>
    %68 = arith.subf %64, %67 : vector<128x256xf32>
    %69 = math.exp %68 : vector<128x256xf32>
    %cst_21 = arith.constant dense<0.000000e+00> : vector<128xf32>
    %70 = vector.multi_reduction <add>, %69, %cst_21 [1] : vector<128x256xf32> to vector<128xf32>
    %71 = vector.shape_cast %70 : vector<128xf32> to vector<128x1xf32>
    %72 = tpu.reciprocal %71 {approx = true} : vector<128x1xf32> -> vector<128x1xf32>
    %73 = vector.broadcast %72 : vector<128x1xf32> to vector<128x256xf32>
    %74 = arith.mulf %69, %73 : vector<128x256xf32>
    %75 = arith.truncf %74 : vector<128x256xf32> to vector<128x256xbf16>
    %76 = vector.extract_strided_slice %2 {offsets = [0, 32], sizes = [256, 16], strides = [1, 1]} : vector<256x128xbf16> to vector<256x16xbf16>
    %cst_22 = arith.constant dense<0.000000e+00> : vector<128x16xf32>
    %77 = tpu.matmul %75, %76, %cst_22 {dimension_numbers = #tpu.dot_dimension_numbers<[1], [0], [0], [1], [0, 0, 1, 1], [], []>} : vector<128x256xbf16>, vector<256x16xbf16>, vector<128x16xf32> -> vector<128x16xf32>
    %78 = vector.extract_strided_slice %4 {offsets = [0, 7], sizes = [128, 1], strides = [1, 1]} : vector<128x128xf32> to vector<128x1xf32>
    %79 = vector.extract_strided_slice %3 {offsets = [3, 0], sizes = [1, 256], strides = [1, 1]} : vector<4x256xf32> to vector<1x256xf32>
    %80 = vector.broadcast %78 : vector<128x1xf32> to vector<128x256xf32>
    %81 = vector.broadcast %79 : vector<1x256xf32> to vector<128x256xf32>
    %82 = arith.addf %80, %81 : vector<128x256xf32>
    %cst_23 = arith.constant 0.000000e+00 : f32
    %83 = vector.broadcast %cst_23 : f32 to vector<128x256xf32>
    %84 = arith.cmpf oge, %82, %83 : vector<128x256xf32>
    %cst_24 = arith.constant 2.000000e-01 : f32
    %85 = vector.broadcast %cst_24 : f32 to vector<128x256xf32>
    %86 = arith.mulf %85, %82 : vector<128x256xf32>
    %87 = arith.select %84, %82, %86 : vector<128x256xi1>, vector<128x256xf32>
    %88 = arith.addf %87, %1 : vector<128x256xf32>
    %cst_25 = arith.constant dense<0xFF800000> : vector<128xf32>
    %89 = vector.multi_reduction <maximumf>, %88, %cst_25 [1] : vector<128x256xf32> to vector<128xf32>
    %90 = vector.shape_cast %89 : vector<128xf32> to vector<128x1xf32>
    %91 = vector.broadcast %90 : vector<128x1xf32> to vector<128x256xf32>
    %92 = arith.subf %88, %91 : vector<128x256xf32>
    %93 = math.exp %92 : vector<128x256xf32>
    %cst_26 = arith.constant dense<0.000000e+00> : vector<128xf32>
    %94 = vector.multi_reduction <add>, %93, %cst_26 [1] : vector<128x256xf32> to vector<128xf32>
    %95 = vector.shape_cast %94 : vector<128xf32> to vector<128x1xf32>
    %96 = tpu.reciprocal %95 {approx = true} : vector<128x1xf32> -> vector<128x1xf32>
    %97 = vector.broadcast %96 : vector<128x1xf32> to vector<128x256xf32>
    %98 = arith.mulf %93, %97 : vector<128x256xf32>
    %99 = arith.truncf %98 : vector<128x256xf32> to vector<128x256xbf16>
    %100 = vector.extract_strided_slice %2 {offsets = [0, 48], sizes = [256, 16], strides = [1, 1]} : vector<256x128xbf16> to vector<256x16xbf16>
    %cst_27 = arith.constant dense<0.000000e+00> : vector<128x16xf32>
    %101 = tpu.matmul %99, %100, %cst_27 {dimension_numbers = #tpu.dot_dimension_numbers<[1], [0], [0], [1], [0, 0, 1, 1], [], []>} : vector<128x256xbf16>, vector<256x16xbf16>, vector<128x16xf32> -> vector<128x16xf32>
    %cst_28 = arith.constant 0.000000e+00 : f32
    %102 = vector.broadcast %cst_28 : f32 to vector<128x64xf32>
    %103 = tpu.concatenate %29, %53, %77, %101, %102 in 1 : vector<128x16xf32>, vector<128x16xf32>, vector<128x16xf32>, vector<128x16xf32>, vector<128x64xf32> -> vector<128x128xf32>
    %104 = vector.broadcast %5 : vector<1x128xf32> to vector<128x128xf32>
    %105 = arith.addf %103, %104 : vector<128x128xf32>
    %cst_29 = arith.constant 0.000000e+00 : f32
    %106 = vector.broadcast %cst_29 : f32 to vector<128x128xf32>
    %107 = arith.maximumf %105, %106 : vector<128x128xf32>
    %c0_30 = arith.constant 0 : index
    %c0_31 = arith.constant 0 : index
    %108 = vector.load %arg6[%c0_30, %c0_31] : memref<128x128xf32, #tpu.memory_space<vmem>>, vector<128x128xf32>
    tpu.vector_store %arg6[%c0_30, %c0_31], %107 {strides = array<i32>} : memref<128x128xf32, #tpu.memory_space<vmem>>, vector<128x128xf32>,
    return
  }
  func.func @transform_0(%arg0: i32) -> (i32, i32) {
    %c0_i32 = arith.constant 0 : i32
    %c0_i32_0 = arith.constant 0 : i32
    return %arg0, %c0_i32 : i32, i32
  }
  func.func @transform_1(%arg0: i32) -> (i32, i32) {
    %c0_i32 = arith.constant 0 : i32
    %c0_i32_0 = arith.constant 0 : i32
    %c0_i32_1 = arith.constant 0 : i32
    return %c0_i32, %c0_i32_0 : i32, i32
  }
  func.func @transform_2(%arg0: i32) -> (i32, i32) {
    %c0_i32 = arith.constant 0 : i32
    %c0_i32_0 = arith.constant 0 : i32
    %c0_i32_1 = arith.constant 0 : i32
    return %c0_i32, %c0_i32_0 : i32, i32
  }
  func.func @transform_3(%arg0: i32) -> (i32, i32) {
    %c0_i32 = arith.constant 0 : i32
    %c0_i32_0 = arith.constant 0 : i32
    return %arg0, %c0_i32 : i32, i32
  }
  func.func @transform_4(%arg0: i32) -> (i32, i32) {
    %c0_i32 = arith.constant 0 : i32
    %c0_i32_0 = arith.constant 0 : i32
    %c0_i32_1 = arith.constant 0 : i32
    return %c0_i32, %c0_i32_0 : i32, i32
  }
  func.func @transform_5(%arg0: i32) -> (i32, i32) {
    %c0_i32 = arith.constant 0 : i32
    %c0_i32_0 = arith.constant 0 : i32
    return %arg0, %c0_i32 : i32, i32
  }
}

</mosaic_0001>

<llo_original>
// kernel: ti_gat_forward.15
$region0: #{ti_gat_forward.15}
  #allocation0 [shape = 'u32[]', space=smem, size = 0x4, offset = 0x4, fixed_abs, tag = 'smem constant byte address 0x4 - core index']
  #allocation1 [shape = 'u32[144,128]{1,0:T(1,128)}', space=vmem, size = 0x12000, scoped, tag = 'internal scratch']
  %s0 = inlined_call_operand.vmem [shape: f32[256,128], index: 0, kind: input, shape index: {}]
  %s1 = inlined_call_operand.vmem [shape: bf16[128,128], index: 1, kind: input, shape index: {}]
  %s2 = inlined_call_operand.vmem [shape: f32[128,128], index: 2, kind: input, shape index: {}]
  %s3 = inlined_call_operand.vmem [shape: bf16[256,128], index: 3, kind: output, shape index: {0}]
  %s4 = inlined_call_operand.vmem [shape: f32[256,128], index: 4, kind: output, shape index: {1}]
  %5 = xla_tuple %s3, %s4
  %s6 = sld [smem:[#allocation0]]
  $region53: #{ti_gat_forward.15} parent=0
    _
  %s8 = ssub.s32 1, %s6
  %s9 = scalar_select 0, %s8, %s6
  loop: start=0, step=1, limit=4
  $region2: #{ti_gat_forward.15} parent=0 // loop_pre_header
    _
  $region3: #{ti_gat_forward.15} parent=0 // loop_header
    %s11 = sphi 0, %s15
    %p12 = scmp.ge.s32.totalorder %s11, 4
    %s21 = sphi 0, %s23
    %s24 = sphi 0, %s21
    %s25 = sphi 0, %s24
    %s41 = sphi 0, %s25
    %s45 = sphi 0, %s45
    %s47 = sphi 0, %s45
    %s48 = sphi 0, %s47
    %s62 = sphi 0, %s48
    %s66 = sphi 0, %s66
    %s68 = sphi 0, %s66
    %s69 = sphi 0, %s68
    %s83 = sphi 0, %s69
    %s89 = sphi 0, %s91
    %s92 = sphi 0, %s89
    %s93 = sphi 0, %s92
    %s109 = sphi 0, %s93
    %s115 = sphi 0, %s117
    %s118 = sphi 0, %s115
    %s119 = sphi 0, %s118
    %s135 = sphi 0, %s119
  $region4: #{ti_gat_forward.15} parent=0 // loop_header_branch
    %14 = sbr.rel (%p12) target = $region8
  $region5: #{ti_gat_forward.15} parent=0 // loop_body
    %s16 = ssub.s32 %s11, 1
    %s17 = ssub.s32 %s11, 2
    %s18 = sadd.s32 %s11, 1
    %s19 = ssub.s32 %s11, %s18
    %p20 = scmp.eq.s32.totalorder %s19, 0
    %s22 = sadd.s32 %s21, 1
    %s23 = scalar_select %p20, %s21, %s22
    %p26 = pneg %p20
    %p27 = scmp.eq.s32.totalorder %s11, 1
    %p28 = por %p26, %p27
    %p29 = scmp.ne.s32.totalorder %s21, %s24
    %p30 = scmp.eq.s32.totalorder %s11, 0
    %p31 = por %p29, %p30
    %p32 = scmp.ne.s32.totalorder %s21, %s24
    %p33 = scmp.eq.s32.totalorder %s16, 1
    %p34 = por %p32, %p33
    %p35 = scmp.ne.s32.totalorder %s24, %s25
    %p36 = scmp.eq.s32.totalorder %s16, 0
    %p37 = por %p35, %p36
    %p38 = scmp.ne.s32.totalorder %s24, %s25
    %p39 = scmp.eq.s32.totalorder %s17, 1
    %p40 = por %p38, %p39
    %p42 = scmp.ne.s32.totalorder %s25, %s41
    %p43 = scmp.eq.s32.totalorder %s17, 0
    %p44 = por %p42, %p43
    %s46 = sadd.s32 %s45, 1
    %p49 = scmp.eq.s32.totalorder %s11, 1
    %p50 = scmp.ne.s32.totalorder %s45, %s47
    %p51 = scmp.eq.s32.totalorder %s11, 0
    %p52 = por %p50, %p51
    %p53 = scmp.ne.s32.totalorder %s45, %s47
    %p54 = scmp.eq.s32.totalorder %s16, 1
    %p55 = por %p53, %p54
    %p56 = scmp.ne.s32.totalorder %s47, %s48
    %p57 = scmp.eq.s32.totalorder %s16, 0
    %p58 = por %p56, %p57
    %p59 = scmp.ne.s32.totalorder %s47, %s48
    %p60 = scmp.eq.s32.totalorder %s17, 1
    %p61 = por %p59, %p60
    %p63 = scmp.ne.s32.totalorder %s48, %s62
    %p64 = scmp.eq.s32.totalorder %s17, 0
    %p65 = por %p63, %p64
    %s67 = sadd.s32 %s66, 1
    %p70 = scmp.eq.s32.totalorder %s11, 1
    %p71 = scmp.ne.s32.totalorder %s66, %s68
    %p72 = scmp.eq.s32.totalorder %s11, 0
    %p73 = por %p71, %p72
    %p74 = scmp.ne.s32.totalorder %s66, %s68
    %p75 = scmp.eq.s32.totalorder %s16, 1
    %p76 = por %p74, %p75
    %p77 = scmp.ne.s32.totalorder %s68, %s69
    %p78 = scmp.eq.s32.totalorder %s16, 0
    %p79 = por %p77, %p78
    %p80 = scmp.ne.s32.totalorder %s68, %s69
    %p81 = scmp.eq.s32.totalorder %s17, 1
    %p82 = por %p80, %p81
    %p84 = scmp.ne.s32.totalorder %s69, %s83
    %p85 = scmp.eq.s32.totalorder %s17, 0
    %p86 = por %p84, %p85
    %s87 = ssub.s32 %s11, %s18
    %p88 = scmp.eq.s32.totalorder %s87, 0
    %s90 = sadd.s32 %s89, 1
    %s91 = scalar_select %p88, %s89, %s90
    %p94 = pneg %p88
    %p95 = scmp.eq.s32.totalorder %s11, 1
    %p96 = por %p94, %p95
    %p97 = scmp.ne.s32.totalorder %s89, %s92
    %p98 = scmp.eq.s32.totalorder %s11, 0
    %p99 = por %p97, %p98
    %p100 = scmp.ne.s32.totalorder %s89, %s92
    %p101 = scmp.eq.s32.totalorder %s16, 1
    %p102 = por %p100, %p101
    %p103 = scmp.ne.s32.totalorder %s92, %s93
    %p104 = scmp.eq.s32.totalorder %s16, 0
    %p105 = por %p103, %p104
    %p106 = scmp.ne.s32.totalorder %s92, %s93
    %p107 = scmp.eq.s32.totalorder %s17, 1
    %p108 = por %p106, %p107
    %p110 = scmp.ne.s32.totalorder %s93, %s109
    %p111 = scmp.eq.s32.totalorder %s17, 0
    %p112 = por %p110, %p111
    %s113 = ssub.s32 %s11, %s18
    %p114 = scmp.eq.s32.totalorder %s113, 0
    %s116 = sadd.s32 %s115, 1
    %s117 = scalar_select %p114, %s115, %s116
    %p120 = pneg %p114
    %p121 = scmp.eq.s32.totalorder %s11, 1
    %p122 = por %p120, %p121
    %p123 = scmp.ne.s32.totalorder %s115, %s118
    %p124 = scmp.eq.s32.totalorder %s11, 0
    %p125 = por %p123, %p124
    %p126 = scmp.ne.s32.totalorder %s115, %s118
    %p127 = scmp.eq.s32.totalorder %s16, 1
    %p128 = por %p126, %p127
    %p129 = scmp.ne.s32.totalorder %s118, %s119
    %p130 = scmp.eq.s32.totalorder %s16, 0
    %p131 = por %p129, %p130
    %p132 = scmp.ne.s32.totalorder %s118, %s119
    %p133 = scmp.eq.s32.totalorder %s17, 1
    %p134 = por %p132, %p133
    %p136 = scmp.ne.s32.totalorder %s119, %s135
    %p137 = scmp.eq.s32.totalorder %s17, 0
    %p138 = por %p136, %p137
    %p139 = scmp.le.s32.totalorder 1, %s11
    %p140 = scmp.lt.s32.totalorder %s11, 3
    %p141 = pnand %p139, %p140
    %p142 = pneg %p141
    // Predicated region
    $region9: #{ti_gat_forward.15} parent=5 // pred_check
      _
    $region10: #{ti_gat_forward.15} parent=5 // pred_check_branch
      %144 = sbr.rel (%p141) target = $region12
    $region11: #{ti_gat_forward.15} parent=5 // pred_region
      %s145 = ssub.s32 %s11, 1
      // Predicated region
      $region13: #{ti_gat_forward.15} parent=11 // pred_check
        %p146 = pneg %p58
      $region14: #{ti_gat_forward.15} parent=11 // pred_check_branch
        %148 = sbr.rel (%p146) target = $region16
      $region15: #{ti_gat_forward.15} parent=11 // pred_region
        _
      $region16: #{ti_gat_forward.15} parent=11 // pred_fallthru
        _
      // Predicated region
      $region17: #{ti_gat_forward.15} parent=11 // pred_check
        %p149 = pneg %p79
      $region18: #{ti_gat_forward.15} parent=11 // pred_check_branch
        %151 = sbr.rel (%p149) target = $region20
      $region19: #{ti_gat_forward.15} parent=11 // pred_region
        _
      $region20: #{ti_gat_forward.15} parent=11 // pred_fallthru
        _
    $region12: #{ti_gat_forward.15} parent=5 // pred_fallthru
      _
    %p152 = scmp.lt.s32.totalorder %s11, 2
    // Predicated region
    $region21: #{ti_gat_forward.15} parent=5 // pred_check
      %p153 = pneg %p152
    $region22: #{ti_gat_forward.15} parent=5 // pred_check_branch
      %155 = sbr.rel (%p153) target = $region24
    $region23: #{ti_gat_forward.15} parent=5 // pred_region
      // Predicated region
      $region25: #{ti_gat_forward.15} parent=23 // pred_check
        %p156 = pneg %p31
      $region26: #{ti_gat_forward.15} parent=23 // pred_check_branch
        %158 = sbr.rel (%p156) target = $region28
      $region27: #{ti_gat_forward.15} parent=23 // pred_region
        %s159 = smul.u32 16, %s11
        %p160 = scmp.lt.s32.totalorder %s159, 31
        %s161 = scalar_select %p160, %s159, 31
        %s162 = smul.addr %s161, 8
        %s163 = scalar_lea.vmem %s0, %s162
        %s164 = smul.u32 16, %s11
      $region28: #{ti_gat_forward.15} parent=23 // pred_fallthru
        _
    $region24: #{ti_gat_forward.15} parent=5 // pred_fallthru
      _
    %p165 = scmp.le.s32.totalorder 1, %s11
    %p166 = scmp.lt.s32.totalorder %s11, 3
    %p167 = pnand %p165, %p166
    %p168 = pneg %p167
    // Predicated region
    $region29: #{ti_gat_forward.15} parent=5 // pred_check
      _
    $region30: #{ti_gat_forward.15} parent=5 // pred_check_branch
      %170 = sbr.rel (%p167) target = $region32
    $region31: #{ti_gat_forward.15} parent=5 // pred_region
      %s171 = ssub.s32 %s11, 1
      %s172 = smul.u32 16, %s16
      %p173 = scmp.lt.s32.totalorder %s172, 31
      %s174 = scalar_select %p173, %s172, 31
      %s175 = smul.addr %s174, 8
      %s176 = scalar_lea.vmem %s0, %s175
      %p177 = pneg %p37
      %p178 = pneg %p34
      %p179 = pneg %p58
      %p180 = pneg %p55
      %p181 = pneg %p79
      %p182 = pneg %p76
      %p183 = pneg %p105
      %p184 = pneg %p102
      %s185 = smul.u32 16, %s16
      %p186 = scmp.lt.s32.totalorder %s185, 31
      %s187 = scalar_select %p186, %s185, 31
      %s188 = smul.addr %s187, 4
      %s189 = scalar_lea.vmem %s3, %s188
      %p190 = pneg %p131
      %p191 = pneg %p128
      %s192 = smul.u32 16, %s16
      %p193 = scmp.lt.s32.totalorder %s192, 31
      %s194 = scalar_select %p193, %s192, 31
      %s195 = smul.addr %s194, 8
      %s196 = scalar_lea.vmem %s4, %s195
      %s197 = smul.u32 16, %s16
      %p198 = scmp.lt.s32.totalorder %s197, 31
      %s199 = scalar_select %p198, %s197, 31
      %s200 = smul.addr %s199, 8
      %s201 = scalar_lea.vmem %s0, %s200
      %s202 = smul.u32 16, %s16
      %s203 = smul.u32 16, %s16
      %p204 = scmp.lt.s32.totalorder %s203, 31
      %s205 = scalar_select %p204, %s203, 31
      %s206 = smul.addr %s205, 4
      %s207 = scalar_lea.vmem %s3, %s206
      %s208 = smul.u32 16, %s16
      %s209 = smul.u32 16, %s16
      %p210 = scmp.lt.s32.totalorder %s209, 31
      %s211 = scalar_select %p210, %s209, 31
      %s212 = smul.addr %s211, 8
      %s213 = scalar_lea.vmem %s4, %s212
      %s214 = smul.u32 16, %s16
      %v216 = vld [vmem:[%s201] sm:$0xff]
      %v217 = vld [vmem:[%s201 + $0x8] sm:$0xff]
      %v218 = vld [vmem:[%s201 + $0x10] sm:$0xff]
      %v219 = vld [vmem:[%s201 + $0x18] sm:$0xff]
      %v220 = vld [vmem:[%s201 + $0x20] sm:$0xff]
      %v221 = vld [vmem:[%s201 + $0x28] sm:$0xff]
      %v222 = vld [vmem:[%s201 + $0x30] sm:$0xff]
      %v223 = vld [vmem:[%s201 + $0x38] sm:$0xff]
      %v224 = vld [vmem:[%s201 + $0x40] sm:$0xff]
      %v225 = vld [vmem:[%s201 + $0x48] sm:$0xff]
      %v226 = vld [vmem:[%s201 + $0x50] sm:$0xff]
      %v227 = vld [vmem:[%s201 + $0x58] sm:$0xff]
      %v228 = vld [vmem:[%s201 + $0x60] sm:$0xff]
      %v229 = vld [vmem:[%s201 + $0x68] sm:$0xff]
      %v230 = vld [vmem:[%s201 + $0x70] sm:$0xff]
      %v231 = vld [vmem:[%s201 + $0x78] sm:$0xff]
      %v232 = vpack.c.bf16 %v217, %v216
      %v233 = vpack.c.bf16 %v219, %v218
      %v234 = vpack.c.bf16 %v221, %v220
      %v235 = vpack.c.bf16 %v223, %v222
      %v236 = vpack.c.bf16 %v225, %v224
      %v237 = vpack.c.bf16 %v227, %v226
      %v238 = vpack.c.bf16 %v229, %v228
      %v239 = vpack.c.bf16 %v231, %v230
      %v240 = vld [vmem:[%s1] sm:$0xf]
      %v241 = vld [vmem:[%s1 + $0x4] sm:$0xf]
      %v242 = vld [vmem:[%s1 + $0x8] sm:$0xf]
      %v243 = vld [vmem:[%s1 + $0xc] sm:$0xf]
      %v244 = vld [vmem:[%s1 + $0x10] sm:$0xf]
      %v245 = vld [vmem:[%s1 + $0x14] sm:$0xf]
      %v246 = vld [vmem:[%s1 + $0x18] sm:$0xf]
      %v247 = vld [vmem:[%s1 + $0x1c] sm:$0xf]
      %v248 = vld [vmem:[%s1 + $0x20] sm:$0xf]
      %v249 = vld [vmem:[%s1 + $0x24] sm:$0xf]
      %v250 = vld [vmem:[%s1 + $0x28] sm:$0xf]
      %v251 = vld [vmem:[%s1 + $0x2c] sm:$0xf]
      %v252 = vld [vmem:[%s1 + $0x30] sm:$0xf]
      %v253 = vld [vmem:[%s1 + $0x34] sm:$0xf]
      %v254 = vld [vmem:[%s1 + $0x38] sm:$0xf]
      %v255 = vld [vmem:[%s1 + $0x3c] sm:$0xf]
      %v272 = vunpack.c.l.b16 %v240
      %v273 = vunpack.c.l.b16 %v241
      %v274 = vunpack.c.l.b16 %v242
      %v275 = vunpack.c.l.b16 %v243
      %v276 = vunpack.c.l.b16 %v244
      %v277 = vunpack.c.l.b16 %v245
      %v278 = vunpack.c.l.b16 %v246
      %v279 = vunpack.c.l.b16 %v247
      %v280 = vunpack.c.l.b16 %v248
      %v281 = vunpack.c.l.b16 %v249
      %v282 = vunpack.c.l.b16 %v250
      %v283 = vunpack.c.l.b16 %v251
      %v284 = vunpack.c.l.b16 %v252
      %v285 = vunpack.c.l.b16 %v253
      %v286 = vunpack.c.l.b16 %v254
      %v287 = vunpack.c.l.b16 %v255
      %v288 = vpack.c.b16 %v273, %v272
      %v289 = vpack.c.b16 %v275, %v274
      %v290 = vpack.c.b16 %v277, %v276
      %v291 = vpack.c.b16 %v279, %v278
      %v292 = vpack.c.b16 %v281, %v280
      %v293 = vpack.c.b16 %v283, %v282
      %v294 = vpack.c.b16 %v285, %v284
      %v295 = vpack.c.b16 %v287, %v286
      %304 = vmatprep.subr.bf16.mxu0 0
      %305 = vmatpush1.bf16.msra.mxu0 %v288
      %306 = vmatprep.subr.bf16.mxu0 0
      %307 = vmatpush1.bf16.msra.mxu0 %v289
      %308 = vmatprep.subr.bf16.mxu0 0
      %309 = vmatpush1.bf16.msra.mxu0 %v290
      %310 = vmatprep.subr.bf16.mxu0 0
      %311 = vmatpush1.bf16.msra.mxu0 %v291
      %312 = vmatprep.subr.bf16.mxu0 0
      %313 = vmatpush1.bf16.msra.mxu0 %v292
      %314 = vmatprep.subr.bf16.mxu0 0
      %315 = vmatpush1.bf16.msra.mxu0 %v293
      %316 = vmatprep.subr.bf16.mxu0 0
      %317 = vmatpush1.bf16.msra.mxu0 %v294
      %318 = vmatprep.subr.bf16.mxu0 0
      %319 = vmatpush1.bf16.msra.mxu0 %v295
      %320 = vmatprep.subr.bf16.mxu0 0
      %321 = vmatpush1.bf16.msra.mxu0 0
      %322 = vmatprep.subr.bf16.mxu0 0
      %323 = vmatpush1.bf16.msra.mxu0 0
      %324 = vmatprep.subr.bf16.mxu0 0
      %325 = vmatpush1.bf16.msra.mxu0 0
      %326 = vmatprep.subr.bf16.mxu0 0
      %327 = vmatpush1.bf16.msra.mxu0 0
      %328 = vmatprep.subr.bf16.mxu0 0
      %329 = vmatpush1.bf16.msra.mxu0 0
      %330 = vmatprep.subr.bf16.mxu0 0
      %331 = vmatpush1.bf16.msra.mxu0 0
      %332 = vmatprep.subr.bf16.mxu0 0
      %333 = vmatpush1.bf16.msra.mxu0 0
      %334 = vmatprep.subr.bf16.mxu0 0
      %335 = vmatpush1.bf16.msra.mxu0 0
      %336 = vmatprep.mubr.bf16.mxu0 0
      %337 = vmatmul.mubr.bf16.gmra.mrb[0].mxu0 %v232
      %v338 = vpop.f32.mrb[0].mxu0
      %v339 = vadd.f32 0.0, %v338
      %v340 = vpop.f32.mrb[0].mxu0
      %v341 = vpop.f32.mrb[0].mxu0
      %v342 = vadd.f32 0.0, %v341
      %v343 = vpop.f32.mrb[0].mxu0
      %344 = vmatprep.mubr.bf16.mxu0 0
      %345 = vmatmul.mubr.bf16.gmra.mrb[0].mxu0 %v233
      %v346 = vpop.f32.mrb[0].mxu0
      %v347 = vadd.f32 0.0, %v346
      %v348 = vpop.f32.mrb[0].mxu0
      %v349 = vpop.f32.mrb[0].mxu0
      %v350 = vadd.f32 0.0, %v349
      %v351 = vpop.f32.mrb[0].mxu0
      %352 = vmatprep.mubr.bf16.mxu0 0
      %353 = vmatmul.mubr.bf16.gmra.mrb[0].mxu0 %v234
      %v354 = vpop.f32.mrb[0].mxu0
      %v355 = vadd.f32 0.0, %v354
      %v356 = vpop.f32.mrb[0].mxu0
      %v357 = vpop.f32.mrb[0].mxu0
      %v358 = vadd.f32 0.0, %v357
      %v359 = vpop.f32.mrb[0].mxu0
      %360 = vmatprep.mubr.bf16.mxu0 0
      %361 = vmatmul.mubr.bf16.gmra.mrb[0].mxu0 %v235
      %v362 = vpop.f32.mrb[0].mxu0
      %v363 = vadd.f32 0.0, %v362
      %v364 = vpop.f32.mrb[0].mxu0
      %v365 = vpop.f32.mrb[0].mxu0
      %v366 = vadd.f32 0.0, %v365
      %v367 = vpop.f32.mrb[0].mxu0
      %368 = vmatprep.mubr.bf16.mxu0 0
      %369 = vmatmul.mubr.bf16.gmra.mrb[0].mxu0 %v236
      %v370 = vpop.f32.mrb[0].mxu0
      %v371 = vadd.f32 0.0, %v370
      %v372 = vpop.f32.mrb[0].mxu0
      %v373 = vpop.f32.mrb[0].mxu0
      %v374 = vadd.f32 0.0, %v373
      %v375 = vpop.f32.mrb[0].mxu0
      %376 = vmatprep.mubr.bf16.mxu0 0
      %377 = vmatmul.mubr.bf16.gmra.mrb[0].mxu0 %v237
      %v378 = vpop.f32.mrb[0].mxu0
      %v379 = vadd.f32 0.0, %v378
      %v380 = vpop.f32.mrb[0].mxu0
      %v381 = vpop.f32.mrb[0].mxu0
      %v382 = vadd.f32 0.0, %v381
      %v383 = vpop.f32.mrb[0].mxu0
      %384 = vmatprep.mubr.bf16.mxu0 0
      %385 = vmatmul.mubr.bf16.gmra.mrb[0].mxu0 %v238
      %v386 = vpop.f32.mrb[0].mxu0
      %v387 = vadd.f32 0.0, %v386
      %v388 = vpop.f32.mrb[0].mxu0
      %v389 = vpop.f32.mrb[0].mxu0
      %v390 = vadd.f32 0.0, %v389
      %v391 = vpop.f32.mrb[0].mxu0
      %392 = vmatprep.mubr.bf16.mxu0 0
      %393 = vmatmul.mubr.bf16.gmra.mrb[0].mxu0 %v239
      %v394 = vpop.f32.mrb[0].mxu0
      %v395 = vadd.f32 0.0, %v394
      %v396 = vpop.f32.mrb[0].mxu0
      %v397 = vpop.f32.mrb[0].mxu0
      %v398 = vadd.f32 0.0, %v397
      %v399 = vpop.f32.mrb[0].mxu0
      %400 = vdwg.mxu0
      %v401 = vld [vmem:[%s2] sm:$0xff]
      %v402 = vld [vmem:[%s2 + $0x8] sm:$0xff]
      %v403 = vld [vmem:[%s2 + $0x10] sm:$0xff]
      %v404 = vld [vmem:[%s2 + $0x18] sm:$0xff]
      %v405 = vld [vmem:[%s2 + $0x20] sm:$0xff]
      %v406 = vld [vmem:[%s2 + $0x28] sm:$0xff]
      %v407 = vld [vmem:[%s2 + $0x30] sm:$0xff]
      %v408 = vld [vmem:[%s2 + $0x38] sm:$0xff]
      %v409 = vld [vmem:[%s2 + $0x40] sm:$0xff]
      %v410 = vld [vmem:[%s2 + $0x48] sm:$0xff]
      %v411 = vld [vmem:[%s2 + $0x50] sm:$0xff]
      %v412 = vld [vmem:[%s2 + $0x58] sm:$0xff]
      %v413 = vld [vmem:[%s2 + $0x60] sm:$0xff]
      %v414 = vld [vmem:[%s2 + $0x68] sm:$0xff]
      %v415 = vld [vmem:[%s2 + $0x70] sm:$0xff]
      %v416 = vld [vmem:[%s2 + $0x78] sm:$0xff]
      %417 = vmatprep.subr.mxu0 0.0
      %418 = vmatpush1.msra.mxu0 %v401
      %419 = vmatprep.subr.mxu0 0.0
      %420 = vmatpush1.msra.mxu0 %v402
      %421 = vmatprep.subr.mxu0 0.0
      %422 = vmatpush1.msra.mxu0 %v403
      %423 = vmatprep.subr.mxu0 0.0
      %424 = vmatpush1.msra.mxu0 %v404
      %425 = vmatprep.subr.mxu0 0.0
      %426 = vmatpush1.msra.mxu0 %v405
      %427 = vmatprep.subr.mxu0 0.0
      %428 = vmatpush1.msra.mxu0 %v406
      %429 = vmatprep.subr.mxu0 0.0
      %430 = vmatpush1.msra.mxu0 %v407
      %431 = vmatprep.subr.mxu0 0.0
      %432 = vmatpush1.msra.mxu0 %v408
      %433 = vmatprep.subr.mxu0 0.0
      %434 = vmatpush1.msra.mxu0 %v409
      %435 = vmatprep.subr.mxu0 0.0
      %436 = vmatpush1.msra.mxu0 %v410
      %437 = vmatprep.subr.mxu0 0.0
      %438 = vmatpush1.msra.mxu0 %v411
      %439 = vmatprep.subr.mxu0 0.0
      %440 = vmatpush1.msra.mxu0 %v412
      %441 = vmatprep.subr.mxu0 0.0
      %442 = vmatpush1.msra.mxu0 %v413
      %443 = vmatprep.subr.mxu0 0.0
      %444 = vmatpush1.msra.mxu0 %v414
      %445 = vmatprep.subr.mxu0 0.0
      %446 = vmatpush1.msra.mxu0 %v415
      %447 = vmatprep.subr.mxu0 0.0
      %448 = vmatpush1.msra.mxu0 %v416
      %449 = vmatprep.subr.mxu0 0.0
      %450 = vmatpush1.msra.mxu0 0.0
      %451 = vmatprep.subr.mxu0 0.0
      %452 = vmatpush1.msra.mxu0 0.0
      %453 = vmatprep.subr.mxu0 0.0
      %454 = vmatpush1.msra.mxu0 0.0
      %455 = vmatprep.subr.mxu0 0.0
      %456 = vmatpush1.msra.mxu0 0.0
      %457 = vmatprep.subr.mxu0 0.0
      %458 = vmatpush1.msra.mxu0 0.0
      %459 = vmatprep.subr.mxu0 0.0
      %460 = vmatpush1.msra.mxu0 0.0
      %461 = vmatprep.subr.mxu0 0.0
      %462 = vmatpush1.msra.mxu0 0.0
      %463 = vmatprep.subr.mxu0 0.0
      %464 = vmatpush1.msra.mxu0 0.0
      %465 = vmatprep.subr.mxu0 0.0
      %466 = vmatpush1.msra.mxu0 0.0
      %467 = vmatprep.subr.mxu0 0.0
      %468 = vmatpush1.msra.mxu0 0.0
      %469 = vmatprep.subr.mxu0 0.0
      %470 = vmatpush1.msra.mxu0 0.0
      %471 = vmatprep.subr.mxu0 0.0
      %472 = vmatpush1.msra.mxu0 0.0
      %473 = vmatprep.subr.mxu0 0.0
      %474 = vmatpush1.msra.mxu0 0.0
      %475 = vmatprep.subr.mxu0 0.0
      %476 = vmatpush1.msra.mxu0 0.0
      %477 = vmatprep.subr.mxu0 0.0
      %478 = vmatpush1.msra.mxu0 0.0
      %479 = vmatprep.subr.mxu0 0.0
      %480 = vmatpush1.msra.mxu0 0.0
      %481 = vmatprep.mubr.f32.mxu0 0.0
      %482 = vmatmul.mubr.f32.gmra.mrb[0].mxu0 %v339
      %v483 = vpop.f32.mrb[0].mxu0
      %v484 = vadd.f32 0.0, %v483
      %v485 = vpop.f32.mrb[0].mxu0
      %486 = vmatprep.mubr.f32.mxu0 0.0
      %487 = vmatmul.mubr.f32.gmra.mrb[0].mxu0 %v342
      %v488 = vpop.f32.mrb[0].mxu0
      %v489 = vadd.f32 0.0, %v488
      %v490 = vpop.f32.mrb[0].mxu0
      %491 = vmatprep.mubr.f32.mxu0 0.0
      %492 = vmatmul.mubr.f32.gmra.mrb[0].mxu0 %v347
      %v493 = vpop.f32.mrb[0].mxu0
      %v494 = vadd.f32 0.0, %v493
      %v495 = vpop.f32.mrb[0].mxu0
      %496 = vmatprep.mubr.f32.mxu0 0.0
      %497 = vmatmul.mubr.f32.gmra.mrb[0].mxu0 %v350
      %v498 = vpop.f32.mrb[0].mxu0
      %v499 = vadd.f32 0.0, %v498
      %v500 = vpop.f32.mrb[0].mxu0
      %501 = vmatprep.mubr.f32.mxu0 0.0
      %502 = vmatmul.mubr.f32.gmra.mrb[0].mxu0 %v355
      %v503 = vpop.f32.mrb[0].mxu0
      %v504 = vadd.f32 0.0, %v503
      %v505 = vpop.f32.mrb[0].mxu0
      %506 = vmatprep.mubr.f32.mxu0 0.0
      %507 = vmatmul.mubr.f32.gmra.mrb[0].mxu0 %v358
      %v508 = vpop.f32.mrb[0].mxu0
      %v509 = vadd.f32 0.0, %v508
      %v510 = vpop.f32.mrb[0].mxu0
      %511 = vmatprep.mubr.f32.mxu0 0.0
      %512 = vmatmul.mubr.f32.gmra.mrb[0].mxu0 %v363
      %v513 = vpop.f32.mrb[0].mxu0
      %v514 = vadd.f32 0.0, %v513
      %v515 = vpop.f32.mrb[0].mxu0
      %516 = vmatprep.mubr.f32.mxu0 0.0
      %517 = vmatmul.mubr.f32.gmra.mrb[0].mxu0 %v366
      %v518 = vpop.f32.mrb[0].mxu0
      %v519 = vadd.f32 0.0, %v518
      %v520 = vpop.f32.mrb[0].mxu0
      %521 = vmatprep.mubr.f32.mxu0 0.0
      %522 = vmatmul.mubr.f32.gmra.mrb[0].mxu0 %v371
      %v523 = vpop.f32.mrb[0].mxu0
      %v524 = vadd.f32 0.0, %v523
      %v525 = vpop.f32.mrb[0].mxu0
      %526 = vmatprep.mubr.f32.mxu0 0.0
      %527 = vmatmul.mubr.f32.gmra.mrb[0].mxu0 %v374
      %v528 = vpop.f32.mrb[0].mxu0
      %v529 = vadd.f32 0.0, %v528
      %v530 = vpop.f32.mrb[0].mxu0
      %531 = vmatprep.mubr.f32.mxu0 0.0
      %532 = vmatmul.mubr.f32.gmra.mrb[0].mxu0 %v379
      %v533 = vpop.f32.mrb[0].mxu0
      %v534 = vadd.f32 0.0, %v533
      %v535 = vpop.f32.mrb[0].mxu0
      %536 = vmatprep.mubr.f32.mxu0 0.0
      %537 = vmatmul.mubr.f32.gmra.mrb[0].mxu0 %v382
      %v538 = vpop.f32.mrb[0].mxu0
      %v539 = vadd.f32 0.0, %v538
      %v540 = vpop.f32.mrb[0].mxu0
      %541 = vmatprep.mubr.f32.mxu0 0.0
      %542 = vmatmul.mubr.f32.gmra.mrb[0].mxu0 %v387
      %v543 = vpop.f32.mrb[0].mxu0
      %v544 = vadd.f32 0.0, %v543
      %v545 = vpop.f32.mrb[0].mxu0
      %546 = vmatprep.mubr.f32.mxu0 0.0
      %547 = vmatmul.mubr.f32.gmra.mrb[0].mxu0 %v390
      %v548 = vpop.f32.mrb[0].mxu0
      %v549 = vadd.f32 0.0, %v548
      %v550 = vpop.f32.mrb[0].mxu0
      %551 = vmatprep.mubr.f32.mxu0 0.0
      %552 = vmatmul.mubr.f32.gmra.mrb[0].mxu0 %v395
      %v553 = vpop.f32.mrb[0].mxu0
      %v554 = vadd.f32 0.0, %v553
      %v555 = vpop.f32.mrb[0].mxu0
      %556 = vmatprep.mubr.f32.mxu0 0.0
      %557 = vmatmul.mubr.f32.gmra.mrb[0].mxu0 %v398
      %v558 = vpop.f32.mrb[0].mxu0
      %v559 = vadd.f32 0.0, %v558
      %v560 = vpop.f32.mrb[0].mxu0
      %561 = vdwg.mxu0
      %562 = vst [vmem:[%s213] sm:$0xff] %v484
      %563 = vst [vmem:[%s213 + $0x8] sm:$0xff] %v489
      %564 = vst [vmem:[%s213 + $0x10] sm:$0xff] %v494
      %565 = vst [vmem:[%s213 + $0x18] sm:$0xff] %v499
      %566 = vst [vmem:[%s213 + $0x20] sm:$0xff] %v504
      %567 = vst [vmem:[%s213 + $0x28] sm:$0xff] %v509
      %568 = vst [vmem:[%s213 + $0x30] sm:$0xff] %v514
      %569 = vst [vmem:[%s213 + $0x38] sm:$0xff] %v519
      %570 = vst [vmem:[%s213 + $0x40] sm:$0xff] %v524
      %571 = vst [vmem:[%s213 + $0x48] sm:$0xff] %v529
      %572 = vst [vmem:[%s213 + $0x50] sm:$0xff] %v534
      %573 = vst [vmem:[%s213 + $0x58] sm:$0xff] %v539
      %574 = vst [vmem:[%s213 + $0x60] sm:$0xff] %v544
      %575 = vst [vmem:[%s213 + $0x68] sm:$0xff] %v549
      %576 = vst [vmem:[%s213 + $0x70] sm:$0xff] %v554
      %577 = vst [vmem:[%s213 + $0x78] sm:$0xff] %v559
      %v578 = vpack.c.bf16 %v342, %v339
      %v579 = vpack.c.bf16 %v350, %v347
      %v580 = vpack.c.bf16 %v358, %v355
      %v581 = vpack.c.bf16 %v366, %v363
      %v582 = vpack.c.bf16 %v374, %v371
      %v583 = vpack.c.bf16 %v382, %v379
      %v584 = vpack.c.bf16 %v390, %v387
      %v585 = vpack.c.bf16 %v398, %v395
      %v594 = vunpack.c.l.b16 %v578
      %v595 = vunpack.c.h.b16 %v578
      %v596 = vunpack.c.l.b16 %v579
      %v597 = vunpack.c.h.b16 %v579
      %v598 = vunpack.c.l.b16 %v580
      %v599 = vunpack.c.h.b16 %v580
      %v600 = vunpack.c.l.b16 %v581
      %v601 = vunpack.c.h.b16 %v581
      %v602 = vunpack.c.l.b16 %v582
      %v603 = vunpack.c.h.b16 %v582
      %v604 = vunpack.c.l.b16 %v583
      %v605 = vunpack.c.h.b16 %v583
      %v606 = vunpack.c.l.b16 %v584
      %v607 = vunpack.c.h.b16 %v584
      %v608 = vunpack.c.l.b16 %v585
      %v609 = vunpack.c.h.b16 %v585
      %v610 = vpack.c.b16 %v594, %v594
      %v611 = vpack.c.b16 %v595, %v595
      %v612 = vpack.c.b16 %v596, %v596
      %v613 = vpack.c.b16 %v597, %v597
      %v614 = vpack.c.b16 %v598, %v598
      %v615 = vpack.c.b16 %v599, %v599
      %v616 = vpack.c.b16 %v600, %v600
      %v617 = vpack.c.b16 %v601, %v601
      %v618 = vpack.c.b16 %v602, %v602
      %v619 = vpack.c.b16 %v603, %v603
      %v620 = vpack.c.b16 %v604, %v604
      %v621 = vpack.c.b16 %v605, %v605
      %v622 = vpack.c.b16 %v606, %v606
      %v623 = vpack.c.b16 %v607, %v607
      %v624 = vpack.c.b16 %v608, %v608
      %v625 = vpack.c.b16 %v609, %v609
      %642 = vst [vmem:[%s207] sm:$0xf] %v610
      %643 = vst [vmem:[%s207 + $0x4] sm:$0xf] %v611
      %644 = vst [vmem:[%s207 + $0x8] sm:$0xf] %v612
      %645 = vst [vmem:[%s207 + $0xc] sm:$0xf] %v613
      %646 = vst [vmem:[%s207 + $0x10] sm:$0xf] %v614
      %647 = vst [vmem:[%s207 + $0x14] sm:$0xf] %v615
      %648 = vst [vmem:[%s207 + $0x18] sm:$0xf] %v616
      %649 = vst [vmem:[%s207 + $0x1c] sm:$0xf] %v617
      %650 = vst [vmem:[%s207 + $0x20] sm:$0xf] %v618
      %651 = vst [vmem:[%s207 + $0x24] sm:$0xf] %v619
      %652 = vst [vmem:[%s207 + $0x28] sm:$0xf] %v620
      %653 = vst [vmem:[%s207 + $0x2c] sm:$0xf] %v621
      %654 = vst [vmem:[%s207 + $0x30] sm:$0xf] %v622
      %655 = vst [vmem:[%s207 + $0x34] sm:$0xf] %v623
      %656 = vst [vmem:[%s207 + $0x38] sm:$0xf] %v624
      %657 = vst [vmem:[%s207 + $0x3c] sm:$0xf] %v625
      %s658 = smul.u32 16, %s16
      %p659 = scmp.lt.s32.totalorder %s658, 31
      %s660 = scalar_select %p659, %s658, 31
      %s661 = smul.addr %s660, 4
      %s662 = scalar_lea.vmem %s3, %s661
      %s663 = smul.u32 16, %s16
      %p664 = scmp.lt.s32.totalorder %s663, 31
      %s665 = scalar_select %p664, %s663, 31
      %s666 = smul.addr %s665, 8
      %s667 = scalar_lea.vmem %s4, %s666
      // Predicated region
      $region33: #{ti_gat_forward.15} parent=31 // pred_check
        %p668 = pneg %p102
      $region34: #{ti_gat_forward.15} parent=31 // pred_check_branch
        %670 = sbr.rel (%p668) target = $region36
      $region35: #{ti_gat_forward.15} parent=31 // pred_region
        %s671 = smul.u32 16, %s16
      $region36: #{ti_gat_forward.15} parent=31 // pred_fallthru
        _
      // Predicated region
      $region37: #{ti_gat_forward.15} parent=31 // pred_check
        %p672 = pneg %p128
      $region38: #{ti_gat_forward.15} parent=31 // pred_check_branch
        %674 = sbr.rel (%p672) target = $region40
      $region39: #{ti_gat_forward.15} parent=31 // pred_region
        %s675 = smul.u32 16, %s16
      $region40: #{ti_gat_forward.15} parent=31 // pred_fallthru
        _
    $region32: #{ti_gat_forward.15} parent=5 // pred_fallthru
      _
    %p676 = scmp.le.s32.totalorder 2, %s11
    // Predicated region
    $region41: #{ti_gat_forward.15} parent=5 // pred_check
      %p677 = pneg %p676
    $region42: #{ti_gat_forward.15} parent=5 // pred_check_branch
      %679 = sbr.rel (%p677) target = $region44
    $region43: #{ti_gat_forward.15} parent=5 // pred_region
      %s680 = ssub.s32 %s11, 2
      // Predicated region
      $region45: #{ti_gat_forward.15} parent=43 // pred_check
        %p681 = pneg %p108
      $region46: #{ti_gat_forward.15} parent=43 // pred_check_branch
        %683 = sbr.rel (%p681) target = $region48
      $region47: #{ti_gat_forward.15} parent=43 // pred_region
        %s684 = smul.u32 16, %s17
        %p685 = scmp.lt.s32.totalorder %s684, 31
        %s686 = scalar_select %p685, %s684, 31
        %s687 = smul.addr %s686, 4
        %s688 = scalar_lea.vmem %s3, %s687
      $region48: #{ti_gat_forward.15} parent=43 // pred_fallthru
        _
      // Predicated region
      $region49: #{ti_gat_forward.15} parent=43 // pred_check
        %p689 = pneg %p134
      $region50: #{ti_gat_forward.15} parent=43 // pred_check_branch
        %691 = sbr.rel (%p689) target = $region52
      $region51: #{ti_gat_forward.15} parent=43 // pred_region
        %s692 = smul.u32 16, %s17
        %p693 = scmp.lt.s32.totalorder %s692, 31
        %s694 = scalar_select %p693, %s692, 31
        %s695 = smul.addr %s694, 8
        %s696 = scalar_lea.vmem %s4, %s695
      $region52: #{ti_gat_forward.15} parent=43 // pred_fallthru
        _
    $region44: #{ti_gat_forward.15} parent=5 // pred_fallthru
      _
  $region6: #{ti_gat_forward.15} parent=0 // loop_footer
    %s15 = sadd.s32 1, %s11
  $region7: #{ti_gat_forward.15} parent=0 // loop_footer_branch
    %10 = sbr.rel target = $region3
  $region8: #{ti_gat_forward.15} parent=0 // loop_exit
    _

// kernel: ti_gat_forward.29
$region0: #{ti_gat_forward.29}
  #allocation0 [shape = 'u32[]', space=smem, size = 0x4, offset = 0x4, fixed_abs, tag = 'smem constant byte address 0x4 - core index']
  #allocation1 [shape = 'u32[144,128]{1,0:T(1,128)}', space=vmem, size = 0x12000, scoped, tag = 'internal scratch']
  #allocation2 [shape = 'f32[4,128]{1,0:T(4,128)}', space=vmem, size = 0x800, scoped, tag = 'scratch operand']
  %s0 = inlined_call_operand.vmem [shape: f32[256,128], index: 0, kind: input, shape index: {}]
  %s1 = inlined_call_operand.vmem [shape: f32[256,4], index: 1, kind: input, shape index: {}]
  %s2 = inlined_call_operand.vmem [shape: f32[128,128], index: 2, kind: input, shape index: {}]
  %s3 = inlined_call_operand.vmem [shape: f32[1,128], index: 3, kind: input, shape index: {}]
  %s4 = inlined_call_operand.vmem [shape: f32[128,128], index: 4, kind: input, shape index: {}]
  %s5 = inlined_call_operand.vmem [shape: f32[1,128], index: 5, kind: input, shape index: {}]
  %s6 = inlined_call_operand.hbm [shape: f32[4,128], index: 6, kind: output, shape index: {}]
  %s7 = sld [smem:[#allocation0]]
  $region65: #{ti_gat_forward.29} parent=0
    _
  %s9 = ssub.s32 1, %s7
  %s10 = scalar_select 0, %s9, %s7
  $region1: #{ti_gat_forward.29} parent=0
    #allocation3 [shape = 'u8[2048]{0}', space=vmem, size = 0x800, scoped, tag = 'output window, operand 0, single buffered']
    #allocation4 [shape = 's32[2]{0}', space=sflag, size = 0x8, scoped, tag = 'scoped memory for ti_gat_forward.29']
    %11 = vsyncpa [#allocation4], 0
    loop: start=0, step=1, limit=4
    $region2: #{ti_gat_forward.29} parent=1 // loop_pre_header
      _
    $region3: #{ti_gat_forward.29} parent=1 // loop_header
      %s13 = sphi 0, %s17
      %p14 = scmp.ge.s32.totalorder %s13, 4
      %s23 = sphi 0, %s25
      %s26 = sphi 0, %s23
      %s27 = sphi 0, %s26
      %s43 = sphi 0, %s27
      %s49 = sphi 0, %s51
      %s52 = sphi 0, %s49
      %s53 = sphi 0, %s52
      %s69 = sphi 0, %s53
      %s73 = sphi 0, %s73
      %s75 = sphi 0, %s73
      %s76 = sphi 0, %s75
      %s90 = sphi 0, %s76
      %s94 = sphi 0, %s94
      %s96 = sphi 0, %s94
      %s97 = sphi 0, %s96
      %s111 = sphi 0, %s97
      %s115 = sphi 0, %s115
      %s117 = sphi 0, %s115
      %s118 = sphi 0, %s117
      %s132 = sphi 0, %s118
      %s136 = sphi 0, %s136
      %s138 = sphi 0, %s136
      %s139 = sphi 0, %s138
      %s153 = sphi 0, %s139
      %s157 = sphi 0, %s157
      %s159 = sphi 0, %s157
      %s160 = sphi 0, %s159
      %s174 = sphi 0, %s160
    $region4: #{ti_gat_forward.29} parent=1 // loop_header_branch
      %16 = sbr.rel (%p14) target = $region8
    $region5: #{ti_gat_forward.29} parent=1 // loop_body
      %s18 = ssub.s32 %s13, 1
      %s19 = ssub.s32 %s13, 2
      %s20 = sadd.s32 %s13, 1
      %s21 = ssub.s32 %s13, %s20
      %p22 = scmp.eq.s32.totalorder %s21, 0
      %s24 = sadd.s32 %s23, 1
      %s25 = scalar_select %p22, %s23, %s24
      %p28 = pneg %p22
      %p29 = scmp.eq.s32.totalorder %s13, 1
      %p30 = por %p28, %p29
      %p31 = scmp.ne.s32.totalorder %s23, %s26
      %p32 = scmp.eq.s32.totalorder %s13, 0
      %p33 = por %p31, %p32
      %p34 = scmp.ne.s32.totalorder %s23, %s26
      %p35 = scmp.eq.s32.totalorder %s18, 1
      %p36 = por %p34, %p35
      %p37 = scmp.ne.s32.totalorder %s26, %s27
      %p38 = scmp.eq.s32.totalorder %s18, 0
      %p39 = por %p37, %p38
      %p40 = scmp.ne.s32.totalorder %s26, %s27
      %p41 = scmp.eq.s32.totalorder %s19, 1
      %p42 = por %p40, %p41
      %p44 = scmp.ne.s32.totalorder %s27, %s43
      %p45 = scmp.eq.s32.totalorder %s19, 0
      %p46 = por %p44, %p45
      %s47 = ssub.s32 %s13, %s20
      %p48 = scmp.eq.s32.totalorder %s47, 0
      %s50 = sadd.s32 %s49, 1
      %s51 = scalar_select %p48, %s49, %s50
      %p54 = pneg %p48
      %p55 = scmp.eq.s32.totalorder %s13, 1
      %p56 = por %p54, %p55
      %p57 = scmp.ne.s32.totalorder %s49, %s52
      %p58 = scmp.eq.s32.totalorder %s13, 0
      %p59 = por %p57, %p58
      %p60 = scmp.ne.s32.totalorder %s49, %s52
      %p61 = scmp.eq.s32.totalorder %s18, 1
      %p62 = por %p60, %p61
      %p63 = scmp.ne.s32.totalorder %s52, %s53
      %p64 = scmp.eq.s32.totalorder %s18, 0
      %p65 = por %p63, %p64
      %p66 = scmp.ne.s32.totalorder %s52, %s53
      %p67 = scmp.eq.s32.totalorder %s19, 1
      %p68 = por %p66, %p67
      %p70 = scmp.ne.s32.totalorder %s53, %s69
      %p71 = scmp.eq.s32.totalorder %s19, 0
      %p72 = por %p70, %p71
      %s74 = sadd.s32 %s73, 1
      %p77 = scmp.eq.s32.totalorder %s13, 1
      %p78 = scmp.ne.s32.totalorder %s73, %s75
      %p79 = scmp.eq.s32.totalorder %s13, 0
      %p80 = por %p78, %p79
      %p81 = scmp.ne.s32.totalorder %s73, %s75
      %p82 = scmp.eq.s32.totalorder %s18, 1
      %p83 = por %p81, %p82
      %p84 = scmp.ne.s32.totalorder %s75, %s76
      %p85 = scmp.eq.s32.totalorder %s18, 0
      %p86 = por %p84, %p85
      %p87 = scmp.ne.s32.totalorder %s75, %s76
      %p88 = scmp.eq.s32.totalorder %s19, 1
      %p89 = por %p87, %p88
      %p91 = scmp.ne.s32.totalorder %s76, %s90
      %p92 = scmp.eq.s32.totalorder %s19, 0
      %p93 = por %p91, %p92
      %s95 = sadd.s32 %s94, 1
      %p98 = scmp.eq.s32.totalorder %s13, 1
      %p99 = scmp.ne.s32.totalorder %s94, %s96
      %p100 = scmp.eq.s32.totalorder %s13, 0
      %p101 = por %p99, %p100
      %p102 = scmp.ne.s32.totalorder %s94, %s96
      %p103 = scmp.eq.s32.totalorder %s18, 1
      %p104 = por %p102, %p103
      %p105 = scmp.ne.s32.totalorder %s96, %s97
      %p106 = scmp.eq.s32.totalorder %s18, 0
      %p107 = por %p105, %p106
      %p108 = scmp.ne.s32.totalorder %s96, %s97
      %p109 = scmp.eq.s32.totalorder %s19, 1
      %p110 = por %p108, %p109
      %p112 = scmp.ne.s32.totalorder %s97, %s111
      %p113 = scmp.eq.s32.totalorder %s19, 0
      %p114 = por %p112, %p113
      %s116 = sadd.s32 %s115, 1
      %p119 = scmp.eq.s32.totalorder %s13, 1
      %p120 = scmp.ne.s32.totalorder %s115, %s117
      %p121 = scmp.eq.s32.totalorder %s13, 0
      %p122 = por %p120, %p121
      %p123 = scmp.ne.s32.totalorder %s115, %s117
      %p124 = scmp.eq.s32.totalorder %s18, 1
      %p125 = por %p123, %p124
      %p126 = scmp.ne.s32.totalorder %s117, %s118
      %p127 = scmp.eq.s32.totalorder %s18, 0
      %p128 = por %p126, %p127
      %p129 = scmp.ne.s32.totalorder %s117, %s118
      %p130 = scmp.eq.s32.totalorder %s19, 1
      %p131 = por %p129, %p130
      %p133 = scmp.ne.s32.totalorder %s118, %s132
      %p134 = scmp.eq.s32.totalorder %s19, 0
      %p135 = por %p133, %p134
      %s137 = sadd.s32 %s136, 1
      %p140 = scmp.eq.s32.totalorder %s13, 1
      %p141 = scmp.ne.s32.totalorder %s136, %s138
      %p142 = scmp.eq.s32.totalorder %s13, 0
      %p143 = por %p141, %p142
      %p144 = scmp.ne.s32.totalorder %s136, %s138
      %p145 = scmp.eq.s32.totalorder %s18, 1
      %p146 = por %p144, %p145
      %p147 = scmp.ne.s32.totalorder %s138, %s139
      %p148 = scmp.eq.s32.totalorder %s18, 0
      %p149 = por %p147, %p148
      %p150 = scmp.ne.s32.totalorder %s138, %s139
      %p151 = scmp.eq.s32.totalorder %s19, 1
      %p152 = por %p150, %p151
      %p154 = scmp.ne.s32.totalorder %s139, %s153
      %p155 = scmp.eq.s32.totalorder %s19, 0
      %p156 = por %p154, %p155
      %s158 = sadd.s32 %s157, 1
      %p161 = scmp.eq.s32.totalorder %s13, 1
      %p162 = scmp.ne.s32.totalorder %s157, %s159
      %p163 = scmp.eq.s32.totalorder %s13, 0
      %p164 = por %p162, %p163
      %p165 = scmp.ne.s32.totalorder %s157, %s159
      %p166 = scmp.eq.s32.totalorder %s18, 1
      %p167 = por %p165, %p166
      %p168 = scmp.ne.s32.totalorder %s159, %s160
      %p169 = scmp.eq.s32.totalorder %s18, 0
      %p170 = por %p168, %p169
      %p171 = scmp.ne.s32.totalorder %s159, %s160
      %p172 = scmp.eq.s32.totalorder %s19, 1
      %p173 = por %p171, %p172
      %p175 = scmp.ne.s32.totalorder %s160, %s174
      %p176 = scmp.eq.s32.totalorder %s19, 0
      %p177 = por %p175, %p176
      %p178 = scmp.le.s32.totalorder 1, %s13
      %p179 = scmp.lt.s32.totalorder %s13, 3
      %p180 = pnand %p178, %p179
      %p181 = pneg %p180
      // Predicated region
      $region9: #{ti_gat_forward.29} parent=5 // pred_check
        _
      $region10: #{ti_gat_forward.29} parent=5 // pred_check_branch
        %183 = sbr.rel (%p180) target = $region12
      $region11: #{ti_gat_forward.29} parent=5 // pred_region
        %s184 = ssub.s32 %s13, 1
        // Predicated region
        $region13: #{ti_gat_forward.29} parent=11 // pred_check
          %p185 = pneg %p86
        $region14: #{ti_gat_forward.29} parent=11 // pred_check_branch
          %187 = sbr.rel (%p185) target = $region16
        $region15: #{ti_gat_forward.29} parent=11 // pred_region
          _
        $region16: #{ti_gat_forward.29} parent=11 // pred_fallthru
          _
        // Predicated region
        $region17: #{ti_gat_forward.29} parent=11 // pred_check
          %p188 = pneg %p107
        $region18: #{ti_gat_forward.29} parent=11 // pred_check_branch
          %190 = sbr.rel (%p188) target = $region20
        $region19: #{ti_gat_forward.29} parent=11 // pred_region
          _
        $region20: #{ti_gat_forward.29} parent=11 // pred_fallthru
          _
        // Predicated region
        $region21: #{ti_gat_forward.29} parent=11 // pred_check
          %p191 = pneg %p128
        $region22: #{ti_gat_forward.29} parent=11 // pred_check_branch
          %193 = sbr.rel (%p191) target = $region24
        $region23: #{ti_gat_forward.29} parent=11 // pred_region
          _
        $region24: #{ti_gat_forward.29} parent=11 // pred_fallthru
          _
        // Predicated region
        $region25: #{ti_gat_forward.29} parent=11 // pred_check
          %p194 = pneg %p149
        $region26: #{ti_gat_forward.29} parent=11 // pred_check_branch
          %196 = sbr.rel (%p194) target = $region28
        $region27: #{ti_gat_forward.29} parent=11 // pred_region
          _
        $region28: #{ti_gat_forward.29} parent=11 // pred_fallthru
          _
      $region12: #{ti_gat_forward.29} parent=5 // pred_fallthru
        _
      %p197 = scmp.lt.s32.totalorder %s13, 2
      // Predicated region
      $region29: #{ti_gat_forward.29} parent=5 // pred_check
        %p198 = pneg %p197
      $region30: #{ti_gat_forward.29} parent=5 // pred_check_branch
        %200 = sbr.rel (%p198) target = $region32
      $region31: #{ti_gat_forward.29} parent=5 // pred_region
        // Predicated region
        $region33: #{ti_gat_forward.29} parent=31 // pred_check
          %p201 = pneg %p33
        $region34: #{ti_gat_forward.29} parent=31 // pred_check_branch
          %203 = sbr.rel (%p201) target = $region36
        $region35: #{ti_gat_forward.29} parent=31 // pred_region
          %s204 = smul.u32 16, %s13
          %p205 = scmp.lt.s32.totalorder %s204, 31
          %s206 = scalar_select %p205, %s204, 31
          %s207 = smul.addr %s206, 8
          %s208 = scalar_lea.vmem %s0, %s207
          %s209 = smul.u32 16, %s13
        $region36: #{ti_gat_forward.29} parent=31 // pred_fallthru
          _
        // Predicated region
        $region37: #{ti_gat_forward.29} parent=31 // pred_check
          %p210 = pneg %p59
        $region38: #{ti_gat_forward.29} parent=31 // pred_check_branch
          %212 = sbr.rel (%p210) target = $region40
        $region39: #{ti_gat_forward.29} parent=31 // pred_region
          %s213 = smul.u32 16, %s13
          %p214 = scmp.lt.s32.totalorder %s213, 31
          %s215 = scalar_select %p214, %s213, 31
          %s216 = smul.addr %s215, 8
          %s217 = scalar_lea.vmem %s1, %s216
          %s218 = smul.u32 16, %s13
        $region40: #{ti_gat_forward.29} parent=31 // pred_fallthru
          _
      $region32: #{ti_gat_forward.29} parent=5 // pred_fallthru
        _
      %p219 = scmp.le.s32.totalorder 1, %s13
      %p220 = scmp.lt.s32.totalorder %s13, 3
      %p221 = pnand %p219, %p220
      %p222 = pneg %p221
      // Predicated region
      $region41: #{ti_gat_forward.29} parent=5 // pred_check
        _
      $region42: #{ti_gat_forward.29} parent=5 // pred_check_branch
        %224 = sbr.rel (%p221) target = $region44
      $region43: #{ti_gat_forward.29} parent=5 // pred_region
        %s225 = ssub.s32 %s13, 1
        %s226 = smul.u32 16, %s18
        %p227 = scmp.lt.s32.totalorder %s226, 31
        %s228 = scalar_select %p227, %s226, 31
        %s229 = smul.addr %s228, 8
        %s230 = scalar_lea.vmem %s0, %s229
        %p231 = pneg %p39
        %p232 = pneg %p36
        %s233 = smul.u32 16, %s18
        %p234 = scmp.lt.s32.totalorder %s233, 31
        %s235 = scalar_select %p234, %s233, 31
        %s236 = smul.addr %s235, 8
        %s237 = scalar_lea.vmem %s1, %s236
        %p238 = pneg %p65
        %p239 = pneg %p62
        %p240 = pneg %p86
        %p241 = pneg %p83
        %p242 = pneg %p107
        %p243 = pneg %p104
        %p244 = pneg %p128
        %p245 = pneg %p125
        %p246 = pneg %p149
        %p247 = pneg %p146
        %p248 = pneg %p170
        %p249 = pneg %p167
        %s250 = smul.u32 16, %s18
        %p251 = scmp.lt.s32.totalorder %s250, 31
        %s252 = scalar_select %p251, %s250, 31
        %s253 = smul.addr %s252, 8
        %s254 = scalar_lea.vmem %s0, %s253
        %s255 = smul.u32 16, %s18
        %s256 = smul.u32 16, %s18
        %p257 = scmp.lt.s32.totalorder %s256, 31
        %s258 = scalar_select %p257, %s256, 31
        %s259 = smul.addr %s258, 8
        %s260 = scalar_lea.vmem %s1, %s259
        %s261 = smul.u32 16, %s18
        %p262 = scmp.eq.s32.totalorder %s18, 0
        // Predicated region
        $region45: #{ti_gat_forward.29} parent=43 // pred_check
          %p263 = pneg %p262
        $region46: #{ti_gat_forward.29} parent=43 // pred_check_branch
          %265 = sbr.rel (%p263) target = $region48
        $region47: #{ti_gat_forward.29} parent=43 // pred_region
          %266 = vst [vmem:[#allocation2] sm:$0xf] -1e+30
        $region48: #{ti_gat_forward.29} parent=43 // pred_fallthru
          _
        %v267 = vld [vmem:[%s254] sm:$0xff]
        %v268 = vld [vmem:[%s254 + $0x8] sm:$0xff]
        %v269 = vld [vmem:[%s254 + $0x10] sm:$0xff]
        %v270 = vld [vmem:[%s254 + $0x18] sm:$0xff]
        %v271 = vld [vmem:[%s254 + $0x20] sm:$0xff]
        %v272 = vld [vmem:[%s254 + $0x28] sm:$0xff]
        %v273 = vld [vmem:[%s254 + $0x30] sm:$0xff]
        %v274 = vld [vmem:[%s254 + $0x38] sm:$0xff]
        %v275 = vld [vmem:[%s254 + $0x40] sm:$0xff]
        %v276 = vld [vmem:[%s254 + $0x48] sm:$0xff]
        %v277 = vld [vmem:[%s254 + $0x50] sm:$0xff]
        %v278 = vld [vmem:[%s254 + $0x58] sm:$0xff]
        %v279 = vld [vmem:[%s254 + $0x60] sm:$0xff]
        %v280 = vld [vmem:[%s254 + $0x68] sm:$0xff]
        %v281 = vld [vmem:[%s254 + $0x70] sm:$0xff]
        %v282 = vld [vmem:[%s254 + $0x78] sm:$0xff]
        %v283 = vld [vmem:[%s260] sm:$0xff]
        %v284 = vld [vmem:[%s260 + $0x8] sm:$0xff]
        %v285 = vld [vmem:[%s260 + $0x10] sm:$0xff]
        %v286 = vld [vmem:[%s260 + $0x18] sm:$0xff]
        %v287 = vld [vmem:[%s260 + $0x20] sm:$0xff]
        %v288 = vld [vmem:[%s260 + $0x28] sm:$0xff]
        %v289 = vld [vmem:[%s260 + $0x30] sm:$0xff]
        %v290 = vld [vmem:[%s260 + $0x38] sm:$0xff]
        %v291 = vld [vmem:[%s260 + $0x40] sm:$0xff]
        %v292 = vld [vmem:[%s260 + $0x48] sm:$0xff]
        %v293 = vld [vmem:[%s260 + $0x50] sm:$0xff]
        %v294 = vld [vmem:[%s260 + $0x58] sm:$0xff]
        %v295 = vld [vmem:[%s260 + $0x60] sm:$0xff]
        %v296 = vld [vmem:[%s260 + $0x68] sm:$0xff]
        %v297 = vld [vmem:[%s260 + $0x70] sm:$0xff]
        %v298 = vld [vmem:[%s260 + $0x78] sm:$0xff]
        %vm299 = vcmp.gt.f32.partialorder %v283, 0.0
        %vm300 = vcmp.gt.f32.partialorder %v284, 0.0
        %vm301 = vcmp.gt.f32.partialorder %v285, 0.0
        %vm302 = vcmp.gt.f32.partialorder %v286, 0.0
        %vm303 = vcmp.gt.f32.partialorder %v287, 0.0
        %vm304 = vcmp.gt.f32.partialorder %v288, 0.0
        %vm305 = vcmp.gt.f32.partialorder %v289, 0.0
        %vm306 = vcmp.gt.f32.partialorder %v290, 0.0
        %vm307 = vcmp.gt.f32.partialorder %v291, 0.0
        %vm308 = vcmp.gt.f32.partialorder %v292, 0.0
        %vm309 = vcmp.gt.f32.partialorder %v293, 0.0
        %vm310 = vcmp.gt.f32.partialorder %v294, 0.0
        %vm311 = vcmp.gt.f32.partialorder %v295, 0.0
        %vm312 = vcmp.gt.f32.partialorder %v296, 0.0
        %vm313 = vcmp.gt.f32.partialorder %v297, 0.0
        %vm314 = vcmp.gt.f32.partialorder %v298, 0.0
        %v315 = vsel %vm299, 1, 0
        %v316 = vsel %vm300, 1, 0
        %v317 = vsel %vm301, 1, 0
        %v318 = vsel %vm302, 1, 0
        %v319 = vsel %vm303, 1, 0
        %v320 = vsel %vm304, 1, 0
        %v321 = vsel %vm305, 1, 0
        %v322 = vsel %vm306, 1, 0
        %v323 = vsel %vm307, 1, 0
        %v324 = vsel %vm308, 1, 0
        %v325 = vsel %vm309, 1, 0
        %v326 = vsel %vm310, 1, 0
        %v327 = vsel %vm311, 1, 0
        %v328 = vsel %vm312, 1, 0
        %v329 = vsel %vm313, 1, 0
        %v330 = vsel %vm314, 1, 0
        %331 = vset.pattern.permute.xlu0 0
        %332 = vperm.xlu0 %331, %v315
        %v333 = vpop.permute.xlu0 %332
        %334 = vset.pattern.permute.xlu0 0
        %335 = vperm.xlu0 %334, %v316
        %v336 = vpop.permute.xlu0 %335
        %337 = vset.pattern.permute.xlu0 0
        %338 = vperm.xlu0 %337, %v317
        %v339 = vpop.permute.xlu0 %338
        %340 = vset.pattern.permute.xlu0 0
        %341 = vperm.xlu0 %340, %v318
        %v342 = vpop.permute.xlu0 %341
        %343 = vset.pattern.permute.xlu0 0
        %344 = vperm.xlu0 %343, %v319
        %v345 = vpop.permute.xlu0 %344
        %346 = vset.pattern.permute.xlu0 0
        %347 = vperm.xlu0 %346, %v320
        %v348 = vpop.permute.xlu0 %347
        %349 = vset.pattern.permute.xlu0 0
        %350 = vperm.xlu0 %349, %v321
        %v351 = vpop.permute.xlu0 %350
        %352 = vset.pattern.permute.xlu0 0
        %353 = vperm.xlu0 %352, %v322
        %v354 = vpop.permute.xlu0 %353
        %355 = vset.pattern.permute.xlu0 0
        %356 = vperm.xlu0 %355, %v323
        %v357 = vpop.permute.xlu0 %356
        %358 = vset.pattern.permute.xlu0 0
        %359 = vperm.xlu0 %358, %v324
        %v360 = vpop.permute.xlu0 %359
        %361 = vset.pattern.permute.xlu0 0
        %362 = vperm.xlu0 %361, %v325
        %v363 = vpop.permute.xlu0 %362
        %364 = vset.pattern.permute.xlu0 0
        %365 = vperm.xlu0 %364, %v326
        %v366 = vpop.permute.xlu0 %365
        %367 = vset.pattern.permute.xlu0 0
        %368 = vperm.xlu0 %367, %v327
        %v369 = vpop.permute.xlu0 %368
        %370 = vset.pattern.permute.xlu0 0
        %371 = vperm.xlu0 %370, %v328
        %v372 = vpop.permute.xlu0 %371
        %373 = vset.pattern.permute.xlu0 0
        %374 = vperm.xlu0 %373, %v329
        %v375 = vpop.permute.xlu0 %374
        %376 = vset.pattern.permute.xlu0 0
        %377 = vperm.xlu0 %376, %v330
        %v378 = vpop.permute.xlu0 %377
        %vm379 = vcmp.eq.s32.totalorder %v333, 1
        %vm380 = vcmp.eq.s32.totalorder %v336, 1
        %vm381 = vcmp.eq.s32.totalorder %v339, 1
        %vm382 = vcmp.eq.s32.totalorder %v342, 1
        %vm383 = vcmp.eq.s32.totalorder %v345, 1
        %vm384 = vcmp.eq.s32.totalorder %v348, 1
        %vm385 = vcmp.eq.s32.totalorder %v351, 1
        %vm386 = vcmp.eq.s32.totalorder %v354, 1
        %vm387 = vcmp.eq.s32.totalorder %v357, 1
        %vm388 = vcmp.eq.s32.totalorder %v360, 1
        %vm389 = vcmp.eq.s32.totalorder %v363, 1
        %vm390 = vcmp.eq.s32.totalorder %v366, 1
        %vm391 = vcmp.eq.s32.totalorder %v369, 1
        %vm392 = vcmp.eq.s32.totalorder %v372, 1
        %vm393 = vcmp.eq.s32.totalorder %v375, 1
        %vm394 = vcmp.eq.s32.totalorder %v378, 1
        %v395 = vsel %vm379, %v267, -1e+30
        %v396 = vsel %vm380, %v268, -1e+30
        %v397 = vsel %vm381, %v269, -1e+30
        %v398 = vsel %vm382, %v270, -1e+30
        %v399 = vsel %vm383, %v271, -1e+30
        %v400 = vsel %vm384, %v272, -1e+30
        %v401 = vsel %vm385, %v273, -1e+30
        %v402 = vsel %vm386, %v274, -1e+30
        %v403 = vsel %vm387, %v275, -1e+30
        %v404 = vsel %vm388, %v276, -1e+30
        %v405 = vsel %vm389, %v277, -1e+30
        %v406 = vsel %vm390, %v278, -1e+30
        %v407 = vsel %vm391, %v279, -1e+30
        %v408 = vsel %vm392, %v280, -1e+30
        %v409 = vsel %vm393, %v281, -1e+30
        %v410 = vsel %vm394, %v282, -1e+30
        %v411 = vmax.f32 %v395, %v399
        %v412 = vmax.f32 %v396, %v400
        %v413 = vmax.f32 %v397, %v401
        %v414 = vmax.f32 %v398, %v402
        %v415 = vmax.f32 %v411, %v403
        %v416 = vmax.f32 %v412, %v404
        %v417 = vmax.f32 %v413, %v405
        %v418 = vmax.f32 %v414, %v406
        %v419 = vmax.f32 %v415, %v407
        %v420 = vmax.f32 %v416, %v408
        %v421 = vmax.f32 %v417, %v409
        %v422 = vmax.f32 %v418, %v410
        %v423 = vmax.f32 %v419, %v420
        %v424 = vmax.f32 %v421, %v422
        %v425 = vmax.f32 %v423, %v424
        %v426 = vrot.slane %v425, 4
        %v427 = vmax.f32 %v425, %v426
        %v428 = vrot.slane %v427, 2
        %v429 = vmax.f32 %v427, %v428
        %v430 = vrot.slane %v429, 1
        %v431 = vmax.f32 %v429, %v430
        %v432 = vld [vmem:[#allocation2] sm:$0x1]
        %v433 = vmax.f32 %v432, %v431
        %434 = vst [vmem:[#allocation2] sm:$0x1] %v433
        %435 = vset.pattern.permute.xlu0 1
        %436 = vperm.xlu0 %435, %v315
        %v437 = vpop.permute.xlu0 %436
        %438 = vset.pattern.permute.xlu0 1
        %439 = vperm.xlu0 %438, %v316
        %v440 = vpop.permute.xlu0 %439
        %441 = vset.pattern.permute.xlu0 1
        %442 = vperm.xlu0 %441, %v317
        %v443 = vpop.permute.xlu0 %442
        %444 = vset.pattern.permute.xlu0 1
        %445 = vperm.xlu0 %444, %v318
        %v446 = vpop.permute.xlu0 %445
        %447 = vset.pattern.permute.xlu0 1
        %448 = vperm.xlu0 %447, %v319
        %v449 = vpop.permute.xlu0 %448
        %450 = vset.pattern.permute.xlu0 1
        %451 = vperm.xlu0 %450, %v320
        %v452 = vpop.permute.xlu0 %451
        %453 = vset.pattern.permute.xlu0 1
        %454 = vperm.xlu0 %453, %v321
        %v455 = vpop.permute.xlu0 %454
        %456 = vset.pattern.permute.xlu0 1
        %457 = vperm.xlu0 %456, %v322
        %v458 = vpop.permute.xlu0 %457
        %459 = vset.pattern.permute.xlu0 1
        %460 = vperm.xlu0 %459, %v323
        %v461 = vpop.permute.xlu0 %460
        %462 = vset.pattern.permute.xlu0 1
        %463 = vperm.xlu0 %462, %v324
        %v464 = vpop.permute.xlu0 %463
        %465 = vset.pattern.permute.xlu0 1
        %466 = vperm.xlu0 %465, %v325
        %v467 = vpop.permute.xlu0 %466
        %468 = vset.pattern.permute.xlu0 1
        %469 = vperm.xlu0 %468, %v326
        %v470 = vpop.permute.xlu0 %469
        %471 = vset.pattern.permute.xlu0 1
        %472 = vperm.xlu0 %471, %v327
        %v473 = vpop.permute.xlu0 %472
        %474 = vset.pattern.permute.xlu0 1
        %475 = vperm.xlu0 %474, %v328
        %v476 = vpop.permute.xlu0 %475
        %477 = vset.pattern.permute.xlu0 1
        %478 = vperm.xlu0 %477, %v329
        %v479 = vpop.permute.xlu0 %478
        %480 = vset.pattern.permute.xlu0 1
        %481 = vperm.xlu0 %480, %v330
        %v482 = vpop.permute.xlu0 %481
        %vm483 = vcmp.eq.s32.totalorder %v437, 1
        %vm484 = vcmp.eq.s32.totalorder %v440, 1
        %vm485 = vcmp.eq.s32.totalorder %v443, 1
        %vm486 = vcmp.eq.s32.totalorder %v446, 1
        %vm487 = vcmp.eq.s32.totalorder %v449, 1
        %vm488 = vcmp.eq.s32.totalorder %v452, 1
        %vm489 = vcmp.eq.s32.totalorder %v455, 1
        %vm490 = vcmp.eq.s32.totalorder %v458, 1
        %vm491 = vcmp.eq.s32.totalorder %v461, 1
        %vm492 = vcmp.eq.s32.totalorder %v464, 1
        %vm493 = vcmp.eq.s32.totalorder %v467, 1
        %vm494 = vcmp.eq.s32.totalorder %v470, 1
        %vm495 = vcmp.eq.s32.totalorder %v473, 1
        %vm496 = vcmp.eq.s32.totalorder %v476, 1
        %vm497 = vcmp.eq.s32.totalorder %v479, 1
        %vm498 = vcmp.eq.s32.totalorder %v482, 1
        %v499 = vsel %vm483, %v267, -1e+30
        %v500 = vsel %vm484, %v268, -1e+30
        %v501 = vsel %vm485, %v269, -1e+30
        %v502 = vsel %vm486, %v270, -1e+30
        %v503 = vsel %vm487, %v271, -1e+30
        %v504 = vsel %vm488, %v272, -1e+30
        %v505 = vsel %vm489, %v273, -1e+30
        %v506 = vsel %vm490, %v274, -1e+30
        %v507 = vsel %vm491, %v275, -1e+30
        %v508 = vsel %vm492, %v276, -1e+30
        %v509 = vsel %vm493, %v277, -1e+30
        %v510 = vsel %vm494, %v278, -1e+30
        %v511 = vsel %vm495, %v279, -1e+30
        %v512 = vsel %vm496, %v280, -1e+30
        %v513 = vsel %vm497, %v281, -1e+30
        %v514 = vsel %vm498, %v282, -1e+30
        %v515 = vmax.f32 %v499, %v503
        %v516 = vmax.f32 %v500, %v504
        %v517 = vmax.f32 %v501, %v505
        %v518 = vmax.f32 %v502, %v506
        %v519 = vmax.f32 %v515, %v507
        %v520 = vmax.f32 %v516, %v508
        %v521 = vmax.f32 %v517, %v509
        %v522 = vmax.f32 %v518, %v510
        %v523 = vmax.f32 %v519, %v511
        %v524 = vmax.f32 %v520, %v512
        %v525 = vmax.f32 %v521, %v513
        %v526 = vmax.f32 %v522, %v514
        %v527 = vmax.f32 %v523, %v524
        %v528 = vmax.f32 %v525, %v526
        %v529 = vmax.f32 %v527, %v528
        %v530 = vrot.slane %v529, 4
        %v531 = vmax.f32 %v529, %v530
        %v532 = vrot.slane %v531, 2
        %v533 = vmax.f32 %v531, %v532
        %v534 = vrot.slane %v533, 1
        %v535 = vmax.f32 %v533, %v534
        %v536 = vld [vmem:[#allocation2 + $0x1] sm:$0x1]
        %v537 = vmax.f32 %v536, %v535
        %538 = vst [vmem:[#allocation2 + $0x1] sm:$0x1] %v537
        %539 = vset.pattern.permute.xlu0 2
        %540 = vperm.xlu0 %539, %v315
        %v541 = vpop.permute.xlu0 %540
        %542 = vset.pattern.permute.xlu0 2
        %543 = vperm.xlu0 %542, %v316
        %v544 = vpop.permute.xlu0 %543
        %545 = vset.pattern.permute.xlu0 2
        %546 = vperm.xlu0 %545, %v317
        %v547 = vpop.permute.xlu0 %546
        %548 = vset.pattern.permute.xlu0 2
        %549 = vperm.xlu0 %548, %v318
        %v550 = vpop.permute.xlu0 %549
        %551 = vset.pattern.permute.xlu0 2
        %552 = vperm.xlu0 %551, %v319
        %v553 = vpop.permute.xlu0 %552
        %554 = vset.pattern.permute.xlu0 2
        %555 = vperm.xlu0 %554, %v320
        %v556 = vpop.permute.xlu0 %555
        %557 = vset.pattern.permute.xlu0 2
        %558 = vperm.xlu0 %557, %v321
        %v559 = vpop.permute.xlu0 %558
        %560 = vset.pattern.permute.xlu0 2
        %561 = vperm.xlu0 %560, %v322
        %v562 = vpop.permute.xlu0 %561
        %563 = vset.pattern.permute.xlu0 2
        %564 = vperm.xlu0 %563, %v323
        %v565 = vpop.permute.xlu0 %564
        %566 = vset.pattern.permute.xlu0 2
        %567 = vperm.xlu0 %566, %v324
        %v568 = vpop.permute.xlu0 %567
        %569 = vset.pattern.permute.xlu0 2
        %570 = vperm.xlu0 %569, %v325
        %v571 = vpop.permute.xlu0 %570
        %572 = vset.pattern.permute.xlu0 2
        %573 = vperm.xlu0 %572, %v326
        %v574 = vpop.permute.xlu0 %573
        %575 = vset.pattern.permute.xlu0 2
        %576 = vperm.xlu0 %575, %v327
        %v577 = vpop.permute.xlu0 %576
        %578 = vset.pattern.permute.xlu0 2
        %579 = vperm.xlu0 %578, %v328
        %v580 = vpop.permute.xlu0 %579
        %581 = vset.pattern.permute.xlu0 2
        %582 = vperm.xlu0 %581, %v329
        %v583 = vpop.permute.xlu0 %582
        %584 = vset.pattern.permute.xlu0 2
        %585 = vperm.xlu0 %584, %v330
        %v586 = vpop.permute.xlu0 %585
        %vm587 = vcmp.eq.s32.totalorder %v541, 1
        %vm588 = vcmp.eq.s32.totalorder %v544, 1
        %vm589 = vcmp.eq.s32.totalorder %v547, 1
        %vm590 = vcmp.eq.s32.totalorder %v550, 1
        %vm591 = vcmp.eq.s32.totalorder %v553, 1
        %vm592 = vcmp.eq.s32.totalorder %v556, 1
        %vm593 = vcmp.eq.s32.totalorder %v559, 1
        %vm594 = vcmp.eq.s32.totalorder %v562, 1
        %vm595 = vcmp.eq.s32.totalorder %v565, 1
        %vm596 = vcmp.eq.s32.totalorder %v568, 1
        %vm597 = vcmp.eq.s32.totalorder %v571, 1
        %vm598 = vcmp.eq.s32.totalorder %v574, 1
        %vm599 = vcmp.eq.s32.totalorder %v577, 1
        %vm600 = vcmp.eq.s32.totalorder %v580, 1
        %vm601 = vcmp.eq.s32.totalorder %v583, 1
        %vm602 = vcmp.eq.s32.totalorder %v586, 1
        %v603 = vsel %vm587, %v267, -1e+30
        %v604 = vsel %vm588, %v268, -1e+30
        %v605 = vsel %vm589, %v269, -1e+30
        %v606 = vsel %vm590, %v270, -1e+30
        %v607 = vsel %vm591, %v271, -1e+30
        %v608 = vsel %vm592, %v272, -1e+30
        %v609 = vsel %vm593, %v273, -1e+30
        %v610 = vsel %vm594, %v274, -1e+30
        %v611 = vsel %vm595, %v275, -1e+30
        %v612 = vsel %vm596, %v276, -1e+30
        %v613 = vsel %vm597, %v277, -1e+30
        %v614 = vsel %vm598, %v278, -1e+30
        %v615 = vsel %vm599, %v279, -1e+30
        %v616 = vsel %vm600, %v280, -1e+30
        %v617 = vsel %vm601, %v281, -1e+30
        %v618 = vsel %vm602, %v282, -1e+30
        %v619 = vmax.f32 %v603, %v607
        %v620 = vmax.f32 %v604, %v608
        %v621 = vmax.f32 %v605, %v609
        %v622 = vmax.f32 %v606, %v610
        %v623 = vmax.f32 %v619, %v611
        %v624 = vmax.f32 %v620, %v612
        %v625 = vmax.f32 %v621, %v613
        %v626 = vmax.f32 %v622, %v614
        %v627 = vmax.f32 %v623, %v615
        %v628 = vmax.f32 %v624, %v616
        %v629 = vmax.f32 %v625, %v617
        %v630 = vmax.f32 %v626, %v618
        %v631 = vmax.f32 %v627, %v628
        %v632 = vmax.f32 %v629, %v630
        %v633 = vmax.f32 %v631, %v632
        %v634 = vrot.slane %v633, 4
        %v635 = vmax.f32 %v633, %v634
        %v636 = vrot.slane %v635, 2
        %v637 = vmax.f32 %v635, %v636
        %v638 = vrot.slane %v637, 1
        %v639 = vmax.f32 %v637, %v638
        %v640 = vld [vmem:[#allocation2 + $0x2] sm:$0x1]
        %v641 = vmax.f32 %v640, %v639
        %642 = vst [vmem:[#allocation2 + $0x2] sm:$0x1] %v641
        %643 = vset.pattern.permute.xlu0 3
        %644 = vperm.xlu0 %643, %v315
        %v645 = vpop.permute.xlu0 %644
        %646 = vset.pattern.permute.xlu0 3
        %647 = vperm.xlu0 %646, %v316
        %v648 = vpop.permute.xlu0 %647
        %649 = vset.pattern.permute.xlu0 3
        %650 = vperm.xlu0 %649, %v317
        %v651 = vpop.permute.xlu0 %650
        %652 = vset.pattern.permute.xlu0 3
        %653 = vperm.xlu0 %652, %v318
        %v654 = vpop.permute.xlu0 %653
        %655 = vset.pattern.permute.xlu0 3
        %656 = vperm.xlu0 %655, %v319
        %v657 = vpop.permute.xlu0 %656
        %658 = vset.pattern.permute.xlu0 3
        %659 = vperm.xlu0 %658, %v320
        %v660 = vpop.permute.xlu0 %659
        %661 = vset.pattern.permute.xlu0 3
        %662 = vperm.xlu0 %661, %v321
        %v663 = vpop.permute.xlu0 %662
        %664 = vset.pattern.permute.xlu0 3
        %665 = vperm.xlu0 %664, %v322
        %v666 = vpop.permute.xlu0 %665
        %667 = vset.pattern.permute.xlu0 3
        %668 = vperm.xlu0 %667, %v323
        %v669 = vpop.permute.xlu0 %668
        %670 = vset.pattern.permute.xlu0 3
        %671 = vperm.xlu0 %670, %v324
        %v672 = vpop.permute.xlu0 %671
        %673 = vset.pattern.permute.xlu0 3
        %674 = vperm.xlu0 %673, %v325
        %v675 = vpop.permute.xlu0 %674
        %676 = vset.pattern.permute.xlu0 3
        %677 = vperm.xlu0 %676, %v326
        %v678 = vpop.permute.xlu0 %677
        %679 = vset.pattern.permute.xlu0 3
        %680 = vperm.xlu0 %679, %v327
        %v681 = vpop.permute.xlu0 %680
        %682 = vset.pattern.permute.xlu0 3
        %683 = vperm.xlu0 %682, %v328
        %v684 = vpop.permute.xlu0 %683
        %685 = vset.pattern.permute.xlu0 3
        %686 = vperm.xlu0 %685, %v329
        %v687 = vpop.permute.xlu0 %686
        %688 = vset.pattern.permute.xlu0 3
        %689 = vperm.xlu0 %688, %v330
        %v690 = vpop.permute.xlu0 %689
        %vm691 = vcmp.eq.s32.totalorder %v645, 1
        %vm692 = vcmp.eq.s32.totalorder %v648, 1
        %vm693 = vcmp.eq.s32.totalorder %v651, 1
        %vm694 = vcmp.eq.s32.totalorder %v654, 1
        %vm695 = vcmp.eq.s32.totalorder %v657, 1
        %vm696 = vcmp.eq.s32.totalorder %v660, 1
        %vm697 = vcmp.eq.s32.totalorder %v663, 1
        %vm698 = vcmp.eq.s32.totalorder %v666, 1
        %vm699 = vcmp.eq.s32.totalorder %v669, 1
        %vm700 = vcmp.eq.s32.totalorder %v672, 1
        %vm701 = vcmp.eq.s32.totalorder %v675, 1
        %vm702 = vcmp.eq.s32.totalorder %v678, 1
        %vm703 = vcmp.eq.s32.totalorder %v681, 1
        %vm704 = vcmp.eq.s32.totalorder %v684, 1
        %vm705 = vcmp.eq.s32.totalorder %v687, 1
        %vm706 = vcmp.eq.s32.totalorder %v690, 1
        %v707 = vsel %vm691, %v267, -1e+30
        %v708 = vsel %vm692, %v268, -1e+30
        %v709 = vsel %vm693, %v269, -1e+30
        %v710 = vsel %vm694, %v270, -1e+30
        %v711 = vsel %vm695, %v271, -1e+30
        %v712 = vsel %vm696, %v272, -1e+30
        %v713 = vsel %vm697, %v273, -1e+30
        %v714 = vsel %vm698, %v274, -1e+30
        %v715 = vsel %vm699, %v275, -1e+30
        %v716 = vsel %vm700, %v276, -1e+30
        %v717 = vsel %vm701, %v277, -1e+30
        %v718 = vsel %vm702, %v278, -1e+30
        %v719 = vsel %vm703, %v279, -1e+30
        %v720 = vsel %vm704, %v280, -1e+30
        %v721 = vsel %vm705, %v281, -1e+30
        %v722 = vsel %vm706, %v282, -1e+30
        %v723 = vmax.f32 %v707, %v711
        %v724 = vmax.f32 %v708, %v712
        %v725 = vmax.f32 %v709, %v713
        %v726 = vmax.f32 %v710, %v714
        %v727 = vmax.f32 %v723, %v715
        %v728 = vmax.f32 %v724, %v716
        %v729 = vmax.f32 %v725, %v717
        %v730 = vmax.f32 %v726, %v718
        %v731 = vmax.f32 %v727, %v719
        %v732 = vmax.f32 %v728, %v720
        %v733 = vmax.f32 %v729, %v721
        %v734 = vmax.f32 %v730, %v722
        %v735 = vmax.f32 %v731, %v732
        %v736 = vmax.f32 %v733, %v734
        %v737 = vmax.f32 %v735, %v736
        %v738 = vrot.slane %v737, 4
        %v739 = vmax.f32 %v737, %v738
        %v740 = vrot.slane %v739, 2
        %v741 = vmax.f32 %v739, %v740
        %v742 = vrot.slane %v741, 1
        %v743 = vmax.f32 %v741, %v742
        %v744 = vld [vmem:[#allocation2 + $0x3] sm:$0x1]
        %v745 = vmax.f32 %v744, %v743
        %746 = vst [vmem:[#allocation2 + $0x3] sm:$0x1] %v745
        %p747 = scmp.eq.s32.totalorder %s18, 1
        // Predicated region
        $region49: #{ti_gat_forward.29} parent=43 // pred_check
          %p748 = pneg %p747
        $region50: #{ti_gat_forward.29} parent=43 // pred_check_branch
          %750 = sbr.rel (%p748) target = $region52
        $region51: #{ti_gat_forward.29} parent=43 // pred_region
          %v751 = vld [vmem:[#allocation2] sm:$0xf]
          %v752 = vld [vmem:[%s2] sm:$0xff]
          %v753 = vld [vmem:[%s2 + $0x8] sm:$0xff]
          %v754 = vld [vmem:[%s2 + $0x10] sm:$0xff]
          %v755 = vld [vmem:[%s2 + $0x18] sm:$0xff]
          %v756 = vld [vmem:[%s2 + $0x20] sm:$0xff]
          %v757 = vld [vmem:[%s2 + $0x28] sm:$0xff]
          %v758 = vld [vmem:[%s2 + $0x30] sm:$0xff]
          %v759 = vld [vmem:[%s2 + $0x38] sm:$0xff]
          %v760 = vld [vmem:[%s2 + $0x40] sm:$0xff]
          %v761 = vld [vmem:[%s2 + $0x48] sm:$0xff]
          %v762 = vld [vmem:[%s2 + $0x50] sm:$0xff]
          %v763 = vld [vmem:[%s2 + $0x58] sm:$0xff]
          %v764 = vld [vmem:[%s2 + $0x60] sm:$0xff]
          %v765 = vld [vmem:[%s2 + $0x68] sm:$0xff]
          %v766 = vld [vmem:[%s2 + $0x70] sm:$0xff]
          %v767 = vld [vmem:[%s2 + $0x78] sm:$0xff]
          %v768 = vld [vmem:[%s3] sm:$0x1]
          %v770 = vlaneseq
          %v771 = vshrl.u32 %v770, 7
          %v772 = vsub.s32 0, %v771
          %v773 = vrot.slane %v768, %v772
          %775 = vmatprep.subr.mxu0 0.0
          %776 = vmatpush1.msra.mxu0 %v752
          %777 = vmatprep.subr.mxu0 0.0
          %778 = vmatpush1.msra.mxu0 %v753
          %779 = vmatprep.subr.mxu0 0.0
          %780 = vmatpush1.msra.mxu0 %v754
          %781 = vmatprep.subr.mxu0 0.0
          %782 = vmatpush1.msra.mxu0 %v755
          %783 = vmatprep.subr.mxu0 0.0
          %784 = vmatpush1.msra.mxu0 %v756
          %785 = vmatprep.subr.mxu0 0.0
          %786 = vmatpush1.msra.mxu0 %v757
          %787 = vmatprep.subr.mxu0 0.0
          %788 = vmatpush1.msra.mxu0 %v758
          %789 = vmatprep.subr.mxu0 0.0
          %790 = vmatpush1.msra.mxu0 %v759
          %791 = vmatprep.subr.mxu0 0.0
          %792 = vmatpush1.msra.mxu0 %v760
          %793 = vmatprep.subr.mxu0 0.0
          %794 = vmatpush1.msra.mxu0 %v761
          %795 = vmatprep.subr.mxu0 0.0
          %796 = vmatpush1.msra.mxu0 %v762
          %797 = vmatprep.subr.mxu0 0.0
          %798 = vmatpush1.msra.mxu0 %v763
          %799 = vmatprep.subr.mxu0 0.0
          %800 = vmatpush1.msra.mxu0 %v764
          %801 = vmatprep.subr.mxu0 0.0
          %802 = vmatpush1.msra.mxu0 %v765
          %803 = vmatprep.subr.mxu0 0.0
          %804 = vmatpush1.msra.mxu0 %v766
          %805 = vmatprep.subr.mxu0 0.0
          %806 = vmatpush1.msra.mxu0 %v767
          %807 = vmatprep.subr.mxu0 0.0
          %808 = vmatpush1.msra.mxu0 0.0
          %809 = vmatprep.subr.mxu0 0.0
          %810 = vmatpush1.msra.mxu0 0.0
          %811 = vmatprep.subr.mxu0 0.0
          %812 = vmatpush1.msra.mxu0 0.0
          %813 = vmatprep.subr.mxu0 0.0
          %814 = vmatpush1.msra.mxu0 0.0
          %815 = vmatprep.subr.mxu0 0.0
          %816 = vmatpush1.msra.mxu0 0.0
          %817 = vmatprep.subr.mxu0 0.0
          %818 = vmatpush1.msra.mxu0 0.0
          %819 = vmatprep.subr.mxu0 0.0
          %820 = vmatpush1.msra.mxu0 0.0
          %821 = vmatprep.subr.mxu0 0.0
          %822 = vmatpush1.msra.mxu0 0.0
          %823 = vmatprep.subr.mxu0 0.0
          %824 = vmatpush1.msra.mxu0 0.0
          %825 = vmatprep.subr.mxu0 0.0
          %826 = vmatpush1.msra.mxu0 0.0
          %827 = vmatprep.subr.mxu0 0.0
          %828 = vmatpush1.msra.mxu0 0.0
          %829 = vmatprep.subr.mxu0 0.0
          %830 = vmatpush1.msra.mxu0 0.0
          %831 = vmatprep.subr.mxu0 0.0
          %832 = vmatpush1.msra.mxu0 0.0
          %833 = vmatprep.subr.mxu0 0.0
          %834 = vmatpush1.msra.mxu0 0.0
          %835 = vmatprep.subr.mxu0 0.0
          %836 = vmatpush1.msra.mxu0 0.0
          %837 = vmatprep.subr.mxu0 0.0
          %838 = vmatpush1.msra.mxu0 0.0
          %839 = vmatprep.mubr.f32.mxu0 0.0
          %840 = vmatmul.mubr.f32.gmra.mrb[0].mxu0 %v751
          %v841 = vpop.f32.mrb[0].mxu0
          %v842 = vadd.f32 %v773, %v841
          %v843 = vpop.f32.mrb[0].mxu0
          %844 = vdwg.mxu0
          %v845 = vmax.f32 %v842, 0.0
          %v846 = vld [vmem:[%s4] sm:$0xff]
          %v847 = vld [vmem:[%s4 + $0x8] sm:$0xff]
          %v848 = vld [vmem:[%s4 + $0x10] sm:$0xff]
          %v849 = vld [vmem:[%s4 + $0x18] sm:$0xff]
          %v850 = vld [vmem:[%s4 + $0x20] sm:$0xff]
          %v851 = vld [vmem:[%s4 + $0x28] sm:$0xff]
          %v852 = vld [vmem:[%s4 + $0x30] sm:$0xff]
          %v853 = vld [vmem:[%s4 + $0x38] sm:$0xff]
          %v854 = vld [vmem:[%s4 + $0x40] sm:$0xff]
          %v855 = vld [vmem:[%s4 + $0x48] sm:$0xff]
          %v856 = vld [vmem:[%s4 + $0x50] sm:$0xff]
          %v857 = vld [vmem:[%s4 + $0x58] sm:$0xff]
          %v858 = vld [vmem:[%s4 + $0x60] sm:$0xff]
          %v859 = vld [vmem:[%s4 + $0x68] sm:$0xff]
          %v860 = vld [vmem:[%s4 + $0x70] sm:$0xff]
          %v861 = vld [vmem:[%s4 + $0x78] sm:$0xff]
          %v862 = vld [vmem:[%s5] sm:$0x1]
          %v864 = vlaneseq
          %v865 = vshrl.u32 %v864, 7
          %v866 = vsub.s32 0, %v865
          %v867 = vrot.slane %v862, %v866
          %869 = vmatprep.subr.mxu0 0.0
          %870 = vmatpush1.msra.mxu0 %v846
          %871 = vmatprep.subr.mxu0 0.0
          %872 = vmatpush1.msra.mxu0 %v847
          %873 = vmatprep.subr.mxu0 0.0
          %874 = vmatpush1.msra.mxu0 %v848
          %875 = vmatprep.subr.mxu0 0.0
          %876 = vmatpush1.msra.mxu0 %v849
          %877 = vmatprep.subr.mxu0 0.0
          %878 = vmatpush1.msra.mxu0 %v850
          %879 = vmatprep.subr.mxu0 0.0
          %880 = vmatpush1.msra.mxu0 %v851
          %881 = vmatprep.subr.mxu0 0.0
          %882 = vmatpush1.msra.mxu0 %v852
          %883 = vmatprep.subr.mxu0 0.0
          %884 = vmatpush1.msra.mxu0 %v853
          %885 = vmatprep.subr.mxu0 0.0
          %886 = vmatpush1.msra.mxu0 %v854
          %887 = vmatprep.subr.mxu0 0.0
          %888 = vmatpush1.msra.mxu0 %v855
          %889 = vmatprep.subr.mxu0 0.0
          %890 = vmatpush1.msra.mxu0 %v856
          %891 = vmatprep.subr.mxu0 0.0
          %892 = vmatpush1.msra.mxu0 %v857
          %893 = vmatprep.subr.mxu0 0.0
          %894 = vmatpush1.msra.mxu0 %v858
          %895 = vmatprep.subr.mxu0 0.0
          %896 = vmatpush1.msra.mxu0 %v859
          %897 = vmatprep.subr.mxu0 0.0
          %898 = vmatpush1.msra.mxu0 %v860
          %899 = vmatprep.subr.mxu0 0.0
          %900 = vmatpush1.msra.mxu0 %v861
          %901 = vmatprep.subr.mxu0 0.0
          %902 = vmatpush1.msra.mxu0 0.0
          %903 = vmatprep.subr.mxu0 0.0
          %904 = vmatpush1.msra.mxu0 0.0
          %905 = vmatprep.subr.mxu0 0.0
          %906 = vmatpush1.msra.mxu0 0.0
          %907 = vmatprep.subr.mxu0 0.0
          %908 = vmatpush1.msra.mxu0 0.0
          %909 = vmatprep.subr.mxu0 0.0
          %910 = vmatpush1.msra.mxu0 0.0
          %911 = vmatprep.subr.mxu0 0.0
          %912 = vmatpush1.msra.mxu0 0.0
          %913 = vmatprep.subr.mxu0 0.0
          %914 = vmatpush1.msra.mxu0 0.0
          %915 = vmatprep.subr.mxu0 0.0
          %916 = vmatpush1.msra.mxu0 0.0
          %917 = vmatprep.subr.mxu0 0.0
          %918 = vmatpush1.msra.mxu0 0.0
          %919 = vmatprep.subr.mxu0 0.0
          %920 = vmatpush1.msra.mxu0 0.0
          %921 = vmatprep.subr.mxu0 0.0
          %922 = vmatpush1.msra.mxu0 0.0
          %923 = vmatprep.subr.mxu0 0.0
          %924 = vmatpush1.msra.mxu0 0.0
          %925 = vmatprep.subr.mxu0 0.0
          %926 = vmatpush1.msra.mxu0 0.0
          %927 = vmatprep.subr.mxu0 0.0
          %928 = vmatpush1.msra.mxu0 0.0
          %929 = vmatprep.subr.mxu0 0.0
          %930 = vmatpush1.msra.mxu0 0.0
          %931 = vmatprep.subr.mxu0 0.0
          %932 = vmatpush1.msra.mxu0 0.0
          %933 = vmatprep.mubr.f32.mxu0 0.0
          %934 = vmatmul.mubr.f32.gmra.mrb[0].mxu0 %v845
          %v935 = vpop.f32.mrb[0].mxu0
          %v936 = vadd.f32 %v867, %v935
          %v937 = vpop.f32.mrb[0].mxu0
          %938 = vdwg.mxu0
          %939 = vst [vmem:[#allocation3] sm:$0xf] %v936
        $region52: #{ti_gat_forward.29} parent=43 // pred_fallthru
          _
        // Predicated region
        $region53: #{ti_gat_forward.29} parent=43 // pred_check
          %p940 = pneg %p167
        $region54: #{ti_gat_forward.29} parent=43 // pred_check_branch
          %942 = sbr.rel (%p940) target = $region56
        $region55: #{ti_gat_forward.29} parent=43 // pred_region
          %s944 = ssub.s32 64, 64
          %945 = vsyncadd [#allocation4], %s944
          %s947 = sshll.u32 [#allocation3], 4
          %s948 = int_to_ptr.vmem [resolvable:$true] %s947
          %950 = dma.vmem_to_hbm [thread:$0]  %s948, 64, %s6, [#allocation4]
        $region56: #{ti_gat_forward.29} parent=43 // pred_fallthru
          _
        // Predicated region
        $region57: #{ti_gat_forward.29} parent=43 // pred_check
          %p951 = pneg %p167
        $region58: #{ti_gat_forward.29} parent=43 // pred_check_branch
          %953 = sbr.rel (%p951) target = $region60
        $region59: #{ti_gat_forward.29} parent=43 // pred_region
          %954 = dma.done [#allocation4], 64
        $region60: #{ti_gat_forward.29} parent=43 // pred_fallthru
          _
      $region44: #{ti_gat_forward.29} parent=5 // pred_fallthru
        _
      %p955 = scmp.le.s32.totalorder 2, %s13
      // Predicated region
      $region61: #{ti_gat_forward.29} parent=5 // pred_check
        %p956 = pneg %p955
      $region62: #{ti_gat_forward.29} parent=5 // pred_check_branch
        %958 = sbr.rel (%p956) target = $region64
      $region63: #{ti_gat_forward.29} parent=5 // pred_region
        %s959 = ssub.s32 %s13, 2
      $region64: #{ti_gat_forward.29} parent=5 // pred_fallthru
        _
    $region6: #{ti_gat_forward.29} parent=1 // loop_footer
      %s17 = sadd.s32 1, %s13
    $region7: #{ti_gat_forward.29} parent=1 // loop_footer_branch
      %12 = sbr.rel target = $region3
    $region8: #{ti_gat_forward.29} parent=1 // loop_exit
      _
    %960 = vsyncpa [#allocation4], 1
    %s961 = scalar_lea.sflag [#allocation4], 1
    %962 = vsyncpa %s961, 1

// kernel: ti_gat_forward.16
$region0: #{ti_gat_forward.16}
  #allocation0 [shape = 'u32[]', space=smem, size = 0x4, offset = 0x4, fixed_abs, tag = 'smem constant byte address 0x4 - core index']
  #allocation1 [shape = 'u32[144,128]{1,0:T(1,128)}', space=vmem, size = 0x12000, scoped, tag = 'internal scratch']
  %s0 = inlined_call_operand.vmem [shape: bf16[256,256], index: 0, kind: input, shape index: {}]
  %s1 = inlined_call_operand.vmem [shape: bf16[256,128], index: 1, kind: input, shape index: {}]
  %s2 = inlined_call_operand.vmem [shape: f32[4,256], index: 2, kind: input, shape index: {}]
  %s3 = inlined_call_operand.vmem [shape: f32[256,128], index: 3, kind: input, shape index: {}]
  %s4 = inlined_call_operand.vmem [shape: f32[1,128], index: 4, kind: input, shape index: {}]
  %s5 = inlined_call_operand.vmem [shape: f32[256,128], index: 5, kind: output, shape index: {}]
  %s6 = sld [smem:[#allocation0]]
  $region53: #{ti_gat_forward.16} parent=0
    _
  %s8 = ssub.s32 1, %s6
  %s9 = scalar_select 0, %s8, %s6
  loop: start=0, step=1, limit=4
  $region2: #{ti_gat_forward.16} parent=0 // loop_pre_header
    _
  $region3: #{ti_gat_forward.16} parent=0 // loop_header
    %s11 = sphi 0, %s15
    %p12 = scmp.ge.s32.totalorder %s11, 4
    %s21 = sphi 0, %s23
    %s24 = sphi 0, %s21
    %s25 = sphi 0, %s24
    %s41 = sphi 0, %s25
    %s45 = sphi 0, %s45
    %s47 = sphi 0, %s45
    %s48 = sphi 0, %s47
    %s62 = sphi 0, %s48
    %s66 = sphi 0, %s66
    %s68 = sphi 0, %s66
    %s69 = sphi 0, %s68
    %s83 = sphi 0, %s69
    %s89 = sphi 0, %s91
    %s92 = sphi 0, %s89
    %s93 = sphi 0, %s92
    %s109 = sphi 0, %s93
    %s113 = sphi 0, %s113
    %s115 = sphi 0, %s113
    %s116 = sphi 0, %s115
    %s130 = sphi 0, %s116
    %s136 = sphi 0, %s138
    %s139 = sphi 0, %s136
    %s140 = sphi 0, %s139
    %s156 = sphi 0, %s140
  $region4: #{ti_gat_forward.16} parent=0 // loop_header_branch
    %14 = sbr.rel (%p12) target = $region8
  $region5: #{ti_gat_forward.16} parent=0 // loop_body
    %s16 = ssub.s32 %s11, 1
    %s17 = ssub.s32 %s11, 2
    %s18 = sadd.s32 %s11, 1
    %s19 = ssub.s32 %s11, %s18
    %p20 = scmp.eq.s32.totalorder %s19, 0
    %s22 = sadd.s32 %s21, 1
    %s23 = scalar_select %p20, %s21, %s22
    %p26 = pneg %p20
    %p27 = scmp.eq.s32.totalorder %s11, 1
    %p28 = por %p26, %p27
    %p29 = scmp.ne.s32.totalorder %s21, %s24
    %p30 = scmp.eq.s32.totalorder %s11, 0
    %p31 = por %p29, %p30
    %p32 = scmp.ne.s32.totalorder %s21, %s24
    %p33 = scmp.eq.s32.totalorder %s16, 1
    %p34 = por %p32, %p33
    %p35 = scmp.ne.s32.totalorder %s24, %s25
    %p36 = scmp.eq.s32.totalorder %s16, 0
    %p37 = por %p35, %p36
    %p38 = scmp.ne.s32.totalorder %s24, %s25
    %p39 = scmp.eq.s32.totalorder %s17, 1
    %p40 = por %p38, %p39
    %p42 = scmp.ne.s32.totalorder %s25, %s41
    %p43 = scmp.eq.s32.totalorder %s17, 0
    %p44 = por %p42, %p43
    %s46 = sadd.s32 %s45, 1
    %p49 = scmp.eq.s32.totalorder %s11, 1
    %p50 = scmp.ne.s32.totalorder %s45, %s47
    %p51 = scmp.eq.s32.totalorder %s11, 0
    %p52 = por %p50, %p51
    %p53 = scmp.ne.s32.totalorder %s45, %s47
    %p54 = scmp.eq.s32.totalorder %s16, 1
    %p55 = por %p53, %p54
    %p56 = scmp.ne.s32.totalorder %s47, %s48
    %p57 = scmp.eq.s32.totalorder %s16, 0
    %p58 = por %p56, %p57
    %p59 = scmp.ne.s32.totalorder %s47, %s48
    %p60 = scmp.eq.s32.totalorder %s17, 1
    %p61 = por %p59, %p60
    %p63 = scmp.ne.s32.totalorder %s48, %s62
    %p64 = scmp.eq.s32.totalorder %s17, 0
    %p65 = por %p63, %p64
    %s67 = sadd.s32 %s66, 1
    %p70 = scmp.eq.s32.totalorder %s11, 1
    %p71 = scmp.ne.s32.totalorder %s66, %s68
    %p72 = scmp.eq.s32.totalorder %s11, 0
    %p73 = por %p71, %p72
    %p74 = scmp.ne.s32.totalorder %s66, %s68
    %p75 = scmp.eq.s32.totalorder %s16, 1
    %p76 = por %p74, %p75
    %p77 = scmp.ne.s32.totalorder %s68, %s69
    %p78 = scmp.eq.s32.totalorder %s16, 0
    %p79 = por %p77, %p78
    %p80 = scmp.ne.s32.totalorder %s68, %s69
    %p81 = scmp.eq.s32.totalorder %s17, 1
    %p82 = por %p80, %p81
    %p84 = scmp.ne.s32.totalorder %s69, %s83
    %p85 = scmp.eq.s32.totalorder %s17, 0
    %p86 = por %p84, %p85
    %s87 = ssub.s32 %s11, %s18
    %p88 = scmp.eq.s32.totalorder %s87, 0
    %s90 = sadd.s32 %s89, 1
    %s91 = scalar_select %p88, %s89, %s90
    %p94 = pneg %p88
    %p95 = scmp.eq.s32.totalorder %s11, 1
    %p96 = por %p94, %p95
    %p97 = scmp.ne.s32.totalorder %s89, %s92
    %p98 = scmp.eq.s32.totalorder %s11, 0
    %p99 = por %p97, %p98
    %p100 = scmp.ne.s32.totalorder %s89, %s92
    %p101 = scmp.eq.s32.totalorder %s16, 1
    %p102 = por %p100, %p101
    %p103 = scmp.ne.s32.totalorder %s92, %s93
    %p104 = scmp.eq.s32.totalorder %s16, 0
    %p105 = por %p103, %p104
    %p106 = scmp.ne.s32.totalorder %s92, %s93
    %p107 = scmp.eq.s32.totalorder %s17, 1
    %p108 = por %p106, %p107
    %p110 = scmp.ne.s32.totalorder %s93, %s109
    %p111 = scmp.eq.s32.totalorder %s17, 0
    %p112 = por %p110, %p111
    %s114 = sadd.s32 %s113, 1
    %p117 = scmp.eq.s32.totalorder %s11, 1
    %p118 = scmp.ne.s32.totalorder %s113, %s115
    %p119 = scmp.eq.s32.totalorder %s11, 0
    %p120 = por %p118, %p119
    %p121 = scmp.ne.s32.totalorder %s113, %s115
    %p122 = scmp.eq.s32.totalorder %s16, 1
    %p123 = por %p121, %p122
    %p124 = scmp.ne.s32.totalorder %s115, %s116
    %p125 = scmp.eq.s32.totalorder %s16, 0
    %p126 = por %p124, %p125
    %p127 = scmp.ne.s32.totalorder %s115, %s116
    %p128 = scmp.eq.s32.totalorder %s17, 1
    %p129 = por %p127, %p128
    %p131 = scmp.ne.s32.totalorder %s116, %s130
    %p132 = scmp.eq.s32.totalorder %s17, 0
    %p133 = por %p131, %p132
    %s134 = ssub.s32 %s11, %s18
    %p135 = scmp.eq.s32.totalorder %s134, 0
    %s137 = sadd.s32 %s136, 1
    %s138 = scalar_select %p135, %s136, %s137
    %p141 = pneg %p135
    %p142 = scmp.eq.s32.totalorder %s11, 1
    %p143 = por %p141, %p142
    %p144 = scmp.ne.s32.totalorder %s136, %s139
    %p145 = scmp.eq.s32.totalorder %s11, 0
    %p146 = por %p144, %p145
    %p147 = scmp.ne.s32.totalorder %s136, %s139
    %p148 = scmp.eq.s32.totalorder %s16, 1
    %p149 = por %p147, %p148
    %p150 = scmp.ne.s32.totalorder %s139, %s140
    %p151 = scmp.eq.s32.totalorder %s16, 0
    %p152 = por %p150, %p151
    %p153 = scmp.ne.s32.totalorder %s139, %s140
    %p154 = scmp.eq.s32.totalorder %s17, 1
    %p155 = por %p153, %p154
    %p157 = scmp.ne.s32.totalorder %s140, %s156
    %p158 = scmp.eq.s32.totalorder %s17, 0
    %p159 = por %p157, %p158
    %p160 = scmp.le.s32.totalorder 1, %s11
    %p161 = scmp.lt.s32.totalorder %s11, 3
    %p162 = pnand %p160, %p161
    %p163 = pneg %p162
    // Predicated region
    $region9: #{ti_gat_forward.16} parent=5 // pred_check
      _
    $region10: #{ti_gat_forward.16} parent=5 // pred_check_branch
      %165 = sbr.rel (%p162) target = $region12
    $region11: #{ti_gat_forward.16} parent=5 // pred_region
      %s166 = ssub.s32 %s11, 1
      // Predicated region
      $region13: #{ti_gat_forward.16} parent=11 // pred_check
        %p167 = pneg %p58
      $region14: #{ti_gat_forward.16} parent=11 // pred_check_branch
        %169 = sbr.rel (%p167) target = $region16
      $region15: #{ti_gat_forward.16} parent=11 // pred_region
        _
      $region16: #{ti_gat_forward.16} parent=11 // pred_fallthru
        _
      // Predicated region
      $region17: #{ti_gat_forward.16} parent=11 // pred_check
        %p170 = pneg %p79
      $region18: #{ti_gat_forward.16} parent=11 // pred_check_branch
        %172 = sbr.rel (%p170) target = $region20
      $region19: #{ti_gat_forward.16} parent=11 // pred_region
        _
      $region20: #{ti_gat_forward.16} parent=11 // pred_fallthru
        _
      // Predicated region
      $region21: #{ti_gat_forward.16} parent=11 // pred_check
        %p173 = pneg %p126
      $region22: #{ti_gat_forward.16} parent=11 // pred_check_branch
        %175 = sbr.rel (%p173) target = $region24
      $region23: #{ti_gat_forward.16} parent=11 // pred_region
        _
      $region24: #{ti_gat_forward.16} parent=11 // pred_fallthru
        _
    $region12: #{ti_gat_forward.16} parent=5 // pred_fallthru
      _
    %p176 = scmp.lt.s32.totalorder %s11, 2
    // Predicated region
    $region25: #{ti_gat_forward.16} parent=5 // pred_check
      %p177 = pneg %p176
    $region26: #{ti_gat_forward.16} parent=5 // pred_check_branch
      %179 = sbr.rel (%p177) target = $region28
    $region27: #{ti_gat_forward.16} parent=5 // pred_region
      // Predicated region
      $region29: #{ti_gat_forward.16} parent=27 // pred_check
        %p180 = pneg %p31
      $region30: #{ti_gat_forward.16} parent=27 // pred_check_branch
        %182 = sbr.rel (%p180) target = $region32
      $region31: #{ti_gat_forward.16} parent=27 // pred_region
        %s183 = smul.u32 16, %s11
        %p184 = scmp.lt.s32.totalorder %s183, 31
        %s185 = scalar_select %p184, %s183, 31
        %s186 = smul.addr %s185, 2
        %s187 = smul.addr %s186, 4
        %s188 = scalar_lea.vmem %s0, %s187
        %s189 = smul.u32 16, %s11
      $region32: #{ti_gat_forward.16} parent=27 // pred_fallthru
        _
      // Predicated region
      $region33: #{ti_gat_forward.16} parent=27 // pred_check
        %p190 = pneg %p99
      $region34: #{ti_gat_forward.16} parent=27 // pred_check_branch
        %192 = sbr.rel (%p190) target = $region36
      $region35: #{ti_gat_forward.16} parent=27 // pred_region
        %s193 = smul.u32 16, %s11
        %p194 = scmp.lt.s32.totalorder %s193, 31
        %s195 = scalar_select %p194, %s193, 31
        %s196 = smul.addr %s195, 8
        %s197 = scalar_lea.vmem %s3, %s196
        %s198 = smul.u32 16, %s11
      $region36: #{ti_gat_forward.16} parent=27 // pred_fallthru
        _
    $region28: #{ti_gat_forward.16} parent=5 // pred_fallthru
      _
    %p199 = scmp.le.s32.totalorder 1, %s11
    %p200 = scmp.lt.s32.totalorder %s11, 3
    %p201 = pnand %p199, %p200
    %p202 = pneg %p201
    // Predicated region
    $region37: #{ti_gat_forward.16} parent=5 // pred_check
      _
    $region38: #{ti_gat_forward.16} parent=5 // pred_check_branch
      %204 = sbr.rel (%p201) target = $region40
    $region39: #{ti_gat_forward.16} parent=5 // pred_region
      %s205 = ssub.s32 %s11, 1
      %s206 = smul.u32 16, %s16
      %p207 = scmp.lt.s32.totalorder %s206, 31
      %s208 = scalar_select %p207, %s206, 31
      %s209 = smul.addr %s208, 2
      %s210 = smul.addr %s209, 4
      %s211 = scalar_lea.vmem %s0, %s210
      %p212 = pneg %p37
      %p213 = pneg %p34
      %p214 = pneg %p58
      %p215 = pneg %p55
      %p216 = pneg %p79
      %p217 = pneg %p76
      %s218 = smul.u32 16, %s16
      %p219 = scmp.lt.s32.totalorder %s218, 31
      %s220 = scalar_select %p219, %s218, 31
      %s221 = smul.addr %s220, 8
      %s222 = scalar_lea.vmem %s3, %s221
      %p223 = pneg %p105
      %p224 = pneg %p102
      %p225 = pneg %p126
      %p226 = pneg %p123
      %p227 = pneg %p152
      %p228 = pneg %p149
      %s229 = smul.u32 16, %s16
      %p230 = scmp.lt.s32.totalorder %s229, 31
      %s231 = scalar_select %p230, %s229, 31
      %s232 = smul.addr %s231, 8
      %s233 = scalar_lea.vmem %s5, %s232
      %s234 = smul.u32 16, %s16
      %p235 = scmp.lt.s32.totalorder %s234, 31
      %s236 = scalar_select %p235, %s234, 31
      %s237 = smul.addr %s236, 2
      %s238 = smul.addr %s237, 4
      %s239 = scalar_lea.vmem %s0, %s238
      %s240 = smul.u32 16, %s16
      %s241 = smul.u32 16, %s16
      %p242 = scmp.lt.s32.totalorder %s241, 31
      %s243 = scalar_select %p242, %s241, 31
      %s244 = smul.addr %s243, 8
      %s245 = scalar_lea.vmem %s3, %s244
      %s246 = smul.u32 16, %s16
      %s247 = smul.u32 16, %s16
      %p248 = scmp.lt.s32.totalorder %s247, 31
      %s249 = scalar_select %p248, %s247, 31
      %s250 = smul.addr %s249, 8
      %s251 = scalar_lea.vmem %s5, %s250
      %s252 = smul.u32 16, %s16
      %v254 = vld [vmem:[%s239] sm:$0xff]
      %v255 = vld [vmem:[%s239 + $0x8] sm:$0xff]
      %v256 = vld [vmem:[%s239 + $0x10] sm:$0xff]
      %v257 = vld [vmem:[%s239 + $0x18] sm:$0xff]
      %v258 = vld [vmem:[%s239 + $0x20] sm:$0xff]
      %v259 = vld [vmem:[%s239 + $0x28] sm:$0xff]
      %v260 = vld [vmem:[%s239 + $0x30] sm:$0xff]
      %v261 = vld [vmem:[%s239 + $0x38] sm:$0xff]
      %v262 = vld [vmem:[%s239 + $0x40] sm:$0xff]
      %v263 = vld [vmem:[%s239 + $0x48] sm:$0xff]
      %v264 = vld [vmem:[%s239 + $0x50] sm:$0xff]
      %v265 = vld [vmem:[%s239 + $0x58] sm:$0xff]
      %v266 = vld [vmem:[%s239 + $0x60] sm:$0xff]
      %v267 = vld [vmem:[%s239 + $0x68] sm:$0xff]
      %v268 = vld [vmem:[%s239 + $0x70] sm:$0xff]
      %v269 = vld [vmem:[%s239 + $0x78] sm:$0xff]
      %v270 = vunpack.c.l.bf16 %v254
      %v271 = vunpack.c.h.bf16 %v254
      %v272 = vunpack.c.l.bf16 %v255
      %v273 = vunpack.c.h.bf16 %v255
      %v274 = vunpack.c.l.bf16 %v256
      %v275 = vunpack.c.h.bf16 %v256
      %v276 = vunpack.c.l.bf16 %v257
      %v277 = vunpack.c.h.bf16 %v257
      %v278 = vunpack.c.l.bf16 %v258
      %v279 = vunpack.c.h.bf16 %v258
      %v280 = vunpack.c.l.bf16 %v259
      %v281 = vunpack.c.h.bf16 %v259
      %v282 = vunpack.c.l.bf16 %v260
      %v283 = vunpack.c.h.bf16 %v260
      %v284 = vunpack.c.l.bf16 %v261
      %v285 = vunpack.c.h.bf16 %v261
      %v286 = vunpack.c.l.bf16 %v262
      %v287 = vunpack.c.h.bf16 %v262
      %v288 = vunpack.c.l.bf16 %v263
      %v289 = vunpack.c.h.bf16 %v263
      %v290 = vunpack.c.l.bf16 %v264
      %v291 = vunpack.c.h.bf16 %v264
      %v292 = vunpack.c.l.bf16 %v265
      %v293 = vunpack.c.h.bf16 %v265
      %v294 = vunpack.c.l.bf16 %v266
      %v295 = vunpack.c.h.bf16 %v266
      %v296 = vunpack.c.l.bf16 %v267
      %v297 = vunpack.c.h.bf16 %v267
      %v298 = vunpack.c.l.bf16 %v268
      %v299 = vunpack.c.h.bf16 %v268
      %v300 = vunpack.c.l.bf16 %v269
      %v301 = vunpack.c.h.bf16 %v269
      %v302 = vld [vmem:[%s1] sm:$0xf]
      %v303 = vld [vmem:[%s1 + $0x4] sm:$0xf]
      %v304 = vld [vmem:[%s1 + $0x8] sm:$0xf]
      %v305 = vld [vmem:[%s1 + $0xc] sm:$0xf]
      %v306 = vld [vmem:[%s1 + $0x10] sm:$0xf]
      %v307 = vld [vmem:[%s1 + $0x14] sm:$0xf]
      %v308 = vld [vmem:[%s1 + $0x18] sm:$0xf]
      %v309 = vld [vmem:[%s1 + $0x1c] sm:$0xf]
      %v310 = vld [vmem:[%s1 + $0x20] sm:$0xf]
      %v311 = vld [vmem:[%s1 + $0x24] sm:$0xf]
      %v312 = vld [vmem:[%s1 + $0x28] sm:$0xf]
      %v313 = vld [vmem:[%s1 + $0x2c] sm:$0xf]
      %v314 = vld [vmem:[%s1 + $0x30] sm:$0xf]
      %v315 = vld [vmem:[%s1 + $0x34] sm:$0xf]
      %v316 = vld [vmem:[%s1 + $0x38] sm:$0xf]
      %v317 = vld [vmem:[%s1 + $0x3c] sm:$0xf]
      %v318 = vld [vmem:[%s1 + $0x40] sm:$0xf]
      %v319 = vld [vmem:[%s1 + $0x44] sm:$0xf]
      %v320 = vld [vmem:[%s1 + $0x48] sm:$0xf]
      %v321 = vld [vmem:[%s1 + $0x4c] sm:$0xf]
      %v322 = vld [vmem:[%s1 + $0x50] sm:$0xf]
      %v323 = vld [vmem:[%s1 + $0x54] sm:$0xf]
      %v324 = vld [vmem:[%s1 + $0x58] sm:$0xf]
      %v325 = vld [vmem:[%s1 + $0x5c] sm:$0xf]
      %v326 = vld [vmem:[%s1 + $0x60] sm:$0xf]
      %v327 = vld [vmem:[%s1 + $0x64] sm:$0xf]
      %v328 = vld [vmem:[%s1 + $0x68] sm:$0xf]
      %v329 = vld [vmem:[%s1 + $0x6c] sm:$0xf]
      %v330 = vld [vmem:[%s1 + $0x70] sm:$0xf]
      %v331 = vld [vmem:[%s1 + $0x74] sm:$0xf]
      %v332 = vld [vmem:[%s1 + $0x78] sm:$0xf]
      %v333 = vld [vmem:[%s1 + $0x7c] sm:$0xf]
      %v334 = vld [vmem:[%s2] sm:$0xff]
      %v335 = vld [vmem:[%s245] sm:$0xff]
      %v336 = vld [vmem:[%s245 + $0x8] sm:$0xff]
      %v337 = vld [vmem:[%s245 + $0x10] sm:$0xff]
      %v338 = vld [vmem:[%s245 + $0x18] sm:$0xff]
      %v339 = vld [vmem:[%s245 + $0x20] sm:$0xff]
      %v340 = vld [vmem:[%s245 + $0x28] sm:$0xff]
      %v341 = vld [vmem:[%s245 + $0x30] sm:$0xff]
      %v342 = vld [vmem:[%s245 + $0x38] sm:$0xff]
      %v343 = vld [vmem:[%s245 + $0x40] sm:$0xff]
      %v344 = vld [vmem:[%s245 + $0x48] sm:$0xff]
      %v345 = vld [vmem:[%s245 + $0x50] sm:$0xff]
      %v346 = vld [vmem:[%s245 + $0x58] sm:$0xff]
      %v347 = vld [vmem:[%s245 + $0x60] sm:$0xff]
      %v348 = vld [vmem:[%s245 + $0x68] sm:$0xff]
      %v349 = vld [vmem:[%s245 + $0x70] sm:$0xff]
      %v350 = vld [vmem:[%s245 + $0x78] sm:$0xff]
      %v351 = vld [vmem:[%s4] sm:$0x1]
      %353 = vset.pattern.permute.xlu0 4
      %354 = vperm.xlu0 %353, %v335
      %v355 = vpop.permute.xlu0 %354
      %358 = vset.pattern.permute.xlu0 4
      %359 = vperm.xlu0 %358, %v336
      %v360 = vpop.permute.xlu0 %359
      %363 = vset.pattern.permute.xlu0 4
      %364 = vperm.xlu0 %363, %v337
      %v365 = vpop.permute.xlu0 %364
      %368 = vset.pattern.permute.xlu0 4
      %369 = vperm.xlu0 %368, %v338
      %v370 = vpop.permute.xlu0 %369
      %373 = vset.pattern.permute.xlu0 4
      %374 = vperm.xlu0 %373, %v339
      %v375 = vpop.permute.xlu0 %374
      %378 = vset.pattern.permute.xlu0 4
      %379 = vperm.xlu0 %378, %v340
      %v380 = vpop.permute.xlu0 %379
      %383 = vset.pattern.permute.xlu0 4
      %384 = vperm.xlu0 %383, %v341
      %v385 = vpop.permute.xlu0 %384
      %388 = vset.pattern.permute.xlu0 4
      %389 = vperm.xlu0 %388, %v342
      %v390 = vpop.permute.xlu0 %389
      %393 = vset.pattern.permute.xlu0 4
      %394 = vperm.xlu0 %393, %v343
      %v395 = vpop.permute.xlu0 %394
      %398 = vset.pattern.permute.xlu0 4
      %399 = vperm.xlu0 %398, %v344
      %v400 = vpop.permute.xlu0 %399
      %403 = vset.pattern.permute.xlu0 4
      %404 = vperm.xlu0 %403, %v345
      %v405 = vpop.permute.xlu0 %404
      %408 = vset.pattern.permute.xlu0 4
      %409 = vperm.xlu0 %408, %v346
      %v410 = vpop.permute.xlu0 %409
      %413 = vset.pattern.permute.xlu0 4
      %414 = vperm.xlu0 %413, %v347
      %v415 = vpop.permute.xlu0 %414
      %418 = vset.pattern.permute.xlu0 4
      %419 = vperm.xlu0 %418, %v348
      %v420 = vpop.permute.xlu0 %419
      %423 = vset.pattern.permute.xlu0 4
      %424 = vperm.xlu0 %423, %v349
      %v425 = vpop.permute.xlu0 %424
      %428 = vset.pattern.permute.xlu0 4
      %429 = vperm.xlu0 %428, %v350
      %v430 = vpop.permute.xlu0 %429
      %v433 = vlaneseq
      %v434 = vshrl.u32 %v433, 7
      %v435 = vsub.s32 0, %v434
      %v436 = vrot.slane %v334, %v435
      %v437 = vlaneseq
      %v438 = vshrl.u32 %v437, 7
      %v439 = vsub.s32 4, %v438
      %v440 = vrot.slane %v334, %v439
      %v443 = vlaneseq
      %v444 = vshrl.u32 %v443, 7
      %v445 = vsub.s32 0, %v444
      %v446 = vrot.slane %v436, %v445
      %v447 = vlaneseq
      %v448 = vshrl.u32 %v447, 7
      %v449 = vsub.s32 0, %v448
      %v450 = vrot.slane %v440, %v449
      %v451 = vadd.f32 %v355, %v446
      %v452 = vadd.f32 %v355, %v450
      %v453 = vadd.f32 %v360, %v446
      %v454 = vadd.f32 %v360, %v450
      %v455 = vadd.f32 %v365, %v446
      %v456 = vadd.f32 %v365, %v450
      %v457 = vadd.f32 %v370, %v446
      %v458 = vadd.f32 %v370, %v450
      %v459 = vadd.f32 %v375, %v446
      %v460 = vadd.f32 %v375, %v450
      %v461 = vadd.f32 %v380, %v446
      %v462 = vadd.f32 %v380, %v450
      %v463 = vadd.f32 %v385, %v446
      %v464 = vadd.f32 %v385, %v450
      %v465 = vadd.f32 %v390, %v446
      %v466 = vadd.f32 %v390, %v450
      %v467 = vadd.f32 %v395, %v446
      %v468 = vadd.f32 %v395, %v450
      %v469 = vadd.f32 %v400, %v446
      %v470 = vadd.f32 %v400, %v450
      %v471 = vadd.f32 %v405, %v446
      %v472 = vadd.f32 %v405, %v450
      %v473 = vadd.f32 %v410, %v446
      %v474 = vadd.f32 %v410, %v450
      %v475 = vadd.f32 %v415, %v446
      %v476 = vadd.f32 %v415, %v450
      %v477 = vadd.f32 %v420, %v446
      %v478 = vadd.f32 %v420, %v450
      %v479 = vadd.f32 %v425, %v446
      %v480 = vadd.f32 %v425, %v450
      %v481 = vadd.f32 %v430, %v446
      %v482 = vadd.f32 %v430, %v450
      %vm483 = vcmp.ge.f32.partialorder %v451, 0.0
      %vm484 = vcmp.ge.f32.partialorder %v452, 0.0
      %vm485 = vcmp.ge.f32.partialorder %v453, 0.0
      %vm486 = vcmp.ge.f32.partialorder %v454, 0.0
      %vm487 = vcmp.ge.f32.partialorder %v455, 0.0
      %vm488 = vcmp.ge.f32.partialorder %v456, 0.0
      %vm489 = vcmp.ge.f32.partialorder %v457, 0.0
      %vm490 = vcmp.ge.f32.partialorder %v458, 0.0
      %vm491 = vcmp.ge.f32.partialorder %v459, 0.0
      %vm492 = vcmp.ge.f32.partialorder %v460, 0.0
      %vm493 = vcmp.ge.f32.partialorder %v461, 0.0
      %vm494 = vcmp.ge.f32.partialorder %v462, 0.0
      %vm495 = vcmp.ge.f32.partialorder %v463, 0.0
      %vm496 = vcmp.ge.f32.partialorder %v464, 0.0
      %vm497 = vcmp.ge.f32.partialorder %v465, 0.0
      %vm498 = vcmp.ge.f32.partialorder %v466, 0.0
      %vm499 = vcmp.ge.f32.partialorder %v467, 0.0
      %vm500 = vcmp.ge.f32.partialorder %v468, 0.0
      %vm501 = vcmp.ge.f32.partialorder %v469, 0.0
      %vm502 = vcmp.ge.f32.partialorder %v470, 0.0
      %vm503 = vcmp.ge.f32.partialorder %v471, 0.0
      %vm504 = vcmp.ge.f32.partialorder %v472, 0.0
      %vm505 = vcmp.ge.f32.partialorder %v473, 0.0
      %vm506 = vcmp.ge.f32.partialorder %v474, 0.0
      %vm507 = vcmp.ge.f32.partialorder %v475, 0.0
      %vm508 = vcmp.ge.f32.partialorder %v476, 0.0
      %vm509 = vcmp.ge.f32.partialorder %v477, 0.0
      %vm510 = vcmp.ge.f32.partialorder %v478, 0.0
      %vm511 = vcmp.ge.f32.partialorder %v479, 0.0
      %vm512 = vcmp.ge.f32.partialorder %v480, 0.0
      %vm513 = vcmp.ge.f32.partialorder %v481, 0.0
      %vm514 = vcmp.ge.f32.partialorder %v482, 0.0
      %v515 = vmul.f32 %v451, 0.2
      %v516 = vmul.f32 %v452, 0.2
      %v517 = vmul.f32 %v453, 0.2
      %v518 = vmul.f32 %v454, 0.2
      %v519 = vmul.f32 %v455, 0.2
      %v520 = vmul.f32 %v456, 0.2
      %v521 = vmul.f32 %v457, 0.2
      %v522 = vmul.f32 %v458, 0.2
      %v523 = vmul.f32 %v459, 0.2
      %v524 = vmul.f32 %v460, 0.2
      %v525 = vmul.f32 %v461, 0.2
      %v526 = vmul.f32 %v462, 0.2
      %v527 = vmul.f32 %v463, 0.2
      %v528 = vmul.f32 %v464, 0.2
      %v529 = vmul.f32 %v465, 0.2
      %v530 = vmul.f32 %v466, 0.2
      %v531 = vmul.f32 %v467, 0.2
      %v532 = vmul.f32 %v468, 0.2
      %v533 = vmul.f32 %v469, 0.2
      %v534 = vmul.f32 %v470, 0.2
      %v535 = vmul.f32 %v471, 0.2
      %v536 = vmul.f32 %v472, 0.2
      %v537 = vmul.f32 %v473, 0.2
      %v538 = vmul.f32 %v474, 0.2
      %v539 = vmul.f32 %v475, 0.2
      %v540 = vmul.f32 %v476, 0.2
      %v541 = vmul.f32 %v477, 0.2
      %v542 = vmul.f32 %v478, 0.2
      %v543 = vmul.f32 %v479, 0.2
      %v544 = vmul.f32 %v480, 0.2
      %v545 = vmul.f32 %v481, 0.2
      %v546 = vmul.f32 %v482, 0.2
      %v547 = vsel %vm483, %v451, %v515
      %v548 = vsel %vm484, %v452, %v516
      %v549 = vsel %vm485, %v453, %v517
      %v550 = vsel %vm486, %v454, %v518
      %v551 = vsel %vm487, %v455, %v519
      %v552 = vsel %vm488, %v456, %v520
      %v553 = vsel %vm489, %v457, %v521
      %v554 = vsel %vm490, %v458, %v522
      %v555 = vsel %vm491, %v459, %v523
      %v556 = vsel %vm492, %v460, %v524
      %v557 = vsel %vm493, %v461, %v525
      %v558 = vsel %vm494, %v462, %v526
      %v559 = vsel %vm495, %v463, %v527
      %v560 = vsel %vm496, %v464, %v528
      %v561 = vsel %vm497, %v465, %v529
      %v562 = vsel %vm498, %v466, %v530
      %v563 = vsel %vm499, %v467, %v531
      %v564 = vsel %vm500, %v468, %v532
      %v565 = vsel %vm501, %v469, %v533
      %v566 = vsel %vm502, %v470, %v534
      %v567 = vsel %vm503, %v471, %v535
      %v568 = vsel %vm504, %v472, %v536
      %v569 = vsel %vm505, %v473, %v537
      %v570 = vsel %vm506, %v474, %v538
      %v571 = vsel %vm507, %v475, %v539
      %v572 = vsel %vm508, %v476, %v540
      %v573 = vsel %vm509, %v477, %v541
      %v574 = vsel %vm510, %v478, %v542
      %v575 = vsel %vm511, %v479, %v543
      %v576 = vsel %vm512, %v480, %v544
      %v577 = vsel %vm513, %v481, %v545
      %v578 = vsel %vm514, %v482, %v546
      %v579 = vadd.f32 %v547, %v270
      %v580 = vadd.f32 %v548, %v271
      %v581 = vadd.f32 %v549, %v272
      %v582 = vadd.f32 %v550, %v273
      %v583 = vadd.f32 %v551, %v274
      %v584 = vadd.f32 %v552, %v275
      %v585 = vadd.f32 %v553, %v276
      %v586 = vadd.f32 %v554, %v277
      %v587 = vadd.f32 %v555, %v278
      %v588 = vadd.f32 %v556, %v279
      %v589 = vadd.f32 %v557, %v280
      %v590 = vadd.f32 %v558, %v281
      %v591 = vadd.f32 %v559, %v282
      %v592 = vadd.f32 %v560, %v283
      %v593 = vadd.f32 %v561, %v284
      %v594 = vadd.f32 %v562, %v285
      %v595 = vadd.f32 %v563, %v286
      %v596 = vadd.f32 %v564, %v287
      %v597 = vadd.f32 %v565, %v288
      %v598 = vadd.f32 %v566, %v289
      %v599 = vadd.f32 %v567, %v290
      %v600 = vadd.f32 %v568, %v291
      %v601 = vadd.f32 %v569, %v292
      %v602 = vadd.f32 %v570, %v293
      %v603 = vadd.f32 %v571, %v294
      %v604 = vadd.f32 %v572, %v295
      %v605 = vadd.f32 %v573, %v296
      %v606 = vadd.f32 %v574, %v297
      %v607 = vadd.f32 %v575, %v298
      %v608 = vadd.f32 %v576, %v299
      %v609 = vadd.f32 %v577, %v300
      %v610 = vadd.f32 %v578, %v301
      %v611 = vmax.f32 %v579, %v580
      %612 = vmax.xlane.f32.xlu0 %v611
      %v613 = vpop.xlane.xlu0 %612
      %v614 = vmax.f32 %v581, %v582
      %615 = vmax.xlane.f32.xlu0 %v614
      %v616 = vpop.xlane.xlu0 %615
      %v617 = vmax.f32 %v583, %v584
      %618 = vmax.xlane.f32.xlu0 %v617
      %v619 = vpop.xlane.xlu0 %618
      %v620 = vmax.f32 %v585, %v586
      %621 = vmax.xlane.f32.xlu0 %v620
      %v622 = vpop.xlane.xlu0 %621
      %v623 = vmax.f32 %v587, %v588
      %624 = vmax.xlane.f32.xlu0 %v623
      %v625 = vpop.xlane.xlu0 %624
      %v626 = vmax.f32 %v589, %v590
      %627 = vmax.xlane.f32.xlu0 %v626
      %v628 = vpop.xlane.xlu0 %627
      %v629 = vmax.f32 %v591, %v592
      %630 = vmax.xlane.f32.xlu0 %v629
      %v631 = vpop.xlane.xlu0 %630
      %v632 = vmax.f32 %v593, %v594
      %633 = vmax.xlane.f32.xlu0 %v632
      %v634 = vpop.xlane.xlu0 %633
      %v635 = vmax.f32 %v595, %v596
      %636 = vmax.xlane.f32.xlu0 %v635
      %v637 = vpop.xlane.xlu0 %636
      %v638 = vmax.f32 %v597, %v598
      %639 = vmax.xlane.f32.xlu0 %v638
      %v640 = vpop.xlane.xlu0 %639
      %v641 = vmax.f32 %v599, %v600
      %642 = vmax.xlane.f32.xlu0 %v641
      %v643 = vpop.xlane.xlu0 %642
      %v644 = vmax.f32 %v601, %v602
      %645 = vmax.xlane.f32.xlu0 %v644
      %v646 = vpop.xlane.xlu0 %645
      %v647 = vmax.f32 %v603, %v604
      %648 = vmax.xlane.f32.xlu0 %v647
      %v649 = vpop.xlane.xlu0 %648
      %v650 = vmax.f32 %v605, %v606
      %651 = vmax.xlane.f32.xlu0 %v650
      %v652 = vpop.xlane.xlu0 %651
      %v653 = vmax.f32 %v607, %v608
      %654 = vmax.xlane.f32.xlu0 %v653
      %v655 = vpop.xlane.xlu0 %654
      %v656 = vmax.f32 %v609, %v610
      %657 = vmax.xlane.f32.xlu0 %v656
      %v658 = vpop.xlane.xlu0 %657
      %v659 = vsub.f32 %v579, %v613
      %v660 = vsub.f32 %v580, %v613
      %v661 = vsub.f32 %v581, %v616
      %v662 = vsub.f32 %v582, %v616
      %v663 = vsub.f32 %v583, %v619
      %v664 = vsub.f32 %v584, %v619
      %v665 = vsub.f32 %v585, %v622
      %v666 = vsub.f32 %v586, %v622
      %v667 = vsub.f32 %v587, %v625
      %v668 = vsub.f32 %v588, %v625
      %v669 = vsub.f32 %v589, %v628
      %v670 = vsub.f32 %v590, %v628
      %v671 = vsub.f32 %v591, %v631
      %v672 = vsub.f32 %v592, %v631
      %v673 = vsub.f32 %v593, %v634
      %v674 = vsub.f32 %v594, %v634
      %v675 = vsub.f32 %v595, %v637
      %v676 = vsub.f32 %v596, %v637
      %v677 = vsub.f32 %v597, %v640
      %v678 = vsub.f32 %v598, %v640
      %v679 = vsub.f32 %v599, %v643
      %v680 = vsub.f32 %v600, %v643
      %v681 = vsub.f32 %v601, %v646
      %v682 = vsub.f32 %v602, %v646
      %v683 = vsub.f32 %v603, %v649
      %v684 = vsub.f32 %v604, %v649
      %v685 = vsub.f32 %v605, %v652
      %v686 = vsub.f32 %v606, %v652
      %v687 = vsub.f32 %v607, %v655
      %v688 = vsub.f32 %v608, %v655
      %v689 = vsub.f32 %v609, %v658
      %v690 = vsub.f32 %v610, %v658
      %v691 = vmul.f32 %v659, 1.442695
      %v692 = vpow.pop %v691
      %v693 = vmul.f32 %v660, 1.442695
      %v694 = vpow.pop %v693
      %v695 = vmul.f32 %v661, 1.442695
      %v696 = vpow.pop %v695
      %v697 = vmul.f32 %v662, 1.442695
      %v698 = vpow.pop %v697
      %v699 = vmul.f32 %v663, 1.442695
      %v700 = vpow.pop %v699
      %v701 = vmul.f32 %v664, 1.442695
      %v702 = vpow.pop %v701
      %v703 = vmul.f32 %v665, 1.442695
      %v704 = vpow.pop %v703
      %v705 = vmul.f32 %v666, 1.442695
      %v706 = vpow.pop %v705
      %v707 = vmul.f32 %v667, 1.442695
      %v708 = vpow.pop %v707
      %v709 = vmul.f32 %v668, 1.442695
      %v710 = vpow.pop %v709
      %v711 = vmul.f32 %v669, 1.442695
      %v712 = vpow.pop %v711
      %v713 = vmul.f32 %v670, 1.442695
      %v714 = vpow.pop %v713
      %v715 = vmul.f32 %v671, 1.442695
      %v716 = vpow.pop %v715
      %v717 = vmul.f32 %v672, 1.442695
      %v718 = vpow.pop %v717
      %v719 = vmul.f32 %v673, 1.442695
      %v720 = vpow.pop %v719
      %v721 = vmul.f32 %v674, 1.442695
      %v722 = vpow.pop %v721
      %v723 = vmul.f32 %v675, 1.442695
      %v724 = vpow.pop %v723
      %v725 = vmul.f32 %v676, 1.442695
      %v726 = vpow.pop %v725
      %v727 = vmul.f32 %v677, 1.442695
      %v728 = vpow.pop %v727
      %v729 = vmul.f32 %v678, 1.442695
      %v730 = vpow.pop %v729
      %v731 = vmul.f32 %v679, 1.442695
      %v732 = vpow.pop %v731
      %v733 = vmul.f32 %v680, 1.442695
      %v734 = vpow.pop %v733
      %v735 = vmul.f32 %v681, 1.442695
      %v736 = vpow.pop %v735
      %v737 = vmul.f32 %v682, 1.442695
      %v738 = vpow.pop %v737
      %v739 = vmul.f32 %v683, 1.442695
      %v740 = vpow.pop %v739
      %v741 = vmul.f32 %v684, 1.442695
      %v742 = vpow.pop %v741
      %v743 = vmul.f32 %v685, 1.442695
      %v744 = vpow.pop %v743
      %v745 = vmul.f32 %v686, 1.442695
      %v746 = vpow.pop %v745
      %v747 = vmul.f32 %v687, 1.442695
      %v748 = vpow.pop %v747
      %v749 = vmul.f32 %v688, 1.442695
      %v750 = vpow.pop %v749
      %v751 = vmul.f32 %v689, 1.442695
      %v752 = vpow.pop %v751
      %v753 = vmul.f32 %v690, 1.442695
      %v754 = vpow.pop %v753
      %v755 = vadd.f32 %v692, %v694
      %756 = vadd.xlane.f32.xlu0 %v755
      %v757 = vpop.xlane.xlu0 %756
      %v758 = vadd.f32 %v696, %v698
      %759 = vadd.xlane.f32.xlu0 %v758
      %v760 = vpop.xlane.xlu0 %759
      %v761 = vadd.f32 %v700, %v702
      %762 = vadd.xlane.f32.xlu0 %v761
      %v763 = vpop.xlane.xlu0 %762
      %v764 = vadd.f32 %v704, %v706
      %765 = vadd.xlane.f32.xlu0 %v764
      %v766 = vpop.xlane.xlu0 %765
      %v767 = vadd.f32 %v708, %v710
      %768 = vadd.xlane.f32.xlu0 %v767
      %v769 = vpop.xlane.xlu0 %768
      %v770 = vadd.f32 %v712, %v714
      %771 = vadd.xlane.f32.xlu0 %v770
      %v772 = vpop.xlane.xlu0 %771
      %v773 = vadd.f32 %v716, %v718
      %774 = vadd.xlane.f32.xlu0 %v773
      %v775 = vpop.xlane.xlu0 %774
      %v776 = vadd.f32 %v720, %v722
      %777 = vadd.xlane.f32.xlu0 %v776
      %v778 = vpop.xlane.xlu0 %777
      %v779 = vadd.f32 %v724, %v726
      %780 = vadd.xlane.f32.xlu0 %v779
      %v781 = vpop.xlane.xlu0 %780
      %v782 = vadd.f32 %v728, %v730
      %783 = vadd.xlane.f32.xlu0 %v782
      %v784 = vpop.xlane.xlu0 %783
      %v785 = vadd.f32 %v732, %v734
      %786 = vadd.xlane.f32.xlu0 %v785
      %v787 = vpop.xlane.xlu0 %786
      %v788 = vadd.f32 %v736, %v738
      %789 = vadd.xlane.f32.xlu0 %v788
      %v790 = vpop.xlane.xlu0 %789
      %v791 = vadd.f32 %v740, %v742
      %792 = vadd.xlane.f32.xlu0 %v791
      %v793 = vpop.xlane.xlu0 %792
      %v794 = vadd.f32 %v744, %v746
      %795 = vadd.xlane.f32.xlu0 %v794
      %v796 = vpop.xlane.xlu0 %795
      %v797 = vadd.f32 %v748, %v750
      %798 = vadd.xlane.f32.xlu0 %v797
      %v799 = vpop.xlane.xlu0 %798
      %v800 = vadd.f32 %v752, %v754
      %801 = vadd.xlane.f32.xlu0 %v800
      %v802 = vpop.xlane.xlu0 %801
      %v803 = vrcp.pop %v757
      %v804 = vrcp.pop %v760
      %v805 = vrcp.pop %v763
      %v806 = vrcp.pop %v766
      %v807 = vrcp.pop %v769
      %v808 = vrcp.pop %v772
      %v809 = vrcp.pop %v775
      %v810 = vrcp.pop %v778
      %v811 = vrcp.pop %v781
      %v812 = vrcp.pop %v784
      %v813 = vrcp.pop %v787
      %v814 = vrcp.pop %v790
      %v815 = vrcp.pop %v793
      %v816 = vrcp.pop %v796
      %v817 = vrcp.pop %v799
      %v818 = vrcp.pop %v802
      %v819 = vmul.f32 %v692, %v803
      %v820 = vmul.f32 %v694, %v803
      %v821 = vmul.f32 %v696, %v804
      %v822 = vmul.f32 %v698, %v804
      %v823 = vmul.f32 %v700, %v805
      %v824 = vmul.f32 %v702, %v805
      %v825 = vmul.f32 %v704, %v806
      %v826 = vmul.f32 %v706, %v806
      %v827 = vmul.f32 %v708, %v807
      %v828 = vmul.f32 %v710, %v807
      %v829 = vmul.f32 %v712, %v808
      %v830 = vmul.f32 %v714, %v808
      %v831 = vmul.f32 %v716, %v809
      %v832 = vmul.f32 %v718, %v809
      %v833 = vmul.f32 %v720, %v810
      %v834 = vmul.f32 %v722, %v810
      %v835 = vmul.f32 %v724, %v811
      %v836 = vmul.f32 %v726, %v811
      %v837 = vmul.f32 %v728, %v812
      %v838 = vmul.f32 %v730, %v812
      %v839 = vmul.f32 %v732, %v813
      %v840 = vmul.f32 %v734, %v813
      %v841 = vmul.f32 %v736, %v814
      %v842 = vmul.f32 %v738, %v814
      %v843 = vmul.f32 %v740, %v815
      %v844 = vmul.f32 %v742, %v815
      %v845 = vmul.f32 %v744, %v816
      %v846 = vmul.f32 %v746, %v816
      %v847 = vmul.f32 %v748, %v817
      %v848 = vmul.f32 %v750, %v817
      %v849 = vmul.f32 %v752, %v818
      %v850 = vmul.f32 %v754, %v818
      %v851 = vpack.c.bf16 %v821, %v819
      %v852 = vpack.c.bf16 %v822, %v820
      %v853 = vpack.c.bf16 %v825, %v823
      %v854 = vpack.c.bf16 %v826, %v824
      %v855 = vpack.c.bf16 %v829, %v827
      %v856 = vpack.c.bf16 %v830, %v828
      %v857 = vpack.c.bf16 %v833, %v831
      %v858 = vpack.c.bf16 %v834, %v832
      %v859 = vpack.c.bf16 %v837, %v835
      %v860 = vpack.c.bf16 %v838, %v836
      %v861 = vpack.c.bf16 %v841, %v839
      %v862 = vpack.c.bf16 %v842, %v840
      %v863 = vpack.c.bf16 %v845, %v843
      %v864 = vpack.c.bf16 %v846, %v844
      %v865 = vpack.c.bf16 %v849, %v847
      %v866 = vpack.c.bf16 %v850, %v848
      %v899 = vunpack.c.l.b16 %v302
      %v900 = vunpack.c.l.b16 %v303
      %v901 = vunpack.c.l.b16 %v304
      %v902 = vunpack.c.l.b16 %v305
      %v903 = vunpack.c.l.b16 %v306
      %v904 = vunpack.c.l.b16 %v307
      %v905 = vunpack.c.l.b16 %v308
      %v906 = vunpack.c.l.b16 %v309
      %v907 = vunpack.c.l.b16 %v310
      %v908 = vunpack.c.l.b16 %v311
      %v909 = vunpack.c.l.b16 %v312
      %v910 = vunpack.c.l.b16 %v313
      %v911 = vunpack.c.l.b16 %v314
      %v912 = vunpack.c.l.b16 %v315
      %v913 = vunpack.c.l.b16 %v316
      %v914 = vunpack.c.l.b16 %v317
      %v915 = vunpack.c.l.b16 %v318
      %v916 = vunpack.c.l.b16 %v319
      %v917 = vunpack.c.l.b16 %v320
      %v918 = vunpack.c.l.b16 %v321
      %v919 = vunpack.c.l.b16 %v322
      %v920 = vunpack.c.l.b16 %v323
      %v921 = vunpack.c.l.b16 %v324
      %v922 = vunpack.c.l.b16 %v325
      %v923 = vunpack.c.l.b16 %v326
      %v924 = vunpack.c.l.b16 %v327
      %v925 = vunpack.c.l.b16 %v328
      %v926 = vunpack.c.l.b16 %v329
      %v927 = vunpack.c.l.b16 %v330
      %v928 = vunpack.c.l.b16 %v331
      %v929 = vunpack.c.l.b16 %v332
      %v930 = vunpack.c.l.b16 %v333
      %v931 = vpack.c.b16 %v900, %v899
      %v932 = vpack.c.b16 %v902, %v901
      %v933 = vpack.c.b16 %v904, %v903
      %v934 = vpack.c.b16 %v906, %v905
      %v935 = vpack.c.b16 %v908, %v907
      %v936 = vpack.c.b16 %v910, %v909
      %v937 = vpack.c.b16 %v912, %v911
      %v938 = vpack.c.b16 %v914, %v913
      %v939 = vpack.c.b16 %v916, %v915
      %v940 = vpack.c.b16 %v918, %v917
      %v941 = vpack.c.b16 %v920, %v919
      %v942 = vpack.c.b16 %v922, %v921
      %v943 = vpack.c.b16 %v924, %v923
      %v944 = vpack.c.b16 %v926, %v925
      %v945 = vpack.c.b16 %v928, %v927
      %v946 = vpack.c.b16 %v930, %v929
      %963 = vmatprep.subr.bf16.mxu0 0
      %964 = vmatpush1.bf16.msra.mxu0 %v931
      %965 = vmatprep.subr.bf16.mxu0 0
      %966 = vmatpush1.bf16.msra.mxu0 %v932
      %967 = vmatprep.subr.bf16.mxu0 0
      %968 = vmatpush1.bf16.msra.mxu0 %v933
      %969 = vmatprep.subr.bf16.mxu0 0
      %970 = vmatpush1.bf16.msra.mxu0 %v934
      %971 = vmatprep.subr.bf16.mxu0 0
      %972 = vmatpush1.bf16.msra.mxu0 %v935
      %973 = vmatprep.subr.bf16.mxu0 0
      %974 = vmatpush1.bf16.msra.mxu0 %v936
      %975 = vmatprep.subr.bf16.mxu0 0
      %976 = vmatpush1.bf16.msra.mxu0 %v937
      %977 = vmatprep.subr.bf16.mxu0 0
      %978 = vmatpush1.bf16.msra.mxu0 %v938
      %979 = vmatprep.subr.bf16.mxu0 0
      %980 = vmatpush1.bf16.msra.mxu0 %v939
      %981 = vmatprep.subr.bf16.mxu0 0
      %982 = vmatpush1.bf16.msra.mxu0 %v940
      %983 = vmatprep.subr.bf16.mxu0 0
      %984 = vmatpush1.bf16.msra.mxu0 %v941
      %985 = vmatprep.subr.bf16.mxu0 0
      %986 = vmatpush1.bf16.msra.mxu0 %v942
      %987 = vmatprep.subr.bf16.mxu0 0
      %988 = vmatpush1.bf16.msra.mxu0 %v943
      %989 = vmatprep.subr.bf16.mxu0 0
      %990 = vmatpush1.bf16.msra.mxu0 %v944
      %991 = vmatprep.subr.bf16.mxu0 0
      %992 = vmatpush1.bf16.msra.mxu0 %v945
      %993 = vmatprep.subr.bf16.mxu0 0
      %994 = vmatpush1.bf16.msra.mxu0 %v946
      %995 = vmatprep.mubr.bf16.mxu0 %v852
      %996 = vmatmul.mubr.bf16.gmra.mrb[0].mxu0 %v851
      %v997 = vpop.f32.mrb[0].mxu0
      %v998 = vadd.f32 0.0, %v997
      %v999 = vpop.f32.mrb[0].mxu0
      %v1000 = vpop.f32.mrb[0].mxu0
      %v1001 = vadd.f32 0.0, %v1000
      %v1002 = vpop.f32.mrb[0].mxu0
      %1003 = vmatprep.mubr.bf16.mxu0 %v854
      %1004 = vmatmul.mubr.bf16.gmra.mrb[0].mxu0 %v853
      %v1005 = vpop.f32.mrb[0].mxu0
      %v1006 = vadd.f32 0.0, %v1005
      %v1007 = vpop.f32.mrb[0].mxu0
      %v1008 = vpop.f32.mrb[0].mxu0
      %v1009 = vadd.f32 0.0, %v1008
      %v1010 = vpop.f32.mrb[0].mxu0
      %1011 = vmatprep.mubr.bf16.mxu0 %v856
      %1012 = vmatmul.mubr.bf16.gmra.mrb[0].mxu0 %v855
      %v1013 = vpop.f32.mrb[0].mxu0
      %v1014 = vadd.f32 0.0, %v1013
      %v1015 = vpop.f32.mrb[0].mxu0
      %v1016 = vpop.f32.mrb[0].mxu0
      %v1017 = vadd.f32 0.0, %v1016
      %v1018 = vpop.f32.mrb[0].mxu0
      %1019 = vmatprep.mubr.bf16.mxu0 %v858
      %1020 = vmatmul.mubr.bf16.gmra.mrb[0].mxu0 %v857
      %v1021 = vpop.f32.mrb[0].mxu0
      %v1022 = vadd.f32 0.0, %v1021
      %v1023 = vpop.f32.mrb[0].mxu0
      %v1024 = vpop.f32.mrb[0].mxu0
      %v1025 = vadd.f32 0.0, %v1024
      %v1026 = vpop.f32.mrb[0].mxu0
      %1027 = vmatprep.mubr.bf16.mxu0 %v860
      %1028 = vmatmul.mubr.bf16.gmra.mrb[0].mxu0 %v859
      %v1029 = vpop.f32.mrb[0].mxu0
      %v1030 = vadd.f32 0.0, %v1029
      %v1031 = vpop.f32.mrb[0].mxu0
      %v1032 = vpop.f32.mrb[0].mxu0
      %v1033 = vadd.f32 0.0, %v1032
      %v1034 = vpop.f32.mrb[0].mxu0
      %1035 = vmatprep.mubr.bf16.mxu0 %v862
      %1036 = vmatmul.mubr.bf16.gmra.mrb[0].mxu0 %v861
      %v1037 = vpop.f32.mrb[0].mxu0
      %v1038 = vadd.f32 0.0, %v1037
      %v1039 = vpop.f32.mrb[0].mxu0
      %v1040 = vpop.f32.mrb[0].mxu0
      %v1041 = vadd.f32 0.0, %v1040
      %v1042 = vpop.f32.mrb[0].mxu0
      %1043 = vmatprep.mubr.bf16.mxu0 %v864
      %1044 = vmatmul.mubr.bf16.gmra.mrb[0].mxu0 %v863
      %v1045 = vpop.f32.mrb[0].mxu0
      %v1046 = vadd.f32 0.0, %v1045
      %v1047 = vpop.f32.mrb[0].mxu0
      %v1048 = vpop.f32.mrb[0].mxu0
      %v1049 = vadd.f32 0.0, %v1048
      %v1050 = vpop.f32.mrb[0].mxu0
      %1051 = vmatprep.mubr.bf16.mxu0 %v866
      %1052 = vmatmul.mubr.bf16.gmra.mrb[0].mxu0 %v865
      %v1053 = vpop.f32.mrb[0].mxu0
      %v1054 = vadd.f32 0.0, %v1053
      %v1055 = vpop.f32.mrb[0].mxu0
      %v1056 = vpop.f32.mrb[0].mxu0
      %v1057 = vadd.f32 0.0, %v1056
      %v1058 = vpop.f32.mrb[0].mxu0
      %1059 = vdwg.mxu0
      %1060 = vset.pattern.permute.xlu0 5
      %1061 = vperm.xlu0 %1060, %v335
      %v1062 = vpop.permute.xlu0 %1061
      %1064 = vset.pattern.permute.xlu0 5
      %1065 = vperm.xlu0 %1064, %v336
      %v1066 = vpop.permute.xlu0 %1065
      %1068 = vset.pattern.permute.xlu0 5
      %1069 = vperm.xlu0 %1068, %v337
      %v1070 = vpop.permute.xlu0 %1069
      %1072 = vset.pattern.permute.xlu0 5
      %1073 = vperm.xlu0 %1072, %v338
      %v1074 = vpop.permute.xlu0 %1073
      %1076 = vset.pattern.permute.xlu0 5
      %1077 = vperm.xlu0 %1076, %v339
      %v1078 = vpop.permute.xlu0 %1077
      %1080 = vset.pattern.permute.xlu0 5
      %1081 = vperm.xlu0 %1080, %v340
      %v1082 = vpop.permute.xlu0 %1081
      %1084 = vset.pattern.permute.xlu0 5
      %1085 = vperm.xlu0 %1084, %v341
      %v1086 = vpop.permute.xlu0 %1085
      %1088 = vset.pattern.permute.xlu0 5
      %1089 = vperm.xlu0 %1088, %v342
      %v1090 = vpop.permute.xlu0 %1089
      %1092 = vset.pattern.permute.xlu0 5
      %1093 = vperm.xlu0 %1092, %v343
      %v1094 = vpop.permute.xlu0 %1093
      %1096 = vset.pattern.permute.xlu0 5
      %1097 = vperm.xlu0 %1096, %v344
      %v1098 = vpop.permute.xlu0 %1097
      %1100 = vset.pattern.permute.xlu0 5
      %1101 = vperm.xlu0 %1100, %v345
      %v1102 = vpop.permute.xlu0 %1101
      %1104 = vset.pattern.permute.xlu0 5
      %1105 = vperm.xlu0 %1104, %v346
      %v1106 = vpop.permute.xlu0 %1105
      %1108 = vset.pattern.permute.xlu0 5
      %1109 = vperm.xlu0 %1108, %v347
      %v1110 = vpop.permute.xlu0 %1109
      %1112 = vset.pattern.permute.xlu0 5
      %1113 = vperm.xlu0 %1112, %v348
      %v1114 = vpop.permute.xlu0 %1113
      %1116 = vset.pattern.permute.xlu0 5
      %1117 = vperm.xlu0 %1116, %v349
      %v1118 = vpop.permute.xlu0 %1117
      %1120 = vset.pattern.permute.xlu0 5
      %1121 = vperm.xlu0 %1120, %v350
      %v1122 = vpop.permute.xlu0 %1121
      %v1124 = vlaneseq
      %v1125 = vshrl.u32 %v1124, 7
      %v1126 = vsub.s32 1, %v1125
      %v1127 = vrot.slane %v334, %v1126
      %v1128 = vlaneseq
      %v1129 = vshrl.u32 %v1128, 7
      %v1130 = vsub.s32 5, %v1129
      %v1131 = vrot.slane %v334, %v1130
      %v1134 = vlaneseq
      %v1135 = vshrl.u32 %v1134, 7
      %v1136 = vsub.s32 1, %v1135
      %v1137 = vrot.slane %v1127, %v1136
      %v1138 = vlaneseq
      %v1139 = vshrl.u32 %v1138, 7
      %v1140 = vsub.s32 1, %v1139
      %v1141 = vrot.slane %v1131, %v1140
      %v1142 = vadd.f32 %v1062, %v1137
      %v1143 = vadd.f32 %v1062, %v1141
      %v1144 = vadd.f32 %v1066, %v1137
      %v1145 = vadd.f32 %v1066, %v1141
      %v1146 = vadd.f32 %v1070, %v1137
      %v1147 = vadd.f32 %v1070, %v1141
      %v1148 = vadd.f32 %v1074, %v1137
      %v1149 = vadd.f32 %v1074, %v1141
      %v1150 = vadd.f32 %v1078, %v1137
      %v1151 = vadd.f32 %v1078, %v1141
      %v1152 = vadd.f32 %v1082, %v1137
      %v1153 = vadd.f32 %v1082, %v1141
      %v1154 = vadd.f32 %v1086, %v1137
      %v1155 = vadd.f32 %v1086, %v1141
      %v1156 = vadd.f32 %v1090, %v1137
      %v1157 = vadd.f32 %v1090, %v1141
      %v1158 = vadd.f32 %v1094, %v1137
      %v1159 = vadd.f32 %v1094, %v1141
      %v1160 = vadd.f32 %v1098, %v1137
      %v1161 = vadd.f32 %v1098, %v1141
      %v1162 = vadd.f32 %v1102, %v1137
      %v1163 = vadd.f32 %v1102, %v1141
      %v1164 = vadd.f32 %v1106, %v1137
      %v1165 = vadd.f32 %v1106, %v1141
      %v1166 = vadd.f32 %v1110, %v1137
      %v1167 = vadd.f32 %v1110, %v1141
      %v1168 = vadd.f32 %v1114, %v1137
      %v1169 = vadd.f32 %v1114, %v1141
      %v1170 = vadd.f32 %v1118, %v1137
      %v1171 = vadd.f32 %v1118, %v1141
      %v1172 = vadd.f32 %v1122, %v1137
      %v1173 = vadd.f32 %v1122, %v1141
      %vm1174 = vcmp.ge.f32.partialorder %v1142, 0.0
      %vm1175 = vcmp.ge.f32.partialorder %v1143, 0.0
      %vm1176 = vcmp.ge.f32.partialorder %v1144, 0.0
      %vm1177 = vcmp.ge.f32.partialorder %v1145, 0.0
      %vm1178 = vcmp.ge.f32.partialorder %v1146, 0.0
      %vm1179 = vcmp.ge.f32.partialorder %v1147, 0.0
      %vm1180 = vcmp.ge.f32.partialorder %v1148, 0.0
      %vm1181 = vcmp.ge.f32.partialorder %v1149, 0.0
      %vm1182 = vcmp.ge.f32.partialorder %v1150, 0.0
      %vm1183 = vcmp.ge.f32.partialorder %v1151, 0.0
      %vm1184 = vcmp.ge.f32.partialorder %v1152, 0.0
      %vm1185 = vcmp.ge.f32.partialorder %v1153, 0.0
      %vm1186 = vcmp.ge.f32.partialorder %v1154, 0.0
      %vm1187 = vcmp.ge.f32.partialorder %v1155, 0.0
      %vm1188 = vcmp.ge.f32.partialorder %v1156, 0.0
      %vm1189 = vcmp.ge.f32.partialorder %v1157, 0.0
      %vm1190 = vcmp.ge.f32.partialorder %v1158, 0.0
      %vm1191 = vcmp.ge.f32.partialorder %v1159, 0.0
      %vm1192 = vcmp.ge.f32.partialorder %v1160, 0.0
      %vm1193 = vcmp.ge.f32.partialorder %v1161, 0.0
      %vm1194 = vcmp.ge.f32.partialorder %v1162, 0.0
      %vm1195 = vcmp.ge.f32.partialorder %v1163, 0.0
      %vm1196 = vcmp.ge.f32.partialorder %v1164, 0.0
      %vm1197 = vcmp.ge.f32.partialorder %v1165, 0.0
      %vm1198 = vcmp.ge.f32.partialorder %v1166, 0.0
      %vm1199 = vcmp.ge.f32.partialorder %v1167, 0.0
      %vm1200 = vcmp.ge.f32.partialorder %v1168, 0.0
      %vm1201 = vcmp.ge.f32.partialorder %v1169, 0.0
      %vm1202 = vcmp.ge.f32.partialorder %v1170, 0.0
      %vm1203 = vcmp.ge.f32.partialorder %v1171, 0.0
      %vm1204 = vcmp.ge.f32.partialorder %v1172, 0.0
      %vm1205 = vcmp.ge.f32.partialorder %v1173, 0.0
      %v1206 = vmul.f32 %v1142, 0.2
      %v1207 = vmul.f32 %v1143, 0.2
      %v1208 = vmul.f32 %v1144, 0.2
      %v1209 = vmul.f32 %v1145, 0.2
      %v1210 = vmul.f32 %v1146, 0.2
      %v1211 = vmul.f32 %v1147, 0.2
      %v1212 = vmul.f32 %v1148, 0.2
      %v1213 = vmul.f32 %v1149, 0.2
      %v1214 = vmul.f32 %v1150, 0.2
      %v1215 = vmul.f32 %v1151, 0.2
      %v1216 = vmul.f32 %v1152, 0.2
      %v1217 = vmul.f32 %v1153, 0.2
      %v1218 = vmul.f32 %v1154, 0.2
      %v1219 = vmul.f32 %v1155, 0.2
      %v1220 = vmul.f32 %v1156, 0.2
      %v1221 = vmul.f32 %v1157, 0.2
      %v1222 = vmul.f32 %v1158, 0.2
      %v1223 = vmul.f32 %v1159, 0.2
      %v1224 = vmul.f32 %v1160, 0.2
      %v1225 = vmul.f32 %v1161, 0.2
      %v1226 = vmul.f32 %v1162, 0.2
      %v1227 = vmul.f32 %v1163, 0.2
      %v1228 = vmul.f32 %v1164, 0.2
      %v1229 = vmul.f32 %v1165, 0.2
      %v1230 = vmul.f32 %v1166, 0.2
      %v1231 = vmul.f32 %v1167, 0.2
      %v1232 = vmul.f32 %v1168, 0.2
      %v1233 = vmul.f32 %v1169, 0.2
      %v1234 = vmul.f32 %v1170, 0.2
      %v1235 = vmul.f32 %v1171, 0.2
      %v1236 = vmul.f32 %v1172, 0.2
      %v1237 = vmul.f32 %v1173, 0.2
      %v1238 = vsel %vm1174, %v1142, %v1206
      %v1239 = vsel %vm1175, %v1143, %v1207
      %v1240 = vsel %vm1176, %v1144, %v1208
      %v1241 = vsel %vm1177, %v1145, %v1209
      %v1242 = vsel %vm1178, %v1146, %v1210
      %v1243 = vsel %vm1179, %v1147, %v1211
      %v1244 = vsel %vm1180, %v1148, %v1212
      %v1245 = vsel %vm1181, %v1149, %v1213
      %v1246 = vsel %vm1182, %v1150, %v1214
      %v1247 = vsel %vm1183, %v1151, %v1215
      %v1248 = vsel %vm1184, %v1152, %v1216
      %v1249 = vsel %vm1185, %v1153, %v1217
      %v1250 = vsel %vm1186, %v1154, %v1218
      %v1251 = vsel %vm1187, %v1155, %v1219
      %v1252 = vsel %vm1188, %v1156, %v1220
      %v1253 = vsel %vm1189, %v1157, %v1221
      %v1254 = vsel %vm1190, %v1158, %v1222
      %v1255 = vsel %vm1191, %v1159, %v1223
      %v1256 = vsel %vm1192, %v1160, %v1224
      %v1257 = vsel %vm1193, %v1161, %v1225
      %v1258 = vsel %vm1194, %v1162, %v1226
      %v1259 = vsel %vm1195, %v1163, %v1227
      %v1260 = vsel %vm1196, %v1164, %v1228
      %v1261 = vsel %vm1197, %v1165, %v1229
      %v1262 = vsel %vm1198, %v1166, %v1230
      %v1263 = vsel %vm1199, %v1167, %v1231
      %v1264 = vsel %vm1200, %v1168, %v1232
      %v1265 = vsel %vm1201, %v1169, %v1233
      %v1266 = vsel %vm1202, %v1170, %v1234
      %v1267 = vsel %vm1203, %v1171, %v1235
      %v1268 = vsel %vm1204, %v1172, %v1236
      %v1269 = vsel %vm1205, %v1173, %v1237
      %v1270 = vadd.f32 %v1238, %v270
      %v1271 = vadd.f32 %v1239, %v271
      %v1272 = vadd.f32 %v1240, %v272
      %v1273 = vadd.f32 %v1241, %v273
      %v1274 = vadd.f32 %v1242, %v274
      %v1275 = vadd.f32 %v1243, %v275
      %v1276 = vadd.f32 %v1244, %v276
      %v1277 = vadd.f32 %v1245, %v277
      %v1278 = vadd.f32 %v1246, %v278
      %v1279 = vadd.f32 %v1247, %v279
      %v1280 = vadd.f32 %v1248, %v280
      %v1281 = vadd.f32 %v1249, %v281
      %v1282 = vadd.f32 %v1250, %v282
      %v1283 = vadd.f32 %v1251, %v283
      %v1284 = vadd.f32 %v1252, %v284
      %v1285 = vadd.f32 %v1253, %v285
      %v1286 = vadd.f32 %v1254, %v286
      %v1287 = vadd.f32 %v1255, %v287
      %v1288 = vadd.f32 %v1256, %v288
      %v1289 = vadd.f32 %v1257, %v289
      %v1290 = vadd.f32 %v1258, %v290
      %v1291 = vadd.f32 %v1259, %v291
      %v1292 = vadd.f32 %v1260, %v292
      %v1293 = vadd.f32 %v1261, %v293
      %v1294 = vadd.f32 %v1262, %v294
      %v1295 = vadd.f32 %v1263, %v295
      %v1296 = vadd.f32 %v1264, %v296
      %v1297 = vadd.f32 %v1265, %v297
      %v1298 = vadd.f32 %v1266, %v298
      %v1299 = vadd.f32 %v1267, %v299
      %v1300 = vadd.f32 %v1268, %v300
      %v1301 = vadd.f32 %v1269, %v301
      %v1302 = vmax.f32 %v1270, %v1271
      %1303 = vmax.xlane.f32.xlu0 %v1302
      %v1304 = vpop.xlane.xlu0 %1303
      %v1305 = vmax.f32 %v1272, %v1273
      %1306 = vmax.xlane.f32.xlu0 %v1305
      %v1307 = vpop.xlane.xlu0 %1306
      %v1308 = vmax.f32 %v1274, %v1275
      %1309 = vmax.xlane.f32.xlu0 %v1308
      %v1310 = vpop.xlane.xlu0 %1309
      %v1311 = vmax.f32 %v1276, %v1277
      %1312 = vmax.xlane.f32.xlu0 %v1311
      %v1313 = vpop.xlane.xlu0 %1312
      %v1314 = vmax.f32 %v1278, %v1279
      %1315 = vmax.xlane.f32.xlu0 %v1314
      %v1316 = vpop.xlane.xlu0 %1315
      %v1317 = vmax.f32 %v1280, %v1281
      %1318 = vmax.xlane.f32.xlu0 %v1317
      %v1319 = vpop.xlane.xlu0 %1318
      %v1320 = vmax.f32 %v1282, %v1283
      %1321 = vmax.xlane.f32.xlu0 %v1320
      %v1322 = vpop.xlane.xlu0 %1321
      %v1323 = vmax.f32 %v1284, %v1285
      %1324 = vmax.xlane.f32.xlu0 %v1323
      %v1325 = vpop.xlane.xlu0 %1324
      %v1326 = vmax.f32 %v1286, %v1287
      %1327 = vmax.xlane.f32.xlu0 %v1326
      %v1328 = vpop.xlane.xlu0 %1327
      %v1329 = vmax.f32 %v1288, %v1289
      %1330 = vmax.xlane.f32.xlu0 %v1329
      %v1331 = vpop.xlane.xlu0 %1330
      %v1332 = vmax.f32 %v1290, %v1291
      %1333 = vmax.xlane.f32.xlu0 %v1332
      %v1334 = vpop.xlane.xlu0 %1333
      %v1335 = vmax.f32 %v1292, %v1293
      %1336 = vmax.xlane.f32.xlu0 %v1335
      %v1337 = vpop.xlane.xlu0 %1336
      %v1338 = vmax.f32 %v1294, %v1295
      %1339 = vmax.xlane.f32.xlu0 %v1338
      %v1340 = vpop.xlane.xlu0 %1339
      %v1341 = vmax.f32 %v1296, %v1297
      %1342 = vmax.xlane.f32.xlu0 %v1341
      %v1343 = vpop.xlane.xlu0 %1342
      %v1344 = vmax.f32 %v1298, %v1299
      %1345 = vmax.xlane.f32.xlu0 %v1344
      %v1346 = vpop.xlane.xlu0 %1345
      %v1347 = vmax.f32 %v1300, %v1301
      %1348 = vmax.xlane.f32.xlu0 %v1347
      %v1349 = vpop.xlane.xlu0 %1348
      %v1350 = vsub.f32 %v1270, %v1304
      %v1351 = vsub.f32 %v1271, %v1304
      %v1352 = vsub.f32 %v1272, %v1307
      %v1353 = vsub.f32 %v1273, %v1307
      %v1354 = vsub.f32 %v1274, %v1310
      %v1355 = vsub.f32 %v1275, %v1310
      %v1356 = vsub.f32 %v1276, %v1313
      %v1357 = vsub.f32 %v1277, %v1313
      %v1358 = vsub.f32 %v1278, %v1316
      %v1359 = vsub.f32 %v1279, %v1316
      %v1360 = vsub.f32 %v1280, %v1319
      %v1361 = vsub.f32 %v1281, %v1319
      %v1362 = vsub.f32 %v1282, %v1322
      %v1363 = vsub.f32 %v1283, %v1322
      %v1364 = vsub.f32 %v1284, %v1325
      %v1365 = vsub.f32 %v1285, %v1325
      %v1366 = vsub.f32 %v1286, %v1328
      %v1367 = vsub.f32 %v1287, %v1328
      %v1368 = vsub.f32 %v1288, %v1331
      %v1369 = vsub.f32 %v1289, %v1331
      %v1370 = vsub.f32 %v1290, %v1334
      %v1371 = vsub.f32 %v1291, %v1334
      %v1372 = vsub.f32 %v1292, %v1337
      %v1373 = vsub.f32 %v1293, %v1337
      %v1374 = vsub.f32 %v1294, %v1340
      %v1375 = vsub.f32 %v1295, %v1340
      %v1376 = vsub.f32 %v1296, %v1343
      %v1377 = vsub.f32 %v1297, %v1343
      %v1378 = vsub.f32 %v1298, %v1346
      %v1379 = vsub.f32 %v1299, %v1346
      %v1380 = vsub.f32 %v1300, %v1349
      %v1381 = vsub.f32 %v1301, %v1349
      %v1382 = vmul.f32 %v1350, 1.442695
      %v1383 = vpow.pop %v1382
      %v1384 = vmul.f32 %v1351, 1.442695
      %v1385 = vpow.pop %v1384
      %v1386 = vmul.f32 %v1352, 1.442695
      %v1387 = vpow.pop %v1386
      %v1388 = vmul.f32 %v1353, 1.442695
      %v1389 = vpow.pop %v1388
      %v1390 = vmul.f32 %v1354, 1.442695
      %v1391 = vpow.pop %v1390
      %v1392 = vmul.f32 %v1355, 1.442695
      %v1393 = vpow.pop %v1392
      %v1394 = vmul.f32 %v1356, 1.442695
      %v1395 = vpow.pop %v1394
      %v1396 = vmul.f32 %v1357, 1.442695
      %v1397 = vpow.pop %v1396
      %v1398 = vmul.f32 %v1358, 1.442695
      %v1399 = vpow.pop %v1398
      %v1400 = vmul.f32 %v1359, 1.442695
      %v1401 = vpow.pop %v1400
      %v1402 = vmul.f32 %v1360, 1.442695
      %v1403 = vpow.pop %v1402
      %v1404 = vmul.f32 %v1361, 1.442695
      %v1405 = vpow.pop %v1404
      %v1406 = vmul.f32 %v1362, 1.442695
      %v1407 = vpow.pop %v1406
      %v1408 = vmul.f32 %v1363, 1.442695
      %v1409 = vpow.pop %v1408
      %v1410 = vmul.f32 %v1364, 1.442695
      %v1411 = vpow.pop %v1410
      %v1412 = vmul.f32 %v1365, 1.442695
      %v1413 = vpow.pop %v1412
      %v1414 = vmul.f32 %v1366, 1.442695
      %v1415 = vpow.pop %v1414
      %v1416 = vmul.f32 %v1367, 1.442695
      %v1417 = vpow.pop %v1416
      %v1418 = vmul.f32 %v1368, 1.442695
      %v1419 = vpow.pop %v1418
      %v1420 = vmul.f32 %v1369, 1.442695
      %v1421 = vpow.pop %v1420
      %v1422 = vmul.f32 %v1370, 1.442695
      %v1423 = vpow.pop %v1422
      %v1424 = vmul.f32 %v1371, 1.442695
      %v1425 = vpow.pop %v1424
      %v1426 = vmul.f32 %v1372, 1.442695
      %v1427 = vpow.pop %v1426
      %v1428 = vmul.f32 %v1373, 1.442695
      %v1429 = vpow.pop %v1428
      %v1430 = vmul.f32 %v1374, 1.442695
      %v1431 = vpow.pop %v1430
      %v1432 = vmul.f32 %v1375, 1.442695
      %v1433 = vpow.pop %v1432
      %v1434 = vmul.f32 %v1376, 1.442695
      %v1435 = vpow.pop %v1434
      %v1436 = vmul.f32 %v1377, 1.442695
      %v1437 = vpow.pop %v1436
      %v1438 = vmul.f32 %v1378, 1.442695
      %v1439 = vpow.pop %v1438
      %v1440 = vmul.f32 %v1379, 1.442695
      %v1441 = vpow.pop %v1440
      %v1442 = vmul.f32 %v1380, 1.442695
      %v1443 = vpow.pop %v1442
      %v1444 = vmul.f32 %v1381, 1.442695
      %v1445 = vpow.pop %v1444
      %v1446 = vadd.f32 %v1383, %v1385
      %1447 = vadd.xlane.f32.xlu0 %v1446
      %v1448 = vpop.xlane.xlu0 %1447
      %v1449 = vadd.f32 %v1387, %v1389
      %1450 = vadd.xlane.f32.xlu0 %v1449
      %v1451 = vpop.xlane.xlu0 %1450
      %v1452 = vadd.f32 %v1391, %v1393
      %1453 = vadd.xlane.f32.xlu0 %v1452
      %v1454 = vpop.xlane.xlu0 %1453
      %v1455 = vadd.f32 %v1395, %v1397
      %1456 = vadd.xlane.f32.xlu0 %v1455
      %v1457 = vpop.xlane.xlu0 %1456
      %v1458 = vadd.f32 %v1399, %v1401
      %1459 = vadd.xlane.f32.xlu0 %v1458
      %v1460 = vpop.xlane.xlu0 %1459
      %v1461 = vadd.f32 %v1403, %v1405
      %1462 = vadd.xlane.f32.xlu0 %v1461
      %v1463 = vpop.xlane.xlu0 %1462
      %v1464 = vadd.f32 %v1407, %v1409
      %1465 = vadd.xlane.f32.xlu0 %v1464
      %v1466 = vpop.xlane.xlu0 %1465
      %v1467 = vadd.f32 %v1411, %v1413
      %1468 = vadd.xlane.f32.xlu0 %v1467
      %v1469 = vpop.xlane.xlu0 %1468
      %v1470 = vadd.f32 %v1415, %v1417
      %1471 = vadd.xlane.f32.xlu0 %v1470
      %v1472 = vpop.xlane.xlu0 %1471
      %v1473 = vadd.f32 %v1419, %v1421
      %1474 = vadd.xlane.f32.xlu0 %v1473
      %v1475 = vpop.xlane.xlu0 %1474
      %v1476 = vadd.f32 %v1423, %v1425
      %1477 = vadd.xlane.f32.xlu0 %v1476
      %v1478 = vpop.xlane.xlu0 %1477
      %v1479 = vadd.f32 %v1427, %v1429
      %1480 = vadd.xlane.f32.xlu0 %v1479
      %v1481 = vpop.xlane.xlu0 %1480
      %v1482 = vadd.f32 %v1431, %v1433
      %1483 = vadd.xlane.f32.xlu0 %v1482
      %v1484 = vpop.xlane.xlu0 %1483
      %v1485 = vadd.f32 %v1435, %v1437
      %1486 = vadd.xlane.f32.xlu0 %v1485
      %v1487 = vpop.xlane.xlu0 %1486
      %v1488 = vadd.f32 %v1439, %v1441
      %1489 = vadd.xlane.f32.xlu0 %v1488
      %v1490 = vpop.xlane.xlu0 %1489
      %v1491 = vadd.f32 %v1443, %v1445
      %1492 = vadd.xlane.f32.xlu0 %v1491
      %v1493 = vpop.xlane.xlu0 %1492
      %v1494 = vrcp.pop %v1448
      %v1495 = vrcp.pop %v1451
      %v1496 = vrcp.pop %v1454
      %v1497 = vrcp.pop %v1457
      %v1498 = vrcp.pop %v1460
      %v1499 = vrcp.pop %v1463
      %v1500 = vrcp.pop %v1466
      %v1501 = vrcp.pop %v1469
      %v1502 = vrcp.pop %v1472
      %v1503 = vrcp.pop %v1475
      %v1504 = vrcp.pop %v1478
      %v1505 = vrcp.pop %v1481
      %v1506 = vrcp.pop %v1484
      %v1507 = vrcp.pop %v1487
      %v1508 = vrcp.pop %v1490
      %v1509 = vrcp.pop %v1493
      %v1510 = vmul.f32 %v1383, %v1494
      %v1511 = vmul.f32 %v1385, %v1494
      %v1512 = vmul.f32 %v1387, %v1495
      %v1513 = vmul.f32 %v1389, %v1495
      %v1514 = vmul.f32 %v1391, %v1496
      %v1515 = vmul.f32 %v1393, %v1496
      %v1516 = vmul.f32 %v1395, %v1497
      %v1517 = vmul.f32 %v1397, %v1497
      %v1518 = vmul.f32 %v1399, %v1498
      %v1519 = vmul.f32 %v1401, %v1498
      %v1520 = vmul.f32 %v1403, %v1499
      %v1521 = vmul.f32 %v1405, %v1499
      %v1522 = vmul.f32 %v1407, %v1500
      %v1523 = vmul.f32 %v1409, %v1500
      %v1524 = vmul.f32 %v1411, %v1501
      %v1525 = vmul.f32 %v1413, %v1501
      %v1526 = vmul.f32 %v1415, %v1502
      %v1527 = vmul.f32 %v1417, %v1502
      %v1528 = vmul.f32 %v1419, %v1503
      %v1529 = vmul.f32 %v1421, %v1503
      %v1530 = vmul.f32 %v1423, %v1504
      %v1531 = vmul.f32 %v1425, %v1504
      %v1532 = vmul.f32 %v1427, %v1505
      %v1533 = vmul.f32 %v1429, %v1505
      %v1534 = vmul.f32 %v1431, %v1506
      %v1535 = vmul.f32 %v1433, %v1506
      %v1536 = vmul.f32 %v1435, %v1507
      %v1537 = vmul.f32 %v1437, %v1507
      %v1538 = vmul.f32 %v1439, %v1508
      %v1539 = vmul.f32 %v1441, %v1508
      %v1540 = vmul.f32 %v1443, %v1509
      %v1541 = vmul.f32 %v1445, %v1509
      %v1542 = vpack.c.bf16 %v1512, %v1510
      %v1543 = vpack.c.bf16 %v1513, %v1511
      %v1544 = vpack.c.bf16 %v1516, %v1514
      %v1545 = vpack.c.bf16 %v1517, %v1515
      %v1546 = vpack.c.bf16 %v1520, %v1518
      %v1547 = vpack.c.bf16 %v1521, %v1519
      %v1548 = vpack.c.bf16 %v1524, %v1522
      %v1549 = vpack.c.bf16 %v1525, %v1523
      %v1550 = vpack.c.bf16 %v1528, %v1526
      %v1551 = vpack.c.bf16 %v1529, %v1527
      %v1552 = vpack.c.bf16 %v1532, %v1530
      %v1553 = vpack.c.bf16 %v1533, %v1531
      %v1554 = vpack.c.bf16 %v1536, %v1534
      %v1555 = vpack.c.bf16 %v1537, %v1535
      %v1556 = vpack.c.bf16 %v1540, %v1538
      %v1557 = vpack.c.bf16 %v1541, %v1539
      %1558 = vrot.lane.b32.xlu0 %v931, 112
      %v1559 = vpop.permute.xlu0 %1558
      %1560 = vrot.lane.b32.xlu0 %v932, 112
      %v1561 = vpop.permute.xlu0 %1560
      %1562 = vrot.lane.b32.xlu0 %v933, 112
      %v1563 = vpop.permute.xlu0 %1562
      %1564 = vrot.lane.b32.xlu0 %v934, 112
      %v1565 = vpop.permute.xlu0 %1564
      %1566 = vrot.lane.b32.xlu0 %v935, 112
      %v1567 = vpop.permute.xlu0 %1566
      %1568 = vrot.lane.b32.xlu0 %v936, 112
      %v1569 = vpop.permute.xlu0 %1568
      %1570 = vrot.lane.b32.xlu0 %v937, 112
      %v1571 = vpop.permute.xlu0 %1570
      %1572 = vrot.lane.b32.xlu0 %v938, 112
      %v1573 = vpop.permute.xlu0 %1572
      %1574 = vrot.lane.b32.xlu0 %v939, 112
      %v1575 = vpop.permute.xlu0 %1574
      %1576 = vrot.lane.b32.xlu0 %v940, 112
      %v1577 = vpop.permute.xlu0 %1576
      %1578 = vrot.lane.b32.xlu0 %v941, 112
      %v1579 = vpop.permute.xlu0 %1578
      %1580 = vrot.lane.b32.xlu0 %v942, 112
      %v1581 = vpop.permute.xlu0 %1580
      %1582 = vrot.lane.b32.xlu0 %v943, 112
      %v1583 = vpop.permute.xlu0 %1582
      %1584 = vrot.lane.b32.xlu0 %v944, 112
      %v1585 = vpop.permute.xlu0 %1584
      %1586 = vrot.lane.b32.xlu0 %v945, 112
      %v1587 = vpop.permute.xlu0 %1586
      %1588 = vrot.lane.b32.xlu0 %v946, 112
      %v1589 = vpop.permute.xlu0 %1588
      %1606 = vmatprep.subr.bf16.mxu0 0
      %1607 = vmatpush1.bf16.msra.mxu0 %v1559
      %1608 = vmatprep.subr.bf16.mxu0 0
      %1609 = vmatpush1.bf16.msra.mxu0 %v1561
      %1610 = vmatprep.subr.bf16.mxu0 0
      %1611 = vmatpush1.bf16.msra.mxu0 %v1563
      %1612 = vmatprep.subr.bf16.mxu0 0
      %1613 = vmatpush1.bf16.msra.mxu0 %v1565
      %1614 = vmatprep.subr.bf16.mxu0 0
      %1615 = vmatpush1.bf16.msra.mxu0 %v1567
      %1616 = vmatprep.subr.bf16.mxu0 0
      %1617 = vmatpush1.bf16.msra.mxu0 %v1569
      %1618 = vmatprep.subr.bf16.mxu0 0
      %1619 = vmatpush1.bf16.msra.mxu0 %v1571
      %1620 = vmatprep.subr.bf16.mxu0 0
      %1621 = vmatpush1.bf16.msra.mxu0 %v1573
      %1622 = vmatprep.subr.bf16.mxu0 0
      %1623 = vmatpush1.bf16.msra.mxu0 %v1575
      %1624 = vmatprep.subr.bf16.mxu0 0
      %1625 = vmatpush1.bf16.msra.mxu0 %v1577
      %1626 = vmatprep.subr.bf16.mxu0 0
      %1627 = vmatpush1.bf16.msra.mxu0 %v1579
      %1628 = vmatprep.subr.bf16.mxu0 0
      %1629 = vmatpush1.bf16.msra.mxu0 %v1581
      %1630 = vmatprep.subr.bf16.mxu0 0
      %1631 = vmatpush1.bf16.msra.mxu0 %v1583
      %1632 = vmatprep.subr.bf16.mxu0 0
      %1633 = vmatpush1.bf16.msra.mxu0 %v1585
      %1634 = vmatprep.subr.bf16.mxu0 0
      %1635 = vmatpush1.bf16.msra.mxu0 %v1587
      %1636 = vmatprep.subr.bf16.mxu0 0
      %1637 = vmatpush1.bf16.msra.mxu0 %v1589
      %1638 = vmatprep.mubr.bf16.mxu0 %v1543
      %1639 = vmatmul.mubr.bf16.gmra.mrb[0].mxu0 %v1542
      %v1640 = vpop.f32.mrb[0].mxu0
      %v1641 = vadd.f32 0.0, %v1640
      %v1642 = vpop.f32.mrb[0].mxu0
      %v1643 = vpop.f32.mrb[0].mxu0
      %v1644 = vadd.f32 0.0, %v1643
      %v1645 = vpop.f32.mrb[0].mxu0
      %1646 = vmatprep.mubr.bf16.mxu0 %v1545
      %1647 = vmatmul.mubr.bf16.gmra.mrb[0].mxu0 %v1544
      %v1648 = vpop.f32.mrb[0].mxu0
      %v1649 = vadd.f32 0.0, %v1648
      %v1650 = vpop.f32.mrb[0].mxu0
      %v1651 = vpop.f32.mrb[0].mxu0
      %v1652 = vadd.f32 0.0, %v1651
      %v1653 = vpop.f32.mrb[0].mxu0
      %1654 = vmatprep.mubr.bf16.mxu0 %v1547
      %1655 = vmatmul.mubr.bf16.gmra.mrb[0].mxu0 %v1546
      %v1656 = vpop.f32.mrb[0].mxu0
      %v1657 = vadd.f32 0.0, %v1656
      %v1658 = vpop.f32.mrb[0].mxu0
      %v1659 = vpop.f32.mrb[0].mxu0
      %v1660 = vadd.f32 0.0, %v1659
      %v1661 = vpop.f32.mrb[0].mxu0
      %1662 = vmatprep.mubr.bf16.mxu0 %v1549
      %1663 = vmatmul.mubr.bf16.gmra.mrb[0].mxu0 %v1548
      %v1664 = vpop.f32.mrb[0].mxu0
      %v1665 = vadd.f32 0.0, %v1664
      %v1666 = vpop.f32.mrb[0].mxu0
      %v1667 = vpop.f32.mrb[0].mxu0
      %v1668 = vadd.f32 0.0, %v1667
      %v1669 = vpop.f32.mrb[0].mxu0
      %1670 = vmatprep.mubr.bf16.mxu0 %v1551
      %1671 = vmatmul.mubr.bf16.gmra.mrb[0].mxu0 %v1550
      %v1672 = vpop.f32.mrb[0].mxu0
      %v1673 = vadd.f32 0.0, %v1672
      %v1674 = vpop.f32.mrb[0].mxu0
      %v1675 = vpop.f32.mrb[0].mxu0
      %v1676 = vadd.f32 0.0, %v1675
      %v1677 = vpop.f32.mrb[0].mxu0
      %1678 = vmatprep.mubr.bf16.mxu0 %v1553
      %1679 = vmatmul.mubr.bf16.gmra.mrb[0].mxu0 %v1552
      %v1680 = vpop.f32.mrb[0].mxu0
      %v1681 = vadd.f32 0.0, %v1680
      %v1682 = vpop.f32.mrb[0].mxu0
      %v1683 = vpop.f32.mrb[0].mxu0
      %v1684 = vadd.f32 0.0, %v1683
      %v1685 = vpop.f32.mrb[0].mxu0
      %1686 = vmatprep.mubr.bf16.mxu0 %v1555
      %1687 = vmatmul.mubr.bf16.gmra.mrb[0].mxu0 %v1554
      %v1688 = vpop.f32.mrb[0].mxu0
      %v1689 = vadd.f32 0.0, %v1688
      %v1690 = vpop.f32.mrb[0].mxu0
      %v1691 = vpop.f32.mrb[0].mxu0
      %v1692 = vadd.f32 0.0, %v1691
      %v1693 = vpop.f32.mrb[0].mxu0
      %1694 = vmatprep.mubr.bf16.mxu0 %v1557
      %1695 = vmatmul.mubr.bf16.gmra.mrb[0].mxu0 %v1556
      %v1696 = vpop.f32.mrb[0].mxu0
      %v1697 = vadd.f32 0.0, %v1696
      %v1698 = vpop.f32.mrb[0].mxu0
      %v1699 = vpop.f32.mrb[0].mxu0
      %v1700 = vadd.f32 0.0, %v1699
      %v1701 = vpop.f32.mrb[0].mxu0
      %1702 = vdwg.mxu0
      %1703 = vset.pattern.permute.xlu0 6
      %1704 = vperm.xlu0 %1703, %v335
      %v1705 = vpop.permute.xlu0 %1704
      %1707 = vset.pattern.permute.xlu0 6
      %1708 = vperm.xlu0 %1707, %v336
      %v1709 = vpop.permute.xlu0 %1708
      %1711 = vset.pattern.permute.xlu0 6
      %1712 = vperm.xlu0 %1711, %v337
      %v1713 = vpop.permute.xlu0 %1712
      %1715 = vset.pattern.permute.xlu0 6
      %1716 = vperm.xlu0 %1715, %v338
      %v1717 = vpop.permute.xlu0 %1716
      %1719 = vset.pattern.permute.xlu0 6
      %1720 = vperm.xlu0 %1719, %v339
      %v1721 = vpop.permute.xlu0 %1720
      %1723 = vset.pattern.permute.xlu0 6
      %1724 = vperm.xlu0 %1723, %v340
      %v1725 = vpop.permute.xlu0 %1724
      %1727 = vset.pattern.permute.xlu0 6
      %1728 = vperm.xlu0 %1727, %v341
      %v1729 = vpop.permute.xlu0 %1728
      %1731 = vset.pattern.permute.xlu0 6
      %1732 = vperm.xlu0 %1731, %v342
      %v1733 = vpop.permute.xlu0 %1732
      %1735 = vset.pattern.permute.xlu0 6
      %1736 = vperm.xlu0 %1735, %v343
      %v1737 = vpop.permute.xlu0 %1736
      %1739 = vset.pattern.permute.xlu0 6
      %1740 = vperm.xlu0 %1739, %v344
      %v1741 = vpop.permute.xlu0 %1740
      %1743 = vset.pattern.permute.xlu0 6
      %1744 = vperm.xlu0 %1743, %v345
      %v1745 = vpop.permute.xlu0 %1744
      %1747 = vset.pattern.permute.xlu0 6
      %1748 = vperm.xlu0 %1747, %v346
      %v1749 = vpop.permute.xlu0 %1748
      %1751 = vset.pattern.permute.xlu0 6
      %1752 = vperm.xlu0 %1751, %v347
      %v1753 = vpop.permute.xlu0 %1752
      %1755 = vset.pattern.permute.xlu0 6
      %1756 = vperm.xlu0 %1755, %v348
      %v1757 = vpop.permute.xlu0 %1756
      %1759 = vset.pattern.permute.xlu0 6
      %1760 = vperm.xlu0 %1759, %v349
      %v1761 = vpop.permute.xlu0 %1760
      %1763 = vset.pattern.permute.xlu0 6
      %1764 = vperm.xlu0 %1763, %v350
      %v1765 = vpop.permute.xlu0 %1764
      %v1767 = vlaneseq
      %v1768 = vshrl.u32 %v1767, 7
      %v1769 = vsub.s32 2, %v1768
      %v1770 = vrot.slane %v334, %v1769
      %v1771 = vlaneseq
      %v1772 = vshrl.u32 %v1771, 7
      %v1773 = vsub.s32 6, %v1772
      %v1774 = vrot.slane %v334, %v1773
      %v1777 = vlaneseq
      %v1778 = vshrl.u32 %v1777, 7
      %v1779 = vsub.s32 2, %v1778
      %v1780 = vrot.slane %v1770, %v1779
      %v1781 = vlaneseq
      %v1782 = vshrl.u32 %v1781, 7
      %v1783 = vsub.s32 2, %v1782
      %v1784 = vrot.slane %v1774, %v1783
      %v1785 = vadd.f32 %v1705, %v1780
      %v1786 = vadd.f32 %v1705, %v1784
      %v1787 = vadd.f32 %v1709, %v1780
      %v1788 = vadd.f32 %v1709, %v1784
      %v1789 = vadd.f32 %v1713, %v1780
      %v1790 = vadd.f32 %v1713, %v1784
      %v1791 = vadd.f32 %v1717, %v1780
      %v1792 = vadd.f32 %v1717, %v1784
      %v1793 = vadd.f32 %v1721, %v1780
      %v1794 = vadd.f32 %v1721, %v1784
      %v1795 = vadd.f32 %v1725, %v1780
      %v1796 = vadd.f32 %v1725, %v1784
      %v1797 = vadd.f32 %v1729, %v1780
      %v1798 = vadd.f32 %v1729, %v1784
      %v1799 = vadd.f32 %v1733, %v1780
      %v1800 = vadd.f32 %v1733, %v1784
      %v1801 = vadd.f32 %v1737, %v1780
      %v1802 = vadd.f32 %v1737, %v1784
      %v1803 = vadd.f32 %v1741, %v1780
      %v1804 = vadd.f32 %v1741, %v1784
      %v1805 = vadd.f32 %v1745, %v1780
      %v1806 = vadd.f32 %v1745, %v1784
      %v1807 = vadd.f32 %v1749, %v1780
      %v1808 = vadd.f32 %v1749, %v1784
      %v1809 = vadd.f32 %v1753, %v1780
      %v1810 = vadd.f32 %v1753, %v1784
      %v1811 = vadd.f32 %v1757, %v1780
      %v1812 = vadd.f32 %v1757, %v1784
      %v1813 = vadd.f32 %v1761, %v1780
      %v1814 = vadd.f32 %v1761, %v1784
      %v1815 = vadd.f32 %v1765, %v1780
      %v1816 = vadd.f32 %v1765, %v1784
      %vm1817 = vcmp.ge.f32.partialorder %v1785, 0.0
      %vm1818 = vcmp.ge.f32.partialorder %v1786, 0.0
      %vm1819 = vcmp.ge.f32.partialorder %v1787, 0.0
      %vm1820 = vcmp.ge.f32.partialorder %v1788, 0.0
      %vm1821 = vcmp.ge.f32.partialorder %v1789, 0.0
      %vm1822 = vcmp.ge.f32.partialorder %v1790, 0.0
      %vm1823 = vcmp.ge.f32.partialorder %v1791, 0.0
      %vm1824 = vcmp.ge.f32.partialorder %v1792, 0.0
      %vm1825 = vcmp.ge.f32.partialorder %v1793, 0.0
      %vm1826 = vcmp.ge.f32.partialorder %v1794, 0.0
      %vm1827 = vcmp.ge.f32.partialorder %v1795, 0.0
      %vm1828 = vcmp.ge.f32.partialorder %v1796, 0.0
      %vm1829 = vcmp.ge.f32.partialorder %v1797, 0.0
      %vm1830 = vcmp.ge.f32.partialorder %v1798, 0.0
      %vm1831 = vcmp.ge.f32.partialorder %v1799, 0.0
      %vm1832 = vcmp.ge.f32.partialorder %v1800, 0.0
      %vm1833 = vcmp.ge.f32.partialorder %v1801, 0.0
      %vm1834 = vcmp.ge.f32.partialorder %v1802, 0.0
      %vm1835 = vcmp.ge.f32.partialorder %v1803, 0.0
      %vm1836 = vcmp.ge.f32.partialorder %v1804, 0.0
      %vm1837 = vcmp.ge.f32.partialorder %v1805, 0.0
      %vm1838 = vcmp.ge.f32.partialorder %v1806, 0.0
      %vm1839 = vcmp.ge.f32.partialorder %v1807, 0.0
      %vm1840 = vcmp.ge.f32.partialorder %v1808, 0.0
      %vm1841 = vcmp.ge.f32.partialorder %v1809, 0.0
      %vm1842 = vcmp.ge.f32.partialorder %v1810, 0.0
      %vm1843 = vcmp.ge.f32.partialorder %v1811, 0.0
      %vm1844 = vcmp.ge.f32.partialorder %v1812, 0.0
      %vm1845 = vcmp.ge.f32.partialorder %v1813, 0.0
      %vm1846 = vcmp.ge.f32.partialorder %v1814, 0.0
      %vm1847 = vcmp.ge.f32.partialorder %v1815, 0.0
      %vm1848 = vcmp.ge.f32.partialorder %v1816, 0.0
      %v1849 = vmul.f32 %v1785, 0.2
      %v1850 = vmul.f32 %v1786, 0.2
      %v1851 = vmul.f32 %v1787, 0.2
      %v1852 = vmul.f32 %v1788, 0.2
      %v1853 = vmul.f32 %v1789, 0.2
      %v1854 = vmul.f32 %v1790, 0.2
      %v1855 = vmul.f32 %v1791, 0.2
      %v1856 = vmul.f32 %v1792, 0.2
      %v1857 = vmul.f32 %v1793, 0.2
      %v1858 = vmul.f32 %v1794, 0.2
      %v1859 = vmul.f32 %v1795, 0.2
      %v1860 = vmul.f32 %v1796, 0.2
      %v1861 = vmul.f32 %v1797, 0.2
      %v1862 = vmul.f32 %v1798, 0.2
      %v1863 = vmul.f32 %v1799, 0.2
      %v1864 = vmul.f32 %v1800, 0.2
      %v1865 = vmul.f32 %v1801, 0.2
      %v1866 = vmul.f32 %v1802, 0.2
      %v1867 = vmul.f32 %v1803, 0.2
      %v1868 = vmul.f32 %v1804, 0.2
      %v1869 = vmul.f32 %v1805, 0.2
      %v1870 = vmul.f32 %v1806, 0.2
      %v1871 = vmul.f32 %v1807, 0.2
      %v1872 = vmul.f32 %v1808, 0.2
      %v1873 = vmul.f32 %v1809, 0.2
      %v1874 = vmul.f32 %v1810, 0.2
      %v1875 = vmul.f32 %v1811, 0.2
      %v1876 = vmul.f32 %v1812, 0.2
      %v1877 = vmul.f32 %v1813, 0.2
      %v1878 = vmul.f32 %v1814, 0.2
      %v1879 = vmul.f32 %v1815, 0.2
      %v1880 = vmul.f32 %v1816, 0.2
      %v1881 = vsel %vm1817, %v1785, %v1849
      %v1882 = vsel %vm1818, %v1786, %v1850
      %v1883 = vsel %vm1819, %v1787, %v1851
      %v1884 = vsel %vm1820, %v1788, %v1852
      %v1885 = vsel %vm1821, %v1789, %v1853
      %v1886 = vsel %vm1822, %v1790, %v1854
      %v1887 = vsel %vm1823, %v1791, %v1855
      %v1888 = vsel %vm1824, %v1792, %v1856
      %v1889 = vsel %vm1825, %v1793, %v1857
      %v1890 = vsel %vm1826, %v1794, %v1858
      %v1891 = vsel %vm1827, %v1795, %v1859
      %v1892 = vsel %vm1828, %v1796, %v1860
      %v1893 = vsel %vm1829, %v1797, %v1861
      %v1894 = vsel %vm1830, %v1798, %v1862
      %v1895 = vsel %vm1831, %v1799, %v1863
      %v1896 = vsel %vm1832, %v1800, %v1864
      %v1897 = vsel %vm1833, %v1801, %v1865
      %v1898 = vsel %vm1834, %v1802, %v1866
      %v1899 = vsel %vm1835, %v1803, %v1867
      %v1900 = vsel %vm1836, %v1804, %v1868
      %v1901 = vsel %vm1837, %v1805, %v1869
      %v1902 = vsel %vm1838, %v1806, %v1870
      %v1903 = vsel %vm1839, %v1807, %v1871
      %v1904 = vsel %vm1840, %v1808, %v1872
      %v1905 = vsel %vm1841, %v1809, %v1873
      %v1906 = vsel %vm1842, %v1810, %v1874
      %v1907 = vsel %vm1843, %v1811, %v1875
      %v1908 = vsel %vm1844, %v1812, %v1876
      %v1909 = vsel %vm1845, %v1813, %v1877
      %v1910 = vsel %vm1846, %v1814, %v1878
      %v1911 = vsel %vm1847, %v1815, %v1879
      %v1912 = vsel %vm1848, %v1816, %v1880
      %v1913 = vadd.f32 %v1881, %v270
      %v1914 = vadd.f32 %v1882, %v271
      %v1915 = vadd.f32 %v1883, %v272
      %v1916 = vadd.f32 %v1884, %v273
      %v1917 = vadd.f32 %v1885, %v274
      %v1918 = vadd.f32 %v1886, %v275
      %v1919 = vadd.f32 %v1887, %v276
      %v1920 = vadd.f32 %v1888, %v277
      %v1921 = vadd.f32 %v1889, %v278
      %v1922 = vadd.f32 %v1890, %v279
      %v1923 = vadd.f32 %v1891, %v280
      %v1924 = vadd.f32 %v1892, %v281
      %v1925 = vadd.f32 %v1893, %v282
      %v1926 = vadd.f32 %v1894, %v283
      %v1927 = vadd.f32 %v1895, %v284
      %v1928 = vadd.f32 %v1896, %v285
      %v1929 = vadd.f32 %v1897, %v286
      %v1930 = vadd.f32 %v1898, %v287
      %v1931 = vadd.f32 %v1899, %v288
      %v1932 = vadd.f32 %v1900, %v289
      %v1933 = vadd.f32 %v1901, %v290
      %v1934 = vadd.f32 %v1902, %v291
      %v1935 = vadd.f32 %v1903, %v292
      %v1936 = vadd.f32 %v1904, %v293
      %v1937 = vadd.f32 %v1905, %v294
      %v1938 = vadd.f32 %v1906, %v295
      %v1939 = vadd.f32 %v1907, %v296
      %v1940 = vadd.f32 %v1908, %v297
      %v1941 = vadd.f32 %v1909, %v298
      %v1942 = vadd.f32 %v1910, %v299
      %v1943 = vadd.f32 %v1911, %v300
      %v1944 = vadd.f32 %v1912, %v301
      %v1945 = vmax.f32 %v1913, %v1914
      %1946 = vmax.xlane.f32.xlu0 %v1945
      %v1947 = vpop.xlane.xlu0 %1946
      %v1948 = vmax.f32 %v1915, %v1916
      %1949 = vmax.xlane.f32.xlu0 %v1948
      %v1950 = vpop.xlane.xlu0 %1949
      %v1951 = vmax.f32 %v1917, %v1918
      %1952 = vmax.xlane.f32.xlu0 %v1951
      %v1953 = vpop.xlane.xlu0 %1952
      %v1954 = vmax.f32 %v1919, %v1920
      %1955 = vmax.xlane.f32.xlu0 %v1954
      %v1956 = vpop.xlane.xlu0 %1955
      %v1957 = vmax.f32 %v1921, %v1922
      %1958 = vmax.xlane.f32.xlu0 %v1957
      %v1959 = vpop.xlane.xlu0 %1958
      %v1960 = vmax.f32 %v1923, %v1924
      %1961 = vmax.xlane.f32.xlu0 %v1960
      %v1962 = vpop.xlane.xlu0 %1961
      %v1963 = vmax.f32 %v1925, %v1926
      %1964 = vmax.xlane.f32.xlu0 %v1963
      %v1965 = vpop.xlane.xlu0 %1964
      %v1966 = vmax.f32 %v1927, %v1928
      %1967 = vmax.xlane.f32.xlu0 %v1966
      %v1968 = vpop.xlane.xlu0 %1967
      %v1969 = vmax.f32 %v1929, %v1930
      %1970 = vmax.xlane.f32.xlu0 %v1969
      %v1971 = vpop.xlane.xlu0 %1970
      %v1972 = vmax.f32 %v1931, %v1932
      %1973 = vmax.xlane.f32.xlu0 %v1972
      %v1974 = vpop.xlane.xlu0 %1973
      %v1975 = vmax.f32 %v1933, %v1934
      %1976 = vmax.xlane.f32.xlu0 %v1975
      %v1977 = vpop.xlane.xlu0 %1976
      %v1978 = vmax.f32 %v1935, %v1936
      %1979 = vmax.xlane.f32.xlu0 %v1978
      %v1980 = vpop.xlane.xlu0 %1979
      %v1981 = vmax.f32 %v1937, %v1938
      %1982 = vmax.xlane.f32.xlu0 %v1981
      %v1983 = vpop.xlane.xlu0 %1982
      %v1984 = vmax.f32 %v1939, %v1940
      %1985 = vmax.xlane.f32.xlu0 %v1984
      %v1986 = vpop.xlane.xlu0 %1985
      %v1987 = vmax.f32 %v1941, %v1942
      %1988 = vmax.xlane.f32.xlu0 %v1987
      %v1989 = vpop.xlane.xlu0 %1988
      %v1990 = vmax.f32 %v1943, %v1944
      %1991 = vmax.xlane.f32.xlu0 %v1990
      %v1992 = vpop.xlane.xlu0 %1991
      %v1993 = vsub.f32 %v1913, %v1947
      %v1994 = vsub.f32 %v1914, %v1947
      %v1995 = vsub.f32 %v1915, %v1950
      %v1996 = vsub.f32 %v1916, %v1950
      %v1997 = vsub.f32 %v1917, %v1953
      %v1998 = vsub.f32 %v1918, %v1953
      %v1999 = vsub.f32 %v1919, %v1956
      %v2000 = vsub.f32 %v1920, %v1956
      %v2001 = vsub.f32 %v1921, %v1959
      %v2002 = vsub.f32 %v1922, %v1959
      %v2003 = vsub.f32 %v1923, %v1962
      %v2004 = vsub.f32 %v1924, %v1962
      %v2005 = vsub.f32 %v1925, %v1965
      %v2006 = vsub.f32 %v1926, %v1965
      %v2007 = vsub.f32 %v1927, %v1968
      %v2008 = vsub.f32 %v1928, %v1968
      %v2009 = vsub.f32 %v1929, %v1971
      %v2010 = vsub.f32 %v1930, %v1971
      %v2011 = vsub.f32 %v1931, %v1974
      %v2012 = vsub.f32 %v1932, %v1974
      %v2013 = vsub.f32 %v1933, %v1977
      %v2014 = vsub.f32 %v1934, %v1977
      %v2015 = vsub.f32 %v1935, %v1980
      %v2016 = vsub.f32 %v1936, %v1980
      %v2017 = vsub.f32 %v1937, %v1983
      %v2018 = vsub.f32 %v1938, %v1983
      %v2019 = vsub.f32 %v1939, %v1986
      %v2020 = vsub.f32 %v1940, %v1986
      %v2021 = vsub.f32 %v1941, %v1989
      %v2022 = vsub.f32 %v1942, %v1989
      %v2023 = vsub.f32 %v1943, %v1992
      %v2024 = vsub.f32 %v1944, %v1992
      %v2025 = vmul.f32 %v1993, 1.442695
      %v2026 = vpow.pop %v2025
      %v2027 = vmul.f32 %v1994, 1.442695
      %v2028 = vpow.pop %v2027
      %v2029 = vmul.f32 %v1995, 1.442695
      %v2030 = vpow.pop %v2029
      %v2031 = vmul.f32 %v1996, 1.442695
      %v2032 = vpow.pop %v2031
      %v2033 = vmul.f32 %v1997, 1.442695
      %v2034 = vpow.pop %v2033
      %v2035 = vmul.f32 %v1998, 1.442695
      %v2036 = vpow.pop %v2035
      %v2037 = vmul.f32 %v1999, 1.442695
      %v2038 = vpow.pop %v2037
      %v2039 = vmul.f32 %v2000, 1.442695
      %v2040 = vpow.pop %v2039
      %v2041 = vmul.f32 %v2001, 1.442695
      %v2042 = vpow.pop %v2041
      %v2043 = vmul.f32 %v2002, 1.442695
      %v2044 = vpow.pop %v2043
      %v2045 = vmul.f32 %v2003, 1.442695
      %v2046 = vpow.pop %v2045
      %v2047 = vmul.f32 %v2004, 1.442695
      %v2048 = vpow.pop %v2047
      %v2049 = vmul.f32 %v2005, 1.442695
      %v2050 = vpow.pop %v2049
      %v2051 = vmul.f32 %v2006, 1.442695
      %v2052 = vpow.pop %v2051
      %v2053 = vmul.f32 %v2007, 1.442695
      %v2054 = vpow.pop %v2053
      %v2055 = vmul.f32 %v2008, 1.442695
      %v2056 = vpow.pop %v2055
      %v2057 = vmul.f32 %v2009, 1.442695
      %v2058 = vpow.pop %v2057
      %v2059 = vmul.f32 %v2010, 1.442695
      %v2060 = vpow.pop %v2059
      %v2061 = vmul.f32 %v2011, 1.442695
      %v2062 = vpow.pop %v2061
      %v2063 = vmul.f32 %v2012, 1.442695
      %v2064 = vpow.pop %v2063
      %v2065 = vmul.f32 %v2013, 1.442695
      %v2066 = vpow.pop %v2065
      %v2067 = vmul.f32 %v2014, 1.442695
      %v2068 = vpow.pop %v2067
      %v2069 = vmul.f32 %v2015, 1.442695
      %v2070 = vpow.pop %v2069
      %v2071 = vmul.f32 %v2016, 1.442695
      %v2072 = vpow.pop %v2071
      %v2073 = vmul.f32 %v2017, 1.442695
      %v2074 = vpow.pop %v2073
      %v2075 = vmul.f32 %v2018, 1.442695
      %v2076 = vpow.pop %v2075
      %v2077 = vmul.f32 %v2019, 1.442695
      %v2078 = vpow.pop %v2077
      %v2079 = vmul.f32 %v2020, 1.442695
      %v2080 = vpow.pop %v2079
      %v2081 = vmul.f32 %v2021, 1.442695
      %v2082 = vpow.pop %v2081
      %v2083 = vmul.f32 %v2022, 1.442695
      %v2084 = vpow.pop %v2083
      %v2085 = vmul.f32 %v2023, 1.442695
      %v2086 = vpow.pop %v2085
      %v2087 = vmul.f32 %v2024, 1.442695
      %v2088 = vpow.pop %v2087
      %v2089 = vadd.f32 %v2026, %v2028
      %2090 = vadd.xlane.f32.xlu0 %v2089
      %v2091 = vpop.xlane.xlu0 %2090
      %v2092 = vadd.f32 %v2030, %v2032
      %2093 = vadd.xlane.f32.xlu0 %v2092
      %v2094 = vpop.xlane.xlu0 %2093
      %v2095 = vadd.f32 %v2034, %v2036
      %2096 = vadd.xlane.f32.xlu0 %v2095
      %v2097 = vpop.xlane.xlu0 %2096
      %v2098 = vadd.f32 %v2038, %v2040
      %2099 = vadd.xlane.f32.xlu0 %v2098
      %v2100 = vpop.xlane.xlu0 %2099
      %v2101 = vadd.f32 %v2042, %v2044
      %2102 = vadd.xlane.f32.xlu0 %v2101
      %v2103 = vpop.xlane.xlu0 %2102
      %v2104 = vadd.f32 %v2046, %v2048
      %2105 = vadd.xlane.f32.xlu0 %v2104
      %v2106 = vpop.xlane.xlu0 %2105
      %v2107 = vadd.f32 %v2050, %v2052
      %2108 = vadd.xlane.f32.xlu0 %v2107
      %v2109 = vpop.xlane.xlu0 %2108
      %v2110 = vadd.f32 %v2054, %v2056
      %2111 = vadd.xlane.f32.xlu0 %v2110
      %v2112 = vpop.xlane.xlu0 %2111
      %v2113 = vadd.f32 %v2058, %v2060
      %2114 = vadd.xlane.f32.xlu0 %v2113
      %v2115 = vpop.xlane.xlu0 %2114
      %v2116 = vadd.f32 %v2062, %v2064
      %2117 = vadd.xlane.f32.xlu0 %v2116
      %v2118 = vpop.xlane.xlu0 %2117
      %v2119 = vadd.f32 %v2066, %v2068
      %2120 = vadd.xlane.f32.xlu0 %v2119
      %v2121 = vpop.xlane.xlu0 %2120
      %v2122 = vadd.f32 %v2070, %v2072
      %2123 = vadd.xlane.f32.xlu0 %v2122
      %v2124 = vpop.xlane.xlu0 %2123
      %v2125 = vadd.f32 %v2074, %v2076
      %2126 = vadd.xlane.f32.xlu0 %v2125
      %v2127 = vpop.xlane.xlu0 %2126
      %v2128 = vadd.f32 %v2078, %v2080
      %2129 = vadd.xlane.f32.xlu0 %v2128
      %v2130 = vpop.xlane.xlu0 %2129
      %v2131 = vadd.f32 %v2082, %v2084
      %2132 = vadd.xlane.f32.xlu0 %v2131
      %v2133 = vpop.xlane.xlu0 %2132
      %v2134 = vadd.f32 %v2086, %v2088
      %2135 = vadd.xlane.f32.xlu0 %v2134
      %v2136 = vpop.xlane.xlu0 %2135
      %v2137 = vrcp.pop %v2091
      %v2138 = vrcp.pop %v2094
      %v2139 = vrcp.pop %v2097
      %v2140 = vrcp.pop %v2100
      %v2141 = vrcp.pop %v2103
      %v2142 = vrcp.pop %v2106
      %v2143 = vrcp.pop %v2109
      %v2144 = vrcp.pop %v2112
      %v2145 = vrcp.pop %v2115
      %v2146 = vrcp.pop %v2118
      %v2147 = vrcp.pop %v2121
      %v2148 = vrcp.pop %v2124
      %v2149 = vrcp.pop %v2127
      %v2150 = vrcp.pop %v2130
      %v2151 = vrcp.pop %v2133
      %v2152 = vrcp.pop %v2136
      %v2153 = vmul.f32 %v2026, %v2137
      %v2154 = vmul.f32 %v2028, %v2137
      %v2155 = vmul.f32 %v2030, %v2138
      %v2156 = vmul.f32 %v2032, %v2138
      %v2157 = vmul.f32 %v2034, %v2139
      %v2158 = vmul.f32 %v2036, %v2139
      %v2159 = vmul.f32 %v2038, %v2140
      %v2160 = vmul.f32 %v2040, %v2140
      %v2161 = vmul.f32 %v2042, %v2141
      %v2162 = vmul.f32 %v2044, %v2141
      %v2163 = vmul.f32 %v2046, %v2142
      %v2164 = vmul.f32 %v2048, %v2142
      %v2165 = vmul.f32 %v2050, %v2143
      %v2166 = vmul.f32 %v2052, %v2143
      %v2167 = vmul.f32 %v2054, %v2144
      %v2168 = vmul.f32 %v2056, %v2144
      %v2169 = vmul.f32 %v2058, %v2145
      %v2170 = vmul.f32 %v2060, %v2145
      %v2171 = vmul.f32 %v2062, %v2146
      %v2172 = vmul.f32 %v2064, %v2146
      %v2173 = vmul.f32 %v2066, %v2147
      %v2174 = vmul.f32 %v2068, %v2147
      %v2175 = vmul.f32 %v2070, %v2148
      %v2176 = vmul.f32 %v2072, %v2148
      %v2177 = vmul.f32 %v2074, %v2149
      %v2178 = vmul.f32 %v2076, %v2149
      %v2179 = vmul.f32 %v2078, %v2150
      %v2180 = vmul.f32 %v2080, %v2150
      %v2181 = vmul.f32 %v2082, %v2151
      %v2182 = vmul.f32 %v2084, %v2151
      %v2183 = vmul.f32 %v2086, %v2152
      %v2184 = vmul.f32 %v2088, %v2152
      %v2185 = vpack.c.bf16 %v2155, %v2153
      %v2186 = vpack.c.bf16 %v2156, %v2154
      %v2187 = vpack.c.bf16 %v2159, %v2157
      %v2188 = vpack.c.bf16 %v2160, %v2158
      %v2189 = vpack.c.bf16 %v2163, %v2161
      %v2190 = vpack.c.bf16 %v2164, %v2162
      %v2191 = vpack.c.bf16 %v2167, %v2165
      %v2192 = vpack.c.bf16 %v2168, %v2166
      %v2193 = vpack.c.bf16 %v2171, %v2169
      %v2194 = vpack.c.bf16 %v2172, %v2170
      %v2195 = vpack.c.bf16 %v2175, %v2173
      %v2196 = vpack.c.bf16 %v2176, %v2174
      %v2197 = vpack.c.bf16 %v2179, %v2177
      %v2198 = vpack.c.bf16 %v2180, %v2178
      %v2199 = vpack.c.bf16 %v2183, %v2181
      %v2200 = vpack.c.bf16 %v2184, %v2182
      %2201 = vrot.lane.b32.xlu0 %v931, 96
      %v2202 = vpop.permute.xlu0 %2201
      %2203 = vrot.lane.b32.xlu0 %v932, 96
      %v2204 = vpop.permute.xlu0 %2203
      %2205 = vrot.lane.b32.xlu0 %v933, 96
      %v2206 = vpop.permute.xlu0 %2205
      %2207 = vrot.lane.b32.xlu0 %v934, 96
      %v2208 = vpop.permute.xlu0 %2207
      %2209 = vrot.lane.b32.xlu0 %v935, 96
      %v2210 = vpop.permute.xlu0 %2209
      %2211 = vrot.lane.b32.xlu0 %v936, 96
      %v2212 = vpop.permute.xlu0 %2211
      %2213 = vrot.lane.b32.xlu0 %v937, 96
      %v2214 = vpop.permute.xlu0 %2213
      %2215 = vrot.lane.b32.xlu0 %v938, 96
      %v2216 = vpop.permute.xlu0 %2215
      %2217 = vrot.lane.b32.xlu0 %v939, 96
      %v2218 = vpop.permute.xlu0 %2217
      %2219 = vrot.lane.b32.xlu0 %v940, 96
      %v2220 = vpop.permute.xlu0 %2219
      %2221 = vrot.lane.b32.xlu0 %v941, 96
      %v2222 = vpop.permute.xlu0 %2221
      %2223 = vrot.lane.b32.xlu0 %v942, 96
      %v2224 = vpop.permute.xlu0 %2223
      %2225 = vrot.lane.b32.xlu0 %v943, 96
      %v2226 = vpop.permute.xlu0 %2225
      %2227 = vrot.lane.b32.xlu0 %v944, 96
      %v2228 = vpop.permute.xlu0 %2227
      %2229 = vrot.lane.b32.xlu0 %v945, 96
      %v2230 = vpop.permute.xlu0 %2229
      %2231 = vrot.lane.b32.xlu0 %v946, 96
      %v2232 = vpop.permute.xlu0 %2231
      %2249 = vmatprep.subr.bf16.mxu0 0
      %2250 = vmatpush1.bf16.msra.mxu0 %v2202
      %2251 = vmatprep.subr.bf16.mxu0 0
      %2252 = vmatpush1.bf16.msra.mxu0 %v2204
      %2253 = vmatprep.subr.bf16.mxu0 0
      %2254 = vmatpush1.bf16.msra.mxu0 %v2206
      %2255 = vmatprep.subr.bf16.mxu0 0
      %2256 = vmatpush1.bf16.msra.mxu0 %v2208
      %2257 = vmatprep.subr.bf16.mxu0 0
      %2258 = vmatpush1.bf16.msra.mxu0 %v2210
      %2259 = vmatprep.subr.bf16.mxu0 0
      %2260 = vmatpush1.bf16.msra.mxu0 %v2212
      %2261 = vmatprep.subr.bf16.mxu0 0
      %2262 = vmatpush1.bf16.msra.mxu0 %v2214
      %2263 = vmatprep.subr.bf16.mxu0 0
      %2264 = vmatpush1.bf16.msra.mxu0 %v2216
      %2265 = vmatprep.subr.bf16.mxu0 0
      %2266 = vmatpush1.bf16.msra.mxu0 %v2218
      %2267 = vmatprep.subr.bf16.mxu0 0
      %2268 = vmatpush1.bf16.msra.mxu0 %v2220
      %2269 = vmatprep.subr.bf16.mxu0 0
      %2270 = vmatpush1.bf16.msra.mxu0 %v2222
      %2271 = vmatprep.subr.bf16.mxu0 0
      %2272 = vmatpush1.bf16.msra.mxu0 %v2224
      %2273 = vmatprep.subr.bf16.mxu0 0
      %2274 = vmatpush1.bf16.msra.mxu0 %v2226
      %2275 = vmatprep.subr.bf16.mxu0 0
      %2276 = vmatpush1.bf16.msra.mxu0 %v2228
      %2277 = vmatprep.subr.bf16.mxu0 0
      %2278 = vmatpush1.bf16.msra.mxu0 %v2230
      %2279 = vmatprep.subr.bf16.mxu0 0
      %2280 = vmatpush1.bf16.msra.mxu0 %v2232
      %2281 = vmatprep.mubr.bf16.mxu0 %v2186
      %2282 = vmatmul.mubr.bf16.gmra.mrb[0].mxu0 %v2185
      %v2283 = vpop.f32.mrb[0].mxu0
      %v2284 = vadd.f32 0.0, %v2283
      %v2285 = vpop.f32.mrb[0].mxu0
      %v2286 = vpop.f32.mrb[0].mxu0
      %v2287 = vadd.f32 0.0, %v2286
      %v2288 = vpop.f32.mrb[0].mxu0
      %2289 = vmatprep.mubr.bf16.mxu0 %v2188
      %2290 = vmatmul.mubr.bf16.gmra.mrb[0].mxu0 %v2187
      %v2291 = vpop.f32.mrb[0].mxu0
      %v2292 = vadd.f32 0.0, %v2291
      %v2293 = vpop.f32.mrb[0].mxu0
      %v2294 = vpop.f32.mrb[0].mxu0
      %v2295 = vadd.f32 0.0, %v2294
      %v2296 = vpop.f32.mrb[0].mxu0
      %2297 = vmatprep.mubr.bf16.mxu0 %v2190
      %2298 = vmatmul.mubr.bf16.gmra.mrb[0].mxu0 %v2189
      %v2299 = vpop.f32.mrb[0].mxu0
      %v2300 = vadd.f32 0.0, %v2299
      %v2301 = vpop.f32.mrb[0].mxu0
      %v2302 = vpop.f32.mrb[0].mxu0
      %v2303 = vadd.f32 0.0, %v2302
      %v2304 = vpop.f32.mrb[0].mxu0
      %2305 = vmatprep.mubr.bf16.mxu0 %v2192
      %2306 = vmatmul.mubr.bf16.gmra.mrb[0].mxu0 %v2191
      %v2307 = vpop.f32.mrb[0].mxu0
      %v2308 = vadd.f32 0.0, %v2307
      %v2309 = vpop.f32.mrb[0].mxu0
      %v2310 = vpop.f32.mrb[0].mxu0
      %v2311 = vadd.f32 0.0, %v2310
      %v2312 = vpop.f32.mrb[0].mxu0
      %2313 = vmatprep.mubr.bf16.mxu0 %v2194
      %2314 = vmatmul.mubr.bf16.gmra.mrb[0].mxu0 %v2193
      %v2315 = vpop.f32.mrb[0].mxu0
      %v2316 = vadd.f32 0.0, %v2315
      %v2317 = vpop.f32.mrb[0].mxu0
      %v2318 = vpop.f32.mrb[0].mxu0
      %v2319 = vadd.f32 0.0, %v2318
      %v2320 = vpop.f32.mrb[0].mxu0
      %2321 = vmatprep.mubr.bf16.mxu0 %v2196
      %2322 = vmatmul.mubr.bf16.gmra.mrb[0].mxu0 %v2195
      %v2323 = vpop.f32.mrb[0].mxu0
      %v2324 = vadd.f32 0.0, %v2323
      %v2325 = vpop.f32.mrb[0].mxu0
      %v2326 = vpop.f32.mrb[0].mxu0
      %v2327 = vadd.f32 0.0, %v2326
      %v2328 = vpop.f32.mrb[0].mxu0
      %2329 = vmatprep.mubr.bf16.mxu0 %v2198
      %2330 = vmatmul.mubr.bf16.gmra.mrb[0].mxu0 %v2197
      %v2331 = vpop.f32.mrb[0].mxu0
      %v2332 = vadd.f32 0.0, %v2331
      %v2333 = vpop.f32.mrb[0].mxu0
      %v2334 = vpop.f32.mrb[0].mxu0
      %v2335 = vadd.f32 0.0, %v2334
      %v2336 = vpop.f32.mrb[0].mxu0
      %2337 = vmatprep.mubr.bf16.mxu0 %v2200
      %2338 = vmatmul.mubr.bf16.gmra.mrb[0].mxu0 %v2199
      %v2339 = vpop.f32.mrb[0].mxu0
      %v2340 = vadd.f32 0.0, %v2339
      %v2341 = vpop.f32.mrb[0].mxu0
      %v2342 = vpop.f32.mrb[0].mxu0
      %v2343 = vadd.f32 0.0, %v2342
      %v2344 = vpop.f32.mrb[0].mxu0
      %2345 = vdwg.mxu0
      %2346 = vset.pattern.permute.xlu0 7
      %2347 = vperm.xlu0 %2346, %v335
      %v2348 = vpop.permute.xlu0 %2347
      %2350 = vset.pattern.permute.xlu0 7
      %2351 = vperm.xlu0 %2350, %v336
      %v2352 = vpop.permute.xlu0 %2351
      %2354 = vset.pattern.permute.xlu0 7
      %2355 = vperm.xlu0 %2354, %v337
      %v2356 = vpop.permute.xlu0 %2355
      %2358 = vset.pattern.permute.xlu0 7
      %2359 = vperm.xlu0 %2358, %v338
      %v2360 = vpop.permute.xlu0 %2359
      %2362 = vset.pattern.permute.xlu0 7
      %2363 = vperm.xlu0 %2362, %v339
      %v2364 = vpop.permute.xlu0 %2363
      %2366 = vset.pattern.permute.xlu0 7
      %2367 = vperm.xlu0 %2366, %v340
      %v2368 = vpop.permute.xlu0 %2367
      %2370 = vset.pattern.permute.xlu0 7
      %2371 = vperm.xlu0 %2370, %v341
      %v2372 = vpop.permute.xlu0 %2371
      %2374 = vset.pattern.permute.xlu0 7
      %2375 = vperm.xlu0 %2374, %v342
      %v2376 = vpop.permute.xlu0 %2375
      %2378 = vset.pattern.permute.xlu0 7
      %2379 = vperm.xlu0 %2378, %v343
      %v2380 = vpop.permute.xlu0 %2379
      %2382 = vset.pattern.permute.xlu0 7
      %2383 = vperm.xlu0 %2382, %v344
      %v2384 = vpop.permute.xlu0 %2383
      %2386 = vset.pattern.permute.xlu0 7
      %2387 = vperm.xlu0 %2386, %v345
      %v2388 = vpop.permute.xlu0 %2387
      %2390 = vset.pattern.permute.xlu0 7
      %2391 = vperm.xlu0 %2390, %v346
      %v2392 = vpop.permute.xlu0 %2391
      %2394 = vset.pattern.permute.xlu0 7
      %2395 = vperm.xlu0 %2394, %v347
      %v2396 = vpop.permute.xlu0 %2395
      %2398 = vset.pattern.permute.xlu0 7
      %2399 = vperm.xlu0 %2398, %v348
      %v2400 = vpop.permute.xlu0 %2399
      %2402 = vset.pattern.permute.xlu0 7
      %2403 = vperm.xlu0 %2402, %v349
      %v2404 = vpop.permute.xlu0 %2403
      %2406 = vset.pattern.permute.xlu0 7
      %2407 = vperm.xlu0 %2406, %v350
      %v2408 = vpop.permute.xlu0 %2407
      %v2410 = vlaneseq
      %v2411 = vshrl.u32 %v2410, 7
      %v2412 = vsub.s32 3, %v2411
      %v2413 = vrot.slane %v334, %v2412
      %v2414 = vlaneseq
      %v2415 = vshrl.u32 %v2414, 7
      %v2416 = vsub.s32 7, %v2415
      %v2417 = vrot.slane %v334, %v2416
      %v2420 = vlaneseq
      %v2421 = vshrl.u32 %v2420, 7
      %v2422 = vsub.s32 3, %v2421
      %v2423 = vrot.slane %v2413, %v2422
      %v2424 = vlaneseq
      %v2425 = vshrl.u32 %v2424, 7
      %v2426 = vsub.s32 3, %v2425
      %v2427 = vrot.slane %v2417, %v2426
      %v2428 = vadd.f32 %v2348, %v2423
      %v2429 = vadd.f32 %v2348, %v2427
      %v2430 = vadd.f32 %v2352, %v2423
      %v2431 = vadd.f32 %v2352, %v2427
      %v2432 = vadd.f32 %v2356, %v2423
      %v2433 = vadd.f32 %v2356, %v2427
      %v2434 = vadd.f32 %v2360, %v2423
      %v2435 = vadd.f32 %v2360, %v2427
      %v2436 = vadd.f32 %v2364, %v2423
      %v2437 = vadd.f32 %v2364, %v2427
      %v2438 = vadd.f32 %v2368, %v2423
      %v2439 = vadd.f32 %v2368, %v2427
      %v2440 = vadd.f32 %v2372, %v2423
      %v2441 = vadd.f32 %v2372, %v2427
      %v2442 = vadd.f32 %v2376, %v2423
      %v2443 = vadd.f32 %v2376, %v2427
      %v2444 = vadd.f32 %v2380, %v2423
      %v2445 = vadd.f32 %v2380, %v2427
      %v2446 = vadd.f32 %v2384, %v2423
      %v2447 = vadd.f32 %v2384, %v2427
      %v2448 = vadd.f32 %v2388, %v2423
      %v2449 = vadd.f32 %v2388, %v2427
      %v2450 = vadd.f32 %v2392, %v2423
      %v2451 = vadd.f32 %v2392, %v2427
      %v2452 = vadd.f32 %v2396, %v2423
      %v2453 = vadd.f32 %v2396, %v2427
      %v2454 = vadd.f32 %v2400, %v2423
      %v2455 = vadd.f32 %v2400, %v2427
      %v2456 = vadd.f32 %v2404, %v2423
      %v2457 = vadd.f32 %v2404, %v2427
      %v2458 = vadd.f32 %v2408, %v2423
      %v2459 = vadd.f32 %v2408, %v2427
      %vm2460 = vcmp.ge.f32.partialorder %v2428, 0.0
      %vm2461 = vcmp.ge.f32.partialorder %v2429, 0.0
      %vm2462 = vcmp.ge.f32.partialorder %v2430, 0.0
      %vm2463 = vcmp.ge.f32.partialorder %v2431, 0.0
      %vm2464 = vcmp.ge.f32.partialorder %v2432, 0.0
      %vm2465 = vcmp.ge.f32.partialorder %v2433, 0.0
      %vm2466 = vcmp.ge.f32.partialorder %v2434, 0.0
      %vm2467 = vcmp.ge.f32.partialorder %v2435, 0.0
      %vm2468 = vcmp.ge.f32.partialorder %v2436, 0.0
      %vm2469 = vcmp.ge.f32.partialorder %v2437, 0.0
      %vm2470 = vcmp.ge.f32.partialorder %v2438, 0.0
      %vm2471 = vcmp.ge.f32.partialorder %v2439, 0.0
      %vm2472 = vcmp.ge.f32.partialorder %v2440, 0.0
      %vm2473 = vcmp.ge.f32.partialorder %v2441, 0.0
      %vm2474 = vcmp.ge.f32.partialorder %v2442, 0.0
      %vm2475 = vcmp.ge.f32.partialorder %v2443, 0.0
      %vm2476 = vcmp.ge.f32.partialorder %v2444, 0.0
      %vm2477 = vcmp.ge.f32.partialorder %v2445, 0.0
      %vm2478 = vcmp.ge.f32.partialorder %v2446, 0.0
      %vm2479 = vcmp.ge.f32.partialorder %v2447, 0.0
      %vm2480 = vcmp.ge.f32.partialorder %v2448, 0.0
      %vm2481 = vcmp.ge.f32.partialorder %v2449, 0.0
      %vm2482 = vcmp.ge.f32.partialorder %v2450, 0.0
      %vm2483 = vcmp.ge.f32.partialorder %v2451, 0.0
      %vm2484 = vcmp.ge.f32.partialorder %v2452, 0.0
      %vm2485 = vcmp.ge.f32.partialorder %v2453, 0.0
      %vm2486 = vcmp.ge.f32.partialorder %v2454, 0.0
      %vm2487 = vcmp.ge.f32.partialorder %v2455, 0.0
      %vm2488 = vcmp.ge.f32.partialorder %v2456, 0.0
      %vm2489 = vcmp.ge.f32.partialorder %v2457, 0.0
      %vm2490 = vcmp.ge.f32.partialorder %v2458, 0.0
      %vm2491 = vcmp.ge.f32.partialorder %v2459, 0.0
      %v2492 = vmul.f32 %v2428, 0.2
      %v2493 = vmul.f32 %v2429, 0.2
      %v2494 = vmul.f32 %v2430, 0.2
      %v2495 = vmul.f32 %v2431, 0.2
      %v2496 = vmul.f32 %v2432, 0.2
      %v2497 = vmul.f32 %v2433, 0.2
      %v2498 = vmul.f32 %v2434, 0.2
      %v2499 = vmul.f32 %v2435, 0.2
      %v2500 = vmul.f32 %v2436, 0.2
      %v2501 = vmul.f32 %v2437, 0.2
      %v2502 = vmul.f32 %v2438, 0.2
      %v2503 = vmul.f32 %v2439, 0.2
      %v2504 = vmul.f32 %v2440, 0.2
      %v2505 = vmul.f32 %v2441, 0.2
      %v2506 = vmul.f32 %v2442, 0.2
      %v2507 = vmul.f32 %v2443, 0.2
      %v2508 = vmul.f32 %v2444, 0.2
      %v2509 = vmul.f32 %v2445, 0.2
      %v2510 = vmul.f32 %v2446, 0.2
      %v2511 = vmul.f32 %v2447, 0.2
      %v2512 = vmul.f32 %v2448, 0.2
      %v2513 = vmul.f32 %v2449, 0.2
      %v2514 = vmul.f32 %v2450, 0.2
      %v2515 = vmul.f32 %v2451, 0.2
      %v2516 = vmul.f32 %v2452, 0.2
      %v2517 = vmul.f32 %v2453, 0.2
      %v2518 = vmul.f32 %v2454, 0.2
      %v2519 = vmul.f32 %v2455, 0.2
      %v2520 = vmul.f32 %v2456, 0.2
      %v2521 = vmul.f32 %v2457, 0.2
      %v2522 = vmul.f32 %v2458, 0.2
      %v2523 = vmul.f32 %v2459, 0.2
      %v2524 = vsel %vm2460, %v2428, %v2492
      %v2525 = vsel %vm2461, %v2429, %v2493
      %v2526 = vsel %vm2462, %v2430, %v2494
      %v2527 = vsel %vm2463, %v2431, %v2495
      %v2528 = vsel %vm2464, %v2432, %v2496
      %v2529 = vsel %vm2465, %v2433, %v2497
      %v2530 = vsel %vm2466, %v2434, %v2498
      %v2531 = vsel %vm2467, %v2435, %v2499
      %v2532 = vsel %vm2468, %v2436, %v2500
      %v2533 = vsel %vm2469, %v2437, %v2501
      %v2534 = vsel %vm2470, %v2438, %v2502
      %v2535 = vsel %vm2471, %v2439, %v2503
      %v2536 = vsel %vm2472, %v2440, %v2504
      %v2537 = vsel %vm2473, %v2441, %v2505
      %v2538 = vsel %vm2474, %v2442, %v2506
      %v2539 = vsel %vm2475, %v2443, %v2507
      %v2540 = vsel %vm2476, %v2444, %v2508
      %v2541 = vsel %vm2477, %v2445, %v2509
      %v2542 = vsel %vm2478, %v2446, %v2510
      %v2543 = vsel %vm2479, %v2447, %v2511
      %v2544 = vsel %vm2480, %v2448, %v2512
      %v2545 = vsel %vm2481, %v2449, %v2513
      %v2546 = vsel %vm2482, %v2450, %v2514
      %v2547 = vsel %vm2483, %v2451, %v2515
      %v2548 = vsel %vm2484, %v2452, %v2516
      %v2549 = vsel %vm2485, %v2453, %v2517
      %v2550 = vsel %vm2486, %v2454, %v2518
      %v2551 = vsel %vm2487, %v2455, %v2519
      %v2552 = vsel %vm2488, %v2456, %v2520
      %v2553 = vsel %vm2489, %v2457, %v2521
      %v2554 = vsel %vm2490, %v2458, %v2522
      %v2555 = vsel %vm2491, %v2459, %v2523
      %v2556 = vadd.f32 %v2524, %v270
      %v2557 = vadd.f32 %v2525, %v271
      %v2558 = vadd.f32 %v2526, %v272
      %v2559 = vadd.f32 %v2527, %v273
      %v2560 = vadd.f32 %v2528, %v274
      %v2561 = vadd.f32 %v2529, %v275
      %v2562 = vadd.f32 %v2530, %v276
      %v2563 = vadd.f32 %v2531, %v277
      %v2564 = vadd.f32 %v2532, %v278
      %v2565 = vadd.f32 %v2533, %v279
      %v2566 = vadd.f32 %v2534, %v280
      %v2567 = vadd.f32 %v2535, %v281
      %v2568 = vadd.f32 %v2536, %v282
      %v2569 = vadd.f32 %v2537, %v283
      %v2570 = vadd.f32 %v2538, %v284
      %v2571 = vadd.f32 %v2539, %v285
      %v2572 = vadd.f32 %v2540, %v286
      %v2573 = vadd.f32 %v2541, %v287
      %v2574 = vadd.f32 %v2542, %v288
      %v2575 = vadd.f32 %v2543, %v289
      %v2576 = vadd.f32 %v2544, %v290
      %v2577 = vadd.f32 %v2545, %v291
      %v2578 = vadd.f32 %v2546, %v292
      %v2579 = vadd.f32 %v2547, %v293
      %v2580 = vadd.f32 %v2548, %v294
      %v2581 = vadd.f32 %v2549, %v295
      %v2582 = vadd.f32 %v2550, %v296
      %v2583 = vadd.f32 %v2551, %v297
      %v2584 = vadd.f32 %v2552, %v298
      %v2585 = vadd.f32 %v2553, %v299
      %v2586 = vadd.f32 %v2554, %v300
      %v2587 = vadd.f32 %v2555, %v301
      %v2588 = vmax.f32 %v2556, %v2557
      %2589 = vmax.xlane.f32.xlu0 %v2588
      %v2590 = vpop.xlane.xlu0 %2589
      %v2591 = vmax.f32 %v2558, %v2559
      %2592 = vmax.xlane.f32.xlu0 %v2591
      %v2593 = vpop.xlane.xlu0 %2592
      %v2594 = vmax.f32 %v2560, %v2561
      %2595 = vmax.xlane.f32.xlu0 %v2594
      %v2596 = vpop.xlane.xlu0 %2595
      %v2597 = vmax.f32 %v2562, %v2563
      %2598 = vmax.xlane.f32.xlu0 %v2597
      %v2599 = vpop.xlane.xlu0 %2598
      %v2600 = vmax.f32 %v2564, %v2565
      %2601 = vmax.xlane.f32.xlu0 %v2600
      %v2602 = vpop.xlane.xlu0 %2601
      %v2603 = vmax.f32 %v2566, %v2567
      %2604 = vmax.xlane.f32.xlu0 %v2603
      %v2605 = vpop.xlane.xlu0 %2604
      %v2606 = vmax.f32 %v2568, %v2569
      %2607 = vmax.xlane.f32.xlu0 %v2606
      %v2608 = vpop.xlane.xlu0 %2607
      %v2609 = vmax.f32 %v2570, %v2571
      %2610 = vmax.xlane.f32.xlu0 %v2609
      %v2611 = vpop.xlane.xlu0 %2610
      %v2612 = vmax.f32 %v2572, %v2573
      %2613 = vmax.xlane.f32.xlu0 %v2612
      %v2614 = vpop.xlane.xlu0 %2613
      %v2615 = vmax.f32 %v2574, %v2575
      %2616 = vmax.xlane.f32.xlu0 %v2615
      %v2617 = vpop.xlane.xlu0 %2616
      %v2618 = vmax.f32 %v2576, %v2577
      %2619 = vmax.xlane.f32.xlu0 %v2618
      %v2620 = vpop.xlane.xlu0 %2619
      %v2621 = vmax.f32 %v2578, %v2579
      %2622 = vmax.xlane.f32.xlu0 %v2621
      %v2623 = vpop.xlane.xlu0 %2622
      %v2624 = vmax.f32 %v2580, %v2581
      %2625 = vmax.xlane.f32.xlu0 %v2624
      %v2626 = vpop.xlane.xlu0 %2625
      %v2627 = vmax.f32 %v2582, %v2583
      %2628 = vmax.xlane.f32.xlu0 %v2627
      %v2629 = vpop.xlane.xlu0 %2628
      %v2630 = vmax.f32 %v2584, %v2585
      %2631 = vmax.xlane.f32.xlu0 %v2630
      %v2632 = vpop.xlane.xlu0 %2631
      %v2633 = vmax.f32 %v2586, %v2587
      %2634 = vmax.xlane.f32.xlu0 %v2633
      %v2635 = vpop.xlane.xlu0 %2634
      %v2636 = vsub.f32 %v2556, %v2590
      %v2637 = vsub.f32 %v2557, %v2590
      %v2638 = vsub.f32 %v2558, %v2593
      %v2639 = vsub.f32 %v2559, %v2593
      %v2640 = vsub.f32 %v2560, %v2596
      %v2641 = vsub.f32 %v2561, %v2596
      %v2642 = vsub.f32 %v2562, %v2599
      %v2643 = vsub.f32 %v2563, %v2599
      %v2644 = vsub.f32 %v2564, %v2602
      %v2645 = vsub.f32 %v2565, %v2602
      %v2646 = vsub.f32 %v2566, %v2605
      %v2647 = vsub.f32 %v2567, %v2605
      %v2648 = vsub.f32 %v2568, %v2608
      %v2649 = vsub.f32 %v2569, %v2608
      %v2650 = vsub.f32 %v2570, %v2611
      %v2651 = vsub.f32 %v2571, %v2611
      %v2652 = vsub.f32 %v2572, %v2614
      %v2653 = vsub.f32 %v2573, %v2614
      %v2654 = vsub.f32 %v2574, %v2617
      %v2655 = vsub.f32 %v2575, %v2617
      %v2656 = vsub.f32 %v2576, %v2620
      %v2657 = vsub.f32 %v2577, %v2620
      %v2658 = vsub.f32 %v2578, %v2623
      %v2659 = vsub.f32 %v2579, %v2623
      %v2660 = vsub.f32 %v2580, %v2626
      %v2661 = vsub.f32 %v2581, %v2626
      %v2662 = vsub.f32 %v2582, %v2629
      %v2663 = vsub.f32 %v2583, %v2629
      %v2664 = vsub.f32 %v2584, %v2632
      %v2665 = vsub.f32 %v2585, %v2632
      %v2666 = vsub.f32 %v2586, %v2635
      %v2667 = vsub.f32 %v2587, %v2635
      %v2668 = vmul.f32 %v2636, 1.442695
      %v2669 = vpow.pop %v2668
      %v2670 = vmul.f32 %v2637, 1.442695
      %v2671 = vpow.pop %v2670
      %v2672 = vmul.f32 %v2638, 1.442695
      %v2673 = vpow.pop %v2672
      %v2674 = vmul.f32 %v2639, 1.442695
      %v2675 = vpow.pop %v2674
      %v2676 = vmul.f32 %v2640, 1.442695
      %v2677 = vpow.pop %v2676
      %v2678 = vmul.f32 %v2641, 1.442695
      %v2679 = vpow.pop %v2678
      %v2680 = vmul.f32 %v2642, 1.442695
      %v2681 = vpow.pop %v2680
      %v2682 = vmul.f32 %v2643, 1.442695
      %v2683 = vpow.pop %v2682
      %v2684 = vmul.f32 %v2644, 1.442695
      %v2685 = vpow.pop %v2684
      %v2686 = vmul.f32 %v2645, 1.442695
      %v2687 = vpow.pop %v2686
      %v2688 = vmul.f32 %v2646, 1.442695
      %v2689 = vpow.pop %v2688
      %v2690 = vmul.f32 %v2647, 1.442695
      %v2691 = vpow.pop %v2690
      %v2692 = vmul.f32 %v2648, 1.442695
      %v2693 = vpow.pop %v2692
      %v2694 = vmul.f32 %v2649, 1.442695
      %v2695 = vpow.pop %v2694
      %v2696 = vmul.f32 %v2650, 1.442695
      %v2697 = vpow.pop %v2696
      %v2698 = vmul.f32 %v2651, 1.442695
      %v2699 = vpow.pop %v2698
      %v2700 = vmul.f32 %v2652, 1.442695
      %v2701 = vpow.pop %v2700
      %v2702 = vmul.f32 %v2653, 1.442695
      %v2703 = vpow.pop %v2702
      %v2704 = vmul.f32 %v2654, 1.442695
      %v2705 = vpow.pop %v2704
      %v2706 = vmul.f32 %v2655, 1.442695
      %v2707 = vpow.pop %v2706
      %v2708 = vmul.f32 %v2656, 1.442695
      %v2709 = vpow.pop %v2708
      %v2710 = vmul.f32 %v2657, 1.442695
      %v2711 = vpow.pop %v2710
      %v2712 = vmul.f32 %v2658, 1.442695
      %v2713 = vpow.pop %v2712
      %v2714 = vmul.f32 %v2659, 1.442695
      %v2715 = vpow.pop %v2714
      %v2716 = vmul.f32 %v2660, 1.442695
      %v2717 = vpow.pop %v2716
      %v2718 = vmul.f32 %v2661, 1.442695
      %v2719 = vpow.pop %v2718
      %v2720 = vmul.f32 %v2662, 1.442695
      %v2721 = vpow.pop %v2720
      %v2722 = vmul.f32 %v2663, 1.442695
      %v2723 = vpow.pop %v2722
      %v2724 = vmul.f32 %v2664, 1.442695
      %v2725 = vpow.pop %v2724
      %v2726 = vmul.f32 %v2665, 1.442695
      %v2727 = vpow.pop %v2726
      %v2728 = vmul.f32 %v2666, 1.442695
      %v2729 = vpow.pop %v2728
      %v2730 = vmul.f32 %v2667, 1.442695
      %v2731 = vpow.pop %v2730
      %v2732 = vadd.f32 %v2669, %v2671
      %2733 = vadd.xlane.f32.xlu0 %v2732
      %v2734 = vpop.xlane.xlu0 %2733
      %v2735 = vadd.f32 %v2673, %v2675
      %2736 = vadd.xlane.f32.xlu0 %v2735
      %v2737 = vpop.xlane.xlu0 %2736
      %v2738 = vadd.f32 %v2677, %v2679
      %2739 = vadd.xlane.f32.xlu0 %v2738
      %v2740 = vpop.xlane.xlu0 %2739
      %v2741 = vadd.f32 %v2681, %v2683
      %2742 = vadd.xlane.f32.xlu0 %v2741
      %v2743 = vpop.xlane.xlu0 %2742
      %v2744 = vadd.f32 %v2685, %v2687
      %2745 = vadd.xlane.f32.xlu0 %v2744
      %v2746 = vpop.xlane.xlu0 %2745
      %v2747 = vadd.f32 %v2689, %v2691
      %2748 = vadd.xlane.f32.xlu0 %v2747
      %v2749 = vpop.xlane.xlu0 %2748
      %v2750 = vadd.f32 %v2693, %v2695
      %2751 = vadd.xlane.f32.xlu0 %v2750
      %v2752 = vpop.xlane.xlu0 %2751
      %v2753 = vadd.f32 %v2697, %v2699
      %2754 = vadd.xlane.f32.xlu0 %v2753
      %v2755 = vpop.xlane.xlu0 %2754
      %v2756 = vadd.f32 %v2701, %v2703
      %2757 = vadd.xlane.f32.xlu0 %v2756
      %v2758 = vpop.xlane.xlu0 %2757
      %v2759 = vadd.f32 %v2705, %v2707
      %2760 = vadd.xlane.f32.xlu0 %v2759
      %v2761 = vpop.xlane.xlu0 %2760
      %v2762 = vadd.f32 %v2709, %v2711
      %2763 = vadd.xlane.f32.xlu0 %v2762
      %v2764 = vpop.xlane.xlu0 %2763
      %v2765 = vadd.f32 %v2713, %v2715
      %2766 = vadd.xlane.f32.xlu0 %v2765
      %v2767 = vpop.xlane.xlu0 %2766
      %v2768 = vadd.f32 %v2717, %v2719
      %2769 = vadd.xlane.f32.xlu0 %v2768
      %v2770 = vpop.xlane.xlu0 %2769
      %v2771 = vadd.f32 %v2721, %v2723
      %2772 = vadd.xlane.f32.xlu0 %v2771
      %v2773 = vpop.xlane.xlu0 %2772
      %v2774 = vadd.f32 %v2725, %v2727
      %2775 = vadd.xlane.f32.xlu0 %v2774
      %v2776 = vpop.xlane.xlu0 %2775
      %v2777 = vadd.f32 %v2729, %v2731
      %2778 = vadd.xlane.f32.xlu0 %v2777
      %v2779 = vpop.xlane.xlu0 %2778
      %v2780 = vrcp.pop %v2734
      %v2781 = vrcp.pop %v2737
      %v2782 = vrcp.pop %v2740
      %v2783 = vrcp.pop %v2743
      %v2784 = vrcp.pop %v2746
      %v2785 = vrcp.pop %v2749
      %v2786 = vrcp.pop %v2752
      %v2787 = vrcp.pop %v2755
      %v2788 = vrcp.pop %v2758
      %v2789 = vrcp.pop %v2761
      %v2790 = vrcp.pop %v2764
      %v2791 = vrcp.pop %v2767
      %v2792 = vrcp.pop %v2770
      %v2793 = vrcp.pop %v2773
      %v2794 = vrcp.pop %v2776
      %v2795 = vrcp.pop %v2779
      %v2796 = vmul.f32 %v2669, %v2780
      %v2797 = vmul.f32 %v2671, %v2780
      %v2798 = vmul.f32 %v2673, %v2781
      %v2799 = vmul.f32 %v2675, %v2781
      %v2800 = vmul.f32 %v2677, %v2782
      %v2801 = vmul.f32 %v2679, %v2782
      %v2802 = vmul.f32 %v2681, %v2783
      %v2803 = vmul.f32 %v2683, %v2783
      %v2804 = vmul.f32 %v2685, %v2784
      %v2805 = vmul.f32 %v2687, %v2784
      %v2806 = vmul.f32 %v2689, %v2785
      %v2807 = vmul.f32 %v2691, %v2785
      %v2808 = vmul.f32 %v2693, %v2786
      %v2809 = vmul.f32 %v2695, %v2786
      %v2810 = vmul.f32 %v2697, %v2787
      %v2811 = vmul.f32 %v2699, %v2787
      %v2812 = vmul.f32 %v2701, %v2788
      %v2813 = vmul.f32 %v2703, %v2788
      %v2814 = vmul.f32 %v2705, %v2789
      %v2815 = vmul.f32 %v2707, %v2789
      %v2816 = vmul.f32 %v2709, %v2790
      %v2817 = vmul.f32 %v2711, %v2790
      %v2818 = vmul.f32 %v2713, %v2791
      %v2819 = vmul.f32 %v2715, %v2791
      %v2820 = vmul.f32 %v2717, %v2792
      %v2821 = vmul.f32 %v2719, %v2792
      %v2822 = vmul.f32 %v2721, %v2793
      %v2823 = vmul.f32 %v2723, %v2793
      %v2824 = vmul.f32 %v2725, %v2794
      %v2825 = vmul.f32 %v2727, %v2794
      %v2826 = vmul.f32 %v2729, %v2795
      %v2827 = vmul.f32 %v2731, %v2795
      %v2828 = vpack.c.bf16 %v2798, %v2796
      %v2829 = vpack.c.bf16 %v2799, %v2797
      %v2830 = vpack.c.bf16 %v2802, %v2800
      %v2831 = vpack.c.bf16 %v2803, %v2801
      %v2832 = vpack.c.bf16 %v2806, %v2804
      %v2833 = vpack.c.bf16 %v2807, %v2805
      %v2834 = vpack.c.bf16 %v2810, %v2808
      %v2835 = vpack.c.bf16 %v2811, %v2809
      %v2836 = vpack.c.bf16 %v2814, %v2812
      %v2837 = vpack.c.bf16 %v2815, %v2813
      %v2838 = vpack.c.bf16 %v2818, %v2816
      %v2839 = vpack.c.bf16 %v2819, %v2817
      %v2840 = vpack.c.bf16 %v2822, %v2820
      %v2841 = vpack.c.bf16 %v2823, %v2821
      %v2842 = vpack.c.bf16 %v2826, %v2824
      %v2843 = vpack.c.bf16 %v2827, %v2825
      %2844 = vrot.lane.b32.xlu0 %v931, 80
      %v2845 = vpop.permute.xlu0 %2844
      %2846 = vrot.lane.b32.xlu0 %v932, 80
      %v2847 = vpop.permute.xlu0 %2846
      %2848 = vrot.lane.b32.xlu0 %v933, 80
      %v2849 = vpop.permute.xlu0 %2848
      %2850 = vrot.lane.b32.xlu0 %v934, 80
      %v2851 = vpop.permute.xlu0 %2850
      %2852 = vrot.lane.b32.xlu0 %v935, 80
      %v2853 = vpop.permute.xlu0 %2852
      %2854 = vrot.lane.b32.xlu0 %v936, 80
      %v2855 = vpop.permute.xlu0 %2854
      %2856 = vrot.lane.b32.xlu0 %v937, 80
      %v2857 = vpop.permute.xlu0 %2856
      %2858 = vrot.lane.b32.xlu0 %v938, 80
      %v2859 = vpop.permute.xlu0 %2858
      %2860 = vrot.lane.b32.xlu0 %v939, 80
      %v2861 = vpop.permute.xlu0 %2860
      %2862 = vrot.lane.b32.xlu0 %v940, 80
      %v2863 = vpop.permute.xlu0 %2862
      %2864 = vrot.lane.b32.xlu0 %v941, 80
      %v2865 = vpop.permute.xlu0 %2864
      %2866 = vrot.lane.b32.xlu0 %v942, 80
      %v2867 = vpop.permute.xlu0 %2866
      %2868 = vrot.lane.b32.xlu0 %v943, 80
      %v2869 = vpop.permute.xlu0 %2868
      %2870 = vrot.lane.b32.xlu0 %v944, 80
      %v2871 = vpop.permute.xlu0 %2870
      %2872 = vrot.lane.b32.xlu0 %v945, 80
      %v2873 = vpop.permute.xlu0 %2872
      %2874 = vrot.lane.b32.xlu0 %v946, 80
      %v2875 = vpop.permute.xlu0 %2874
      %2892 = vmatprep.subr.bf16.mxu0 0
      %2893 = vmatpush1.bf16.msra.mxu0 %v2845
      %2894 = vmatprep.subr.bf16.mxu0 0
      %2895 = vmatpush1.bf16.msra.mxu0 %v2847
      %2896 = vmatprep.subr.bf16.mxu0 0
      %2897 = vmatpush1.bf16.msra.mxu0 %v2849
      %2898 = vmatprep.subr.bf16.mxu0 0
      %2899 = vmatpush1.bf16.msra.mxu0 %v2851
      %2900 = vmatprep.subr.bf16.mxu0 0
      %2901 = vmatpush1.bf16.msra.mxu0 %v2853
      %2902 = vmatprep.subr.bf16.mxu0 0
      %2903 = vmatpush1.bf16.msra.mxu0 %v2855
      %2904 = vmatprep.subr.bf16.mxu0 0
      %2905 = vmatpush1.bf16.msra.mxu0 %v2857
      %2906 = vmatprep.subr.bf16.mxu0 0
      %2907 = vmatpush1.bf16.msra.mxu0 %v2859
      %2908 = vmatprep.subr.bf16.mxu0 0
      %2909 = vmatpush1.bf16.msra.mxu0 %v2861
      %2910 = vmatprep.subr.bf16.mxu0 0
      %2911 = vmatpush1.bf16.msra.mxu0 %v2863
      %2912 = vmatprep.subr.bf16.mxu0 0
      %2913 = vmatpush1.bf16.msra.mxu0 %v2865
      %2914 = vmatprep.subr.bf16.mxu0 0
      %2915 = vmatpush1.bf16.msra.mxu0 %v2867
      %2916 = vmatprep.subr.bf16.mxu0 0
      %2917 = vmatpush1.bf16.msra.mxu0 %v2869
      %2918 = vmatprep.subr.bf16.mxu0 0
      %2919 = vmatpush1.bf16.msra.mxu0 %v2871
      %2920 = vmatprep.subr.bf16.mxu0 0
      %2921 = vmatpush1.bf16.msra.mxu0 %v2873
      %2922 = vmatprep.subr.bf16.mxu0 0
      %2923 = vmatpush1.bf16.msra.mxu0 %v2875
      %2924 = vmatprep.mubr.bf16.mxu0 %v2829
      %2925 = vmatmul.mubr.bf16.gmra.mrb[0].mxu0 %v2828
      %v2926 = vpop.f32.mrb[0].mxu0
      %v2927 = vadd.f32 0.0, %v2926
      %v2928 = vpop.f32.mrb[0].mxu0
      %v2929 = vpop.f32.mrb[0].mxu0
      %v2930 = vadd.f32 0.0, %v2929
      %v2931 = vpop.f32.mrb[0].mxu0
      %2932 = vmatprep.mubr.bf16.mxu0 %v2831
      %2933 = vmatmul.mubr.bf16.gmra.mrb[0].mxu0 %v2830
      %v2934 = vpop.f32.mrb[0].mxu0
      %v2935 = vadd.f32 0.0, %v2934
      %v2936 = vpop.f32.mrb[0].mxu0
      %v2937 = vpop.f32.mrb[0].mxu0
      %v2938 = vadd.f32 0.0, %v2937
      %v2939 = vpop.f32.mrb[0].mxu0
      %2940 = vmatprep.mubr.bf16.mxu0 %v2833
      %2941 = vmatmul.mubr.bf16.gmra.mrb[0].mxu0 %v2832
      %v2942 = vpop.f32.mrb[0].mxu0
      %v2943 = vadd.f32 0.0, %v2942
      %v2944 = vpop.f32.mrb[0].mxu0
      %v2945 = vpop.f32.mrb[0].mxu0
      %v2946 = vadd.f32 0.0, %v2945
      %v2947 = vpop.f32.mrb[0].mxu0
      %2948 = vmatprep.mubr.bf16.mxu0 %v2835
      %2949 = vmatmul.mubr.bf16.gmra.mrb[0].mxu0 %v2834
      %v2950 = vpop.f32.mrb[0].mxu0
      %v2951 = vadd.f32 0.0, %v2950
      %v2952 = vpop.f32.mrb[0].mxu0
      %v2953 = vpop.f32.mrb[0].mxu0
      %v2954 = vadd.f32 0.0, %v2953
      %v2955 = vpop.f32.mrb[0].mxu0
      %2956 = vmatprep.mubr.bf16.mxu0 %v2837
      %2957 = vmatmul.mubr.bf16.gmra.mrb[0].mxu0 %v2836
      %v2958 = vpop.f32.mrb[0].mxu0
      %v2959 = vadd.f32 0.0, %v2958
      %v2960 = vpop.f32.mrb[0].mxu0
      %v2961 = vpop.f32.mrb[0].mxu0
      %v2962 = vadd.f32 0.0, %v2961
      %v2963 = vpop.f32.mrb[0].mxu0
      %2964 = vmatprep.mubr.bf16.mxu0 %v2839
      %2965 = vmatmul.mubr.bf16.gmra.mrb[0].mxu0 %v2838
      %v2966 = vpop.f32.mrb[0].mxu0
      %v2967 = vadd.f32 0.0, %v2966
      %v2968 = vpop.f32.mrb[0].mxu0
      %v2969 = vpop.f32.mrb[0].mxu0
      %v2970 = vadd.f32 0.0, %v2969
      %v2971 = vpop.f32.mrb[0].mxu0
      %2972 = vmatprep.mubr.bf16.mxu0 %v2841
      %2973 = vmatmul.mubr.bf16.gmra.mrb[0].mxu0 %v2840
      %v2974 = vpop.f32.mrb[0].mxu0
      %v2975 = vadd.f32 0.0, %v2974
      %v2976 = vpop.f32.mrb[0].mxu0
      %v2977 = vpop.f32.mrb[0].mxu0
      %v2978 = vadd.f32 0.0, %v2977
      %v2979 = vpop.f32.mrb[0].mxu0
      %2980 = vmatprep.mubr.bf16.mxu0 %v2843
      %2981 = vmatmul.mubr.bf16.gmra.mrb[0].mxu0 %v2842
      %v2982 = vpop.f32.mrb[0].mxu0
      %v2983 = vadd.f32 0.0, %v2982
      %v2984 = vpop.f32.mrb[0].mxu0
      %v2985 = vpop.f32.mrb[0].mxu0
      %v2986 = vadd.f32 0.0, %v2985
      %v2987 = vpop.f32.mrb[0].mxu0
      %2988 = vdwg.mxu0
      %3005 = vrot.lane.b32.xlu0 %v1641, 16
      %v3006 = vpop.permute.xlu0 %3005
      %3007 = vrot.lane.b32.xlu0 %v1644, 16
      %v3008 = vpop.permute.xlu0 %3007
      %3009 = vrot.lane.b32.xlu0 %v1649, 16
      %v3010 = vpop.permute.xlu0 %3009
      %3011 = vrot.lane.b32.xlu0 %v1652, 16
      %v3012 = vpop.permute.xlu0 %3011
      %3013 = vrot.lane.b32.xlu0 %v1657, 16
      %v3014 = vpop.permute.xlu0 %3013
      %3015 = vrot.lane.b32.xlu0 %v1660, 16
      %v3016 = vpop.permute.xlu0 %3015
      %3017 = vrot.lane.b32.xlu0 %v1665, 16
      %v3018 = vpop.permute.xlu0 %3017
      %3019 = vrot.lane.b32.xlu0 %v1668, 16
      %v3020 = vpop.permute.xlu0 %3019
      %3021 = vrot.lane.b32.xlu0 %v1673, 16
      %v3022 = vpop.permute.xlu0 %3021
      %3023 = vrot.lane.b32.xlu0 %v1676, 16
      %v3024 = vpop.permute.xlu0 %3023
      %3025 = vrot.lane.b32.xlu0 %v1681, 16
      %v3026 = vpop.permute.xlu0 %3025
      %3027 = vrot.lane.b32.xlu0 %v1684, 16
      %v3028 = vpop.permute.xlu0 %3027
      %3029 = vrot.lane.b32.xlu0 %v1689, 16
      %v3030 = vpop.permute.xlu0 %3029
      %3031 = vrot.lane.b32.xlu0 %v1692, 16
      %v3032 = vpop.permute.xlu0 %3031
      %3033 = vrot.lane.b32.xlu0 %v1697, 16
      %v3034 = vpop.permute.xlu0 %3033
      %3035 = vrot.lane.b32.xlu0 %v1700, 16
      %v3036 = vpop.permute.xlu0 %3035
      %3069 = vrot.lane.b32.xlu0 %v2284, 32
      %v3070 = vpop.permute.xlu0 %3069
      %3071 = vrot.lane.b32.xlu0 %v2287, 32
      %v3072 = vpop.permute.xlu0 %3071
      %3073 = vrot.lane.b32.xlu0 %v2292, 32
      %v3074 = vpop.permute.xlu0 %3073
      %3075 = vrot.lane.b32.xlu0 %v2295, 32
      %v3076 = vpop.permute.xlu0 %3075
      %3077 = vrot.lane.b32.xlu0 %v2300, 32
      %v3078 = vpop.permute.xlu0 %3077
      %3079 = vrot.lane.b32.xlu0 %v2303, 32
      %v3080 = vpop.permute.xlu0 %3079
      %3081 = vrot.lane.b32.xlu0 %v2308, 32
      %v3082 = vpop.permute.xlu0 %3081
      %3083 = vrot.lane.b32.xlu0 %v2311, 32
      %v3084 = vpop.permute.xlu0 %3083
      %3085 = vrot.lane.b32.xlu0 %v2316, 32
      %v3086 = vpop.permute.xlu0 %3085
      %3087 = vrot.lane.b32.xlu0 %v2319, 32
      %v3088 = vpop.permute.xlu0 %3087
      %3089 = vrot.lane.b32.xlu0 %v2324, 32
      %v3090 = vpop.permute.xlu0 %3089
      %3091 = vrot.lane.b32.xlu0 %v2327, 32
      %v3092 = vpop.permute.xlu0 %3091
      %3093 = vrot.lane.b32.xlu0 %v2332, 32
      %v3094 = vpop.permute.xlu0 %3093
      %3095 = vrot.lane.b32.xlu0 %v2335, 32
      %v3096 = vpop.permute.xlu0 %3095
      %3097 = vrot.lane.b32.xlu0 %v2340, 32
      %v3098 = vpop.permute.xlu0 %3097
      %3099 = vrot.lane.b32.xlu0 %v2343, 32
      %v3100 = vpop.permute.xlu0 %3099
      %3133 = vrot.lane.b32.xlu0 %v2927, 48
      %v3134 = vpop.permute.xlu0 %3133
      %3135 = vrot.lane.b32.xlu0 %v2930, 48
      %v3136 = vpop.permute.xlu0 %3135
      %3137 = vrot.lane.b32.xlu0 %v2935, 48
      %v3138 = vpop.permute.xlu0 %3137
      %3139 = vrot.lane.b32.xlu0 %v2938, 48
      %v3140 = vpop.permute.xlu0 %3139
      %3141 = vrot.lane.b32.xlu0 %v2943, 48
      %v3142 = vpop.permute.xlu0 %3141
      %3143 = vrot.lane.b32.xlu0 %v2946, 48
      %v3144 = vpop.permute.xlu0 %3143
      %3145 = vrot.lane.b32.xlu0 %v2951, 48
      %v3146 = vpop.permute.xlu0 %3145
      %3147 = vrot.lane.b32.xlu0 %v2954, 48
      %v3148 = vpop.permute.xlu0 %3147
      %3149 = vrot.lane.b32.xlu0 %v2959, 48
      %v3150 = vpop.permute.xlu0 %3149
      %3151 = vrot.lane.b32.xlu0 %v2962, 48
      %v3152 = vpop.permute.xlu0 %3151
      %3153 = vrot.lane.b32.xlu0 %v2967, 48
      %v3154 = vpop.permute.xlu0 %3153
      %3155 = vrot.lane.b32.xlu0 %v2970, 48
      %v3156 = vpop.permute.xlu0 %3155
      %3157 = vrot.lane.b32.xlu0 %v2975, 48
      %v3158 = vpop.permute.xlu0 %3157
      %3159 = vrot.lane.b32.xlu0 %v2978, 48
      %v3160 = vpop.permute.xlu0 %3159
      %3161 = vrot.lane.b32.xlu0 %v2983, 48
      %v3162 = vpop.permute.xlu0 %3161
      %3163 = vrot.lane.b32.xlu0 %v2986, 48
      %v3164 = vpop.permute.xlu0 %3163
      %vm3181 = vcmask 130048
      %v3182 = vsel %vm3181, %v998, %v3006
      %v3183 = vsel %vm3181, %v1001, %v3008
      %v3184 = vsel %vm3181, %v1006, %v3010
      %v3185 = vsel %vm3181, %v1009, %v3012
      %v3186 = vsel %vm3181, %v1014, %v3014
      %v3187 = vsel %vm3181, %v1017, %v3016
      %v3188 = vsel %vm3181, %v1022, %v3018
      %v3189 = vsel %vm3181, %v1025, %v3020
      %v3190 = vsel %vm3181, %v1030, %v3022
      %v3191 = vsel %vm3181, %v1033, %v3024
      %v3192 = vsel %vm3181, %v1038, %v3026
      %v3193 = vsel %vm3181, %v1041, %v3028
      %v3194 = vsel %vm3181, %v1046, %v3030
      %v3195 = vsel %vm3181, %v1049, %v3032
      %v3196 = vsel %vm3181, %v1054, %v3034
      %v3197 = vsel %vm3181, %v1057, %v3036
      %vm3198 = vcmask 261120
      %v3199 = vsel %vm3198, %v3182, %v3070
      %v3200 = vsel %vm3198, %v3183, %v3072
      %v3201 = vsel %vm3198, %v3184, %v3074
      %v3202 = vsel %vm3198, %v3185, %v3076
      %v3203 = vsel %vm3198, %v3186, %v3078
      %v3204 = vsel %vm3198, %v3187, %v3080
      %v3205 = vsel %vm3198, %v3188, %v3082
      %v3206 = vsel %vm3198, %v3189, %v3084
      %v3207 = vsel %vm3198, %v3190, %v3086
      %v3208 = vsel %vm3198, %v3191, %v3088
      %v3209 = vsel %vm3198, %v3192, %v3090
      %v3210 = vsel %vm3198, %v3193, %v3092
      %v3211 = vsel %vm3198, %v3194, %v3094
      %v3212 = vsel %vm3198, %v3195, %v3096
      %v3213 = vsel %vm3198, %v3196, %v3098
      %v3214 = vsel %vm3198, %v3197, %v3100
      %vm3215 = vcmask 392192
      %v3216 = vsel %vm3215, %v3199, %v3134
      %v3217 = vsel %vm3215, %v3200, %v3136
      %v3218 = vsel %vm3215, %v3201, %v3138
      %v3219 = vsel %vm3215, %v3202, %v3140
      %v3220 = vsel %vm3215, %v3203, %v3142
      %v3221 = vsel %vm3215, %v3204, %v3144
      %v3222 = vsel %vm3215, %v3205, %v3146
      %v3223 = vsel %vm3215, %v3206, %v3148
      %v3224 = vsel %vm3215, %v3207, %v3150
      %v3225 = vsel %vm3215, %v3208, %v3152
      %v3226 = vsel %vm3215, %v3209, %v3154
      %v3227 = vsel %vm3215, %v3210, %v3156
      %v3228 = vsel %vm3215, %v3211, %v3158
      %v3229 = vsel %vm3215, %v3212, %v3160
      %v3230 = vsel %vm3215, %v3213, %v3162
      %v3231 = vsel %vm3215, %v3214, %v3164
      %vm3232 = vcmask 523264
      %v3233 = vsel %vm3232, %v3216, 0.0
      %v3234 = vsel %vm3232, %v3217, 0.0
      %v3235 = vsel %vm3232, %v3218, 0.0
      %v3236 = vsel %vm3232, %v3219, 0.0
      %v3237 = vsel %vm3232, %v3220, 0.0
      %v3238 = vsel %vm3232, %v3221, 0.0
      %v3239 = vsel %vm3232, %v3222, 0.0
      %v3240 = vsel %vm3232, %v3223, 0.0
      %v3241 = vsel %vm3232, %v3224, 0.0
      %v3242 = vsel %vm3232, %v3225, 0.0
      %v3243 = vsel %vm3232, %v3226, 0.0
      %v3244 = vsel %vm3232, %v3227, 0.0
      %v3245 = vsel %vm3232, %v3228, 0.0
      %v3246 = vsel %vm3232, %v3229, 0.0
      %v3247 = vsel %vm3232, %v3230, 0.0
      %v3248 = vsel %vm3232, %v3231, 0.0
      %v3250 = vlaneseq
      %v3251 = vshrl.u32 %v3250, 7
      %v3252 = vsub.s32 0, %v3251
      %v3253 = vrot.slane %v351, %v3252
      %v3255 = vadd.f32 %v3233, %v3253
      %v3256 = vadd.f32 %v3234, %v3253
      %v3257 = vadd.f32 %v3235, %v3253
      %v3258 = vadd.f32 %v3236, %v3253
      %v3259 = vadd.f32 %v3237, %v3253
      %v3260 = vadd.f32 %v3238, %v3253
      %v3261 = vadd.f32 %v3239, %v3253
      %v3262 = vadd.f32 %v3240, %v3253
      %v3263 = vadd.f32 %v3241, %v3253
      %v3264 = vadd.f32 %v3242, %v3253
      %v3265 = vadd.f32 %v3243, %v3253
      %v3266 = vadd.f32 %v3244, %v3253
      %v3267 = vadd.f32 %v3245, %v3253
      %v3268 = vadd.f32 %v3246, %v3253
      %v3269 = vadd.f32 %v3247, %v3253
      %v3270 = vadd.f32 %v3248, %v3253
      %v3271 = vmax.f32 %v3255, 0.0
      %v3272 = vmax.f32 %v3256, 0.0
      %v3273 = vmax.f32 %v3257, 0.0
      %v3274 = vmax.f32 %v3258, 0.0
      %v3275 = vmax.f32 %v3259, 0.0
      %v3276 = vmax.f32 %v3260, 0.0
      %v3277 = vmax.f32 %v3261, 0.0
      %v3278 = vmax.f32 %v3262, 0.0
      %v3279 = vmax.f32 %v3263, 0.0
      %v3280 = vmax.f32 %v3264, 0.0
      %v3281 = vmax.f32 %v3265, 0.0
      %v3282 = vmax.f32 %v3266, 0.0
      %v3283 = vmax.f32 %v3267, 0.0
      %v3284 = vmax.f32 %v3268, 0.0
      %v3285 = vmax.f32 %v3269, 0.0
      %v3286 = vmax.f32 %v3270, 0.0
      %3287 = vst [vmem:[%s251] sm:$0xff] %v3271
      %3288 = vst [vmem:[%s251 + $0x8] sm:$0xff] %v3272
      %3289 = vst [vmem:[%s251 + $0x10] sm:$0xff] %v3273
      %3290 = vst [vmem:[%s251 + $0x18] sm:$0xff] %v3274
      %3291 = vst [vmem:[%s251 + $0x20] sm:$0xff] %v3275
      %3292 = vst [vmem:[%s251 + $0x28] sm:$0xff] %v3276
      %3293 = vst [vmem:[%s251 + $0x30] sm:$0xff] %v3277
      %3294 = vst [vmem:[%s251 + $0x38] sm:$0xff] %v3278
      %3295 = vst [vmem:[%s251 + $0x40] sm:$0xff] %v3279
      %3296 = vst [vmem:[%s251 + $0x48] sm:$0xff] %v3280
      %3297 = vst [vmem:[%s251 + $0x50] sm:$0xff] %v3281
      %3298 = vst [vmem:[%s251 + $0x58] sm:$0xff] %v3282
      %3299 = vst [vmem:[%s251 + $0x60] sm:$0xff] %v3283
      %3300 = vst [vmem:[%s251 + $0x68] sm:$0xff] %v3284
      %3301 = vst [vmem:[%s251 + $0x70] sm:$0xff] %v3285
      %3302 = vst [vmem:[%s251 + $0x78] sm:$0xff] %v3286
      %s3303 = smul.u32 16, %s16
      %p3304 = scmp.lt.s32.totalorder %s3303, 31
      %s3305 = scalar_select %p3304, %s3303, 31
      %s3306 = smul.addr %s3305, 8
      %s3307 = scalar_lea.vmem %s5, %s3306
      // Predicated region
      $region41: #{ti_gat_forward.16} parent=39 // pred_check
        %p3308 = pneg %p149
      $region42: #{ti_gat_forward.16} parent=39 // pred_check_branch
        %3310 = sbr.rel (%p3308) target = $region44
      $region43: #{ti_gat_forward.16} parent=39 // pred_region
        %s3311 = smul.u32 16, %s16
      $region44: #{ti_gat_forward.16} parent=39 // pred_fallthru
        _
    $region40: #{ti_gat_forward.16} parent=5 // pred_fallthru
      _
    %p3312 = scmp.le.s32.totalorder 2, %s11
    // Predicated region
    $region45: #{ti_gat_forward.16} parent=5 // pred_check
      %p3313 = pneg %p3312
    $region46: #{ti_gat_forward.16} parent=5 // pred_check_branch
      %3315 = sbr.rel (%p3313) target = $region48
    $region47: #{ti_gat_forward.16} parent=5 // pred_region
      %s3316 = ssub.s32 %s11, 2
      // Predicated region
      $region49: #{ti_gat_forward.16} parent=47 // pred_check
        %p3317 = pneg %p155
      $region50: #{ti_gat_forward.16} parent=47 // pred_check_branch
        %3319 = sbr.rel (%p3317) target = $region52
      $region51: #{ti_gat_forward.16} parent=47 // pred_region
        %s3320 = smul.u32 16, %s17
        %p3321 = scmp.lt.s32.totalorder %s3320, 31
        %s3322 = scalar_select %p3321, %s3320, 31
        %s3323 = smul.addr %s3322, 8
        %s3324 = scalar_lea.vmem %s5, %s3323
      $region52: #{ti_gat_forward.16} parent=47 // pred_fallthru
        _
    $region48: #{ti_gat_forward.16} parent=5 // pred_fallthru
      _
  $region6: #{ti_gat_forward.16} parent=0 // loop_footer
    %s15 = sadd.s32 1, %s11
  $region7: #{ti_gat_forward.16} parent=0 // loop_footer_branch
    %10 = sbr.rel target = $region3
  $region8: #{ti_gat_forward.16} parent=0 // loop_exit
    _

</llo_original>
